<compile_context>
chip_gen: v7x
topology: tpu7x:2x2x1
jax: 0.10.0
libtpu: 0.0.40
codegen_flags: <defaults>
</compile_context>

<pallas_src>
import functools

import jax
import jax.numpy as jnp
from jax.experimental import pallas as pl
from jax.experimental.pallas import tpu as pltpu


def _sigmoid(x):
    # Single EUP push (tanh) instead of exp + reciprocal (2 pushes).
    return 0.5 * (1.0 + jnp.tanh(0.5 * x))


def lstm_seq_kernel(xw_ref, whh_ref, h_out_ref, h_sc, c_sc):
    """One (batch tile, time chunk) of the LSTM recurrence.

    xw_ref   : (TS, 4, TB, Hp)  precomputed x_t @ W_ih.T + (b_ih+b_hh), per gate
    whh_ref  : (4, Hp, Hp)      per-gate W_hh.T (lane/sublane padded)
    h_out_ref: (TB, Hp)         last hidden state (written at the final chunk)
    h_sc/c_sc: (TB, Hp) f32     hidden/cell state carried across time chunks
    """
    t_chunk = pl.program_id(1)

    @pl.when(t_chunk == 0)
    def _():
        h_sc[...] = jnp.zeros_like(h_sc)
        c_sc[...] = jnp.zeros_like(c_sc)

    TS = xw_ref.shape[0]
    mm_dtype = whh_ref.dtype

    def step(t, carry):
        h, c = carry
        hm = h.astype(mm_dtype)

        def pre(g):
            # Per-gate recurrent matmul reading straight off the VMEM refs:
            # no whole-(Hp,4Hp) weight hoisted into vregs (that is 64 vregs in
            # f32 and guarantees spills in the unrolled loop).  Gate g's
            # EUP/VPU work can overlap the next gate's matmul in the MXU.
            return (xw_ref[t, g].astype(jnp.float32)
                    + jnp.dot(hm, whh_ref[g],
                              preferred_element_type=jnp.float32))

        i_g = _sigmoid(pre(0))
        f_g = _sigmoid(pre(1))
        g_g = jnp.tanh(pre(2))
        o_g = _sigmoid(pre(3))
        c_new = f_g * c + i_g * g_g
        h_new = o_g * jnp.tanh(c_new)
        return h_new, c_new

    # Short fixed trip count -> unroll for LLO scheduler visibility.
    h_last, c_last = jax.lax.fori_loop(0, TS, step, (h_sc[...], c_sc[...]),
                                       unroll=True)
    h_sc[...] = h_last
    c_sc[...] = c_last

    @pl.when(t_chunk == pl.num_programs(1) - 1)
    def _():
        h_out_ref[...] = h_last


def _round_up(a, m):
    return ((a + m - 1) // m) * m


def _pick_batch_tile(B, sublane):
    """Batch tile: <=128, rounded to the sublane multiple, and >=2 tiles when
    the batch is big enough so the 'parallel' axis can shard across TCs,
    without ballooning Bp for awkward B (e.g. B=129 -> TB=72, Bp=144)."""
    cap = 128
    n_tiles = max(1, -(-B // cap))
    if n_tiles < 2 and B >= 2 * sublane:
        n_tiles = 2
    return min(cap, _round_up(-(-B // n_tiles), sublane))


def _pick_time_chunk(S, TB, Hp, itemsize, budget_bytes=4 * 1024 * 1024):
    """Largest divisor of S whose double-buffered xw chunk fits the budget
    (keeps the pipeline inside v5e's 16 MiB scoped default / v7x's 64 MiB)."""
    per_step = 2 * 4 * TB * Hp * itemsize   # 2x for BlockSpec double-buffering
    best = 1
    for d in range(1, S + 1):
        if S % d == 0 and d * per_step <= budget_bytes:
            best = d
    return best


@functools.partial(jax.jit, static_argnames=("n_classes", "matmul_dtype"))
def rnn_forward(x, w_ih, w_hh, b_ih, b_hh, w_fc, b_fc, *, n_classes,
                matmul_dtype=jnp.float32):
    """x: (B, S, I) batch-first f32. Returns (B, n_classes).

    matmul_dtype: dtype of the recurrent-matmul operands (bf16 recommended on
    v6e/v7x); accumulation and gate nonlinearities are always f32.
    """
    B, S, I = x.shape
    H = w_hh.shape[1]                          # w_hh is (4H, H)
    Hp = _round_up(H, 128)                     # lane-pad hidden size
    mm_dtype = jnp.dtype(matmul_dtype)
    sublane = 16 if mm_dtype == jnp.bfloat16 else 8

    TB = _pick_batch_tile(B, sublane)
    Bp = _round_up(B, TB)
    TS = _pick_time_chunk(S, TB, Hp, mm_dtype.itemsize)

    # ---- pad the (small) parameters once, not the big activation ----------
    w_ih4 = jnp.pad(w_ih.reshape(4, H, I), ((0, 0), (0, Hp - H), (0, 0)))
    bias4 = jnp.pad((b_ih + b_hh).reshape(4, H), ((0, 0), (0, Hp - H)))
    w_hh4 = jnp.pad(w_hh.reshape(4, H, H),
                    ((0, 0), (0, Hp - H), (0, Hp - H)))          # (4, Hp, Hp)
    whh_p = jnp.transpose(w_hh4, (0, 2, 1)).astype(mm_dtype)     # per-gate W_hh.T

    # ---- hoisted input projection: one matmul, emitted directly time-major,
    #      per-gate and already padded -> (S, 4, Bp, Hp) ---------------------
    x_p = jnp.pad(x, ((0, Bp - B), (0, 0), (0, 0)))
    xw = jnp.einsum('bsi,ghi->sgbh', x_p, w_ih4) + bias4[None, :, None, :]
    xw = xw.astype(mm_dtype)

    nb, nt = Bp // TB, S // TS

    h_last_p = pl.pallas_call(
        lstm_seq_kernel,
        out_shape=jax.ShapeDtypeStruct((Bp, Hp), jnp.float32),
        grid_spec=pltpu.PrefetchScalarGridSpec(
            num_scalar_prefetch=0,
            grid=(nb, nt),                      # time (reduction) axis last
            in_specs=[
                pl.BlockSpec((TS, 4, TB, Hp), lambda b, t: (t, 0, b, 0)),
                pl.BlockSpec((4, Hp, Hp), lambda b, t: (0, 0, 0)),
            ],
            out_specs=pl.BlockSpec((TB, Hp), lambda b, t: (b, 0)),
            scratch_shapes=[pltpu.VMEM((TB, Hp), jnp.float32),   # h carry
                            pltpu.VMEM((TB, Hp), jnp.float32)],  # c carry
        ),
        compiler_params=pltpu.CompilerParams(
            dimension_semantics=("parallel", "arbitrary"),
        ),
    )(xw, whh_p)

    # ---- final Linear on the last hidden state (XLA, lane-dense input) -----
    h_last = h_last_p[:B, :H]
    return h_last @ w_fc.T + b_fc.reshape(1, n_classes)


def reference_forward(x, w_ih, w_hh, b_ih, b_hh, w_fc, b_fc):
    """Pure-JAX reference matching torch.nn.LSTM(batch_first=True) + Linear."""
    B, S, I = x.shape
    H = w_hh.shape[1]

    def step(carry, x_t):
        h, c = carry
        gates = x_t @ w_ih.T + h @ w_hh.T + b_ih + b_hh
        i_g = jax.nn.sigmoid(gates[:, 0 * H:1 * H])
        f_g = jax.nn.sigmoid(gates[:, 1 * H:2 * H])
        g_g = jnp.tanh(gates[:, 2 * H:3 * H])
        o_g = jax.nn.sigmoid(gates[:, 3 * H:4 * H])
        c_new = f_g * c + i_g * g_g
        h_new = o_g * jnp.tanh(c_new)
        return (h_new, c_new), None

    h0 = jnp.zeros((B, H), jnp.float32)
    c0 = jnp.zeros((B, H), jnp.float32)
    (h_last, _), _ = jax.lax.scan(step, (h0, c0), jnp.transpose(x, (1, 0, 2)))
    return h_last @ w_fc.T + b_fc


if __name__ == "__main__":
    # Small shapes consistent with the module's forward: (batch, seq, nInput).
    B, S = 8, 8
    nInput, nHidden, nClasses = 16, 32, 10

    key = jax.random.PRNGKey(0)
    ks = jax.random.split(key, 8)
    k = 1.0 / jnp.sqrt(nHidden)  # PyTorch default uniform(-1/sqrt(H), 1/sqrt(H))

    x = jax.random.normal(ks[0], (B, S, nInput), jnp.float32)
    w_ih = jax.random.uniform(ks[1], (4 * nHidden, nInput), jnp.float32, -k, k)
    w_hh = jax.random.uniform(ks[2], (4 * nHidden, nHidden), jnp.float32, -k, k)
    b_ih = jax.random.uniform(ks[3], (4 * nHidden,), jnp.float32, -k, k)
    b_hh = jax.random.uniform(ks[4], (4 * nHidden,), jnp.float32, -k, k)
    w_fc = jax.random.uniform(ks[5], (nClasses, nHidden), jnp.float32, -k, k)
    b_fc = jax.random.uniform(ks[6], (nClasses,), jnp.float32, -k, k)

    ref = reference_forward(x, w_ih, w_hh, b_ih, b_hh, w_fc, b_fc)

    # f32 recurrent matmul: tight check against the pure-JAX reference.
    out_f32 = rnn_forward(x, w_ih, w_hh, b_ih, b_hh, w_fc, b_fc,
                          n_classes=nClasses, matmul_dtype=jnp.float32)
    out_f32 = jax.block_until_ready(out_f32)
    assert out_f32.shape == (B, nClasses)
    assert jnp.allclose(out_f32, ref, atol=2e-5, rtol=2e-5), "f32 mismatch"

    # bf16 MXU operands (f32 accumulate, f32 gate math): the v6e/v7x perf path.
    out_bf16 = rnn_forward(x, w_ih, w_hh, b_ih, b_hh, w_fc, b_fc,
                           n_classes=nClasses, matmul_dtype=jnp.bfloat16)
    out_bf16 = jax.block_until_ready(out_bf16)
    assert out_bf16.shape == (B, nClasses)
    assert jnp.allclose(out_bf16, ref, atol=5e-2, rtol=5e-2), "bf16 mismatch"

    print("KERNEL_OK")
</pallas_src>

<mosaic_0001>
module attributes {stable_mosaic.version = 11 : i64} {
  func.func @lstm_seq_kernel(%arg0: i32, %arg1: i32, %arg2: memref<8x4x8x128xf32, #tpu.memory_space<vmem>>, %arg3: memref<4x128x128xf32, #tpu.memory_space<vmem>>, %arg4: memref<8x128xf32, #tpu.memory_space<vmem>>, %arg5: memref<8x128xf32, #tpu.memory_space<vmem>>, %arg6: memref<8x128xf32, #tpu.memory_space<vmem>>) attributes {dimension_semantics = [#tpu.dimension_semantics<parallel>, #tpu.dimension_semantics<arbitrary>], iteration_bounds = array<i64: 1, 1>, scalar_prefetch = 0 : i64, scratch_operands = 2 : i64, tpu.core_type = #tpu.core_type<tc>, window_params = [{transform_indices = @transform_0, window_bounds = array<i64: 8, 4, 8, 128>}, {pipeline_mode = #tpu.pipeline_mode<synchronous>, transform_indices = @transform_1, window_bounds = array<i64: 4, 128, 128>}, {transform_indices = @transform_2, window_bounds = array<i64: 8, 128>}]} {
    %c0_i32 = arith.constant 0 : i32
    %0 = arith.cmpi eq, %arg1, %c0_i32 : i32
    %1 = arith.extui %0 : i1 to i32
    %c0_i32_0 = arith.constant 0 : i32
    %2 = arith.cmpi ne, %1, %c0_i32_0 : i32
    scf.if %2 {
      %cst_303 = arith.constant 0.000000e+00 : f32
      %450 = vector.broadcast %cst_303 : f32 to vector<8x128xf32>
      %c0_304 = arith.constant 0 : index
      %c0_305 = arith.constant 0 : index
      %451 = vector.load %arg5[%c0_304, %c0_305] : memref<8x128xf32, #tpu.memory_space<vmem>>, vector<8x128xf32>
      tpu.vector_store %arg5[%c0_304, %c0_305], %450 {strides = array<i32>} : memref<8x128xf32, #tpu.memory_space<vmem>>, vector<8x128xf32>,
      %cst_306 = arith.constant 0.000000e+00 : f32
      %452 = vector.broadcast %cst_306 : f32 to vector<8x128xf32>
      %c0_307 = arith.constant 0 : index
      %c0_308 = arith.constant 0 : index
      %453 = vector.load %arg6[%c0_307, %c0_308] : memref<8x128xf32, #tpu.memory_space<vmem>>, vector<8x128xf32>
      tpu.vector_store %arg6[%c0_307, %c0_308], %452 {strides = array<i32>} : memref<8x128xf32, #tpu.memory_space<vmem>>, vector<8x128xf32>,
    } else {
    }
    %c0 = arith.constant 0 : index
    %c0_1 = arith.constant 0 : index
    %3 = vector.load %arg5[%c0, %c0_1] : memref<8x128xf32, #tpu.memory_space<vmem>>, vector<8x128xf32>
    %c0_2 = arith.constant 0 : index
    %c0_3 = arith.constant 0 : index
    %4 = vector.load %arg6[%c0_2, %c0_3] : memref<8x128xf32, #tpu.memory_space<vmem>>, vector<8x128xf32>
    %c0_i32_4 = arith.constant 0 : i32
    %5 = arith.index_cast %c0_i32_4 : i32 to index
    %c0_5 = arith.constant 0 : index
    %c0_6 = arith.constant 0 : index
    %c0_7 = arith.constant 0 : index
    %6 = vector.load %arg2[%5, %c0_5, %c0_6, %c0_7] : memref<8x4x8x128xf32, #tpu.memory_space<vmem>>, vector<1x1x8x128xf32>
    %7 = vector.shape_cast %6 : vector<1x1x8x128xf32> to vector<8x128xf32>
    %c0_8 = arith.constant 0 : index
    %c0_9 = arith.constant 0 : index
    %c0_10 = arith.constant 0 : index
    %8 = vector.load %arg3[%c0_8, %c0_9, %c0_10] : memref<4x128x128xf32, #tpu.memory_space<vmem>>, vector<1x128x128xf32>
    %9 = vector.shape_cast %8 : vector<1x128x128xf32> to vector<128x128xf32>
    %cst = arith.constant dense<0.000000e+00> : vector<8x128xf32>
    %10 = tpu.matmul %3, %9, %cst {dimension_numbers = #tpu.dot_dimension_numbers<[1], [0], [0], [1], [0, 0, 1, 1], [], []>} : vector<8x128xf32>, vector<128x128xf32>, vector<8x128xf32> -> vector<8x128xf32>
    %11 = arith.addf %7, %10 : vector<8x128xf32>
    %cst_11 = arith.constant 5.000000e-01 : f32
    %12 = vector.broadcast %cst_11 : f32 to vector<8x128xf32>
    %13 = arith.mulf %12, %11 : vector<8x128xf32>
    %14 = math.tanh %13 : vector<8x128xf32>
    %cst_12 = arith.constant 1.000000e+00 : f32
    %15 = vector.broadcast %cst_12 : f32 to vector<8x128xf32>
    %16 = arith.addf %15, %14 : vector<8x128xf32>
    %cst_13 = arith.constant 5.000000e-01 : f32
    %17 = vector.broadcast %cst_13 : f32 to vector<8x128xf32>
    %18 = arith.mulf %17, %16 : vector<8x128xf32>
    %19 = arith.index_cast %c0_i32_4 : i32 to index
    %c1 = arith.constant 1 : index
    %c0_14 = arith.constant 0 : index
    %c0_15 = arith.constant 0 : index
    %20 = vector.load %arg2[%19, %c1, %c0_14, %c0_15] : memref<8x4x8x128xf32, #tpu.memory_space<vmem>>, vector<1x1x8x128xf32>
    %21 = vector.shape_cast %20 : vector<1x1x8x128xf32> to vector<8x128xf32>
    %c1_16 = arith.constant 1 : index
    %c0_17 = arith.constant 0 : index
    %c0_18 = arith.constant 0 : index
    %22 = vector.load %arg3[%c1_16, %c0_17, %c0_18] : memref<4x128x128xf32, #tpu.memory_space<vmem>>, vector<1x128x128xf32>
    %23 = vector.shape_cast %22 : vector<1x128x128xf32> to vector<128x128xf32>
    %cst_19 = arith.constant dense<0.000000e+00> : vector<8x128xf32>
    %24 = tpu.matmul %3, %23, %cst_19 {dimension_numbers = #tpu.dot_dimension_numbers<[1], [0], [0], [1], [0, 0, 1, 1], [], []>} : vector<8x128xf32>, vector<128x128xf32>, vector<8x128xf32> -> vector<8x128xf32>
    %25 = arith.addf %21, %24 : vector<8x128xf32>
    %cst_20 = arith.constant 5.000000e-01 : f32
    %26 = vector.broadcast %cst_20 : f32 to vector<8x128xf32>
    %27 = arith.mulf %26, %25 : vector<8x128xf32>
    %28 = math.tanh %27 : vector<8x128xf32>
    %cst_21 = arith.constant 1.000000e+00 : f32
    %29 = vector.broadcast %cst_21 : f32 to vector<8x128xf32>
    %30 = arith.addf %29, %28 : vector<8x128xf32>
    %cst_22 = arith.constant 5.000000e-01 : f32
    %31 = vector.broadcast %cst_22 : f32 to vector<8x128xf32>
    %32 = arith.mulf %31, %30 : vector<8x128xf32>
    %33 = arith.index_cast %c0_i32_4 : i32 to index
    %c2 = arith.constant 2 : index
    %c0_23 = arith.constant 0 : index
    %c0_24 = arith.constant 0 : index
    %34 = vector.load %arg2[%33, %c2, %c0_23, %c0_24] : memref<8x4x8x128xf32, #tpu.memory_space<vmem>>, vector<1x1x8x128xf32>
    %35 = vector.shape_cast %34 : vector<1x1x8x128xf32> to vector<8x128xf32>
    %c2_25 = arith.constant 2 : index
    %c0_26 = arith.constant 0 : index
    %c0_27 = arith.constant 0 : index
    %36 = vector.load %arg3[%c2_25, %c0_26, %c0_27] : memref<4x128x128xf32, #tpu.memory_space<vmem>>, vector<1x128x128xf32>
    %37 = vector.shape_cast %36 : vector<1x128x128xf32> to vector<128x128xf32>
    %cst_28 = arith.constant dense<0.000000e+00> : vector<8x128xf32>
    %38 = tpu.matmul %3, %37, %cst_28 {dimension_numbers = #tpu.dot_dimension_numbers<[1], [0], [0], [1], [0, 0, 1, 1], [], []>} : vector<8x128xf32>, vector<128x128xf32>, vector<8x128xf32> -> vector<8x128xf32>
    %39 = arith.addf %35, %38 : vector<8x128xf32>
    %40 = math.tanh %39 : vector<8x128xf32>
    %41 = arith.index_cast %c0_i32_4 : i32 to index
    %c3 = arith.constant 3 : index
    %c0_29 = arith.constant 0 : index
    %c0_30 = arith.constant 0 : index
    %42 = vector.load %arg2[%41, %c3, %c0_29, %c0_30] : memref<8x4x8x128xf32, #tpu.memory_space<vmem>>, vector<1x1x8x128xf32>
    %43 = vector.shape_cast %42 : vector<1x1x8x128xf32> to vector<8x128xf32>
    %c3_31 = arith.constant 3 : index
    %c0_32 = arith.constant 0 : index
    %c0_33 = arith.constant 0 : index
    %44 = vector.load %arg3[%c3_31, %c0_32, %c0_33] : memref<4x128x128xf32, #tpu.memory_space<vmem>>, vector<1x128x128xf32>
    %45 = vector.shape_cast %44 : vector<1x128x128xf32> to vector<128x128xf32>
    %cst_34 = arith.constant dense<0.000000e+00> : vector<8x128xf32>
    %46 = tpu.matmul %3, %45, %cst_34 {dimension_numbers = #tpu.dot_dimension_numbers<[1], [0], [0], [1], [0, 0, 1, 1], [], []>} : vector<8x128xf32>, vector<128x128xf32>, vector<8x128xf32> -> vector<8x128xf32>
    %47 = arith.addf %43, %46 : vector<8x128xf32>
    %cst_35 = arith.constant 5.000000e-01 : f32
    %48 = vector.broadcast %cst_35 : f32 to vector<8x128xf32>
    %49 = arith.mulf %48, %47 : vector<8x128xf32>
    %50 = math.tanh %49 : vector<8x128xf32>
    %cst_36 = arith.constant 1.000000e+00 : f32
    %51 = vector.broadcast %cst_36 : f32 to vector<8x128xf32>
    %52 = arith.addf %51, %50 : vector<8x128xf32>
    %cst_37 = arith.constant 5.000000e-01 : f32
    %53 = vector.broadcast %cst_37 : f32 to vector<8x128xf32>
    %54 = arith.mulf %53, %52 : vector<8x128xf32>
    %55 = arith.mulf %32, %4 : vector<8x128xf32>
    %56 = arith.mulf %18, %40 : vector<8x128xf32>
    %57 = arith.addf %55, %56 : vector<8x128xf32>
    %58 = math.tanh %57 : vector<8x128xf32>
    %59 = arith.mulf %54, %58 : vector<8x128xf32>
    %c1_i32 = arith.constant 1 : i32
    %60 = arith.index_cast %c1_i32 : i32 to index
    %c0_38 = arith.constant 0 : index
    %c0_39 = arith.constant 0 : index
    %c0_40 = arith.constant 0 : index
    %61 = vector.load %arg2[%60, %c0_38, %c0_39, %c0_40] : memref<8x4x8x128xf32, #tpu.memory_space<vmem>>, vector<1x1x8x128xf32>
    %62 = vector.shape_cast %61 : vector<1x1x8x128xf32> to vector<8x128xf32>
    %c0_41 = arith.constant 0 : index
    %c0_42 = arith.constant 0 : index
    %c0_43 = arith.constant 0 : index
    %63 = vector.load %arg3[%c0_41, %c0_42, %c0_43] : memref<4x128x128xf32, #tpu.memory_space<vmem>>, vector<1x128x128xf32>
    %64 = vector.shape_cast %63 : vector<1x128x128xf32> to vector<128x128xf32>
    %cst_44 = arith.constant dense<0.000000e+00> : vector<8x128xf32>
    %65 = tpu.matmul %59, %64, %cst_44 {dimension_numbers = #tpu.dot_dimension_numbers<[1], [0], [0], [1], [0, 0, 1, 1], [], []>} : vector<8x128xf32>, vector<128x128xf32>, vector<8x128xf32> -> vector<8x128xf32>
    %66 = arith.addf %62, %65 : vector<8x128xf32>
    %cst_45 = arith.constant 5.000000e-01 : f32
    %67 = vector.broadcast %cst_45 : f32 to vector<8x128xf32>
    %68 = arith.mulf %67, %66 : vector<8x128xf32>
    %69 = math.tanh %68 : vector<8x128xf32>
    %cst_46 = arith.constant 1.000000e+00 : f32
    %70 = vector.broadcast %cst_46 : f32 to vector<8x128xf32>
    %71 = arith.addf %70, %69 : vector<8x128xf32>
    %cst_47 = arith.constant 5.000000e-01 : f32
    %72 = vector.broadcast %cst_47 : f32 to vector<8x128xf32>
    %73 = arith.mulf %72, %71 : vector<8x128xf32>
    %74 = arith.index_cast %c1_i32 : i32 to index
    %c1_48 = arith.constant 1 : index
    %c0_49 = arith.constant 0 : index
    %c0_50 = arith.constant 0 : index
    %75 = vector.load %arg2[%74, %c1_48, %c0_49, %c0_50] : memref<8x4x8x128xf32, #tpu.memory_space<vmem>>, vector<1x1x8x128xf32>
    %76 = vector.shape_cast %75 : vector<1x1x8x128xf32> to vector<8x128xf32>
    %c1_51 = arith.constant 1 : index
    %c0_52 = arith.constant 0 : index
    %c0_53 = arith.constant 0 : index
    %77 = vector.load %arg3[%c1_51, %c0_52, %c0_53] : memref<4x128x128xf32, #tpu.memory_space<vmem>>, vector<1x128x128xf32>
    %78 = vector.shape_cast %77 : vector<1x128x128xf32> to vector<128x128xf32>
    %cst_54 = arith.constant dense<0.000000e+00> : vector<8x128xf32>
    %79 = tpu.matmul %59, %78, %cst_54 {dimension_numbers = #tpu.dot_dimension_numbers<[1], [0], [0], [1], [0, 0, 1, 1], [], []>} : vector<8x128xf32>, vector<128x128xf32>, vector<8x128xf32> -> vector<8x128xf32>
    %80 = arith.addf %76, %79 : vector<8x128xf32>
    %cst_55 = arith.constant 5.000000e-01 : f32
    %81 = vector.broadcast %cst_55 : f32 to vector<8x128xf32>
    %82 = arith.mulf %81, %80 : vector<8x128xf32>
    %83 = math.tanh %82 : vector<8x128xf32>
    %cst_56 = arith.constant 1.000000e+00 : f32
    %84 = vector.broadcast %cst_56 : f32 to vector<8x128xf32>
    %85 = arith.addf %84, %83 : vector<8x128xf32>
    %cst_57 = arith.constant 5.000000e-01 : f32
    %86 = vector.broadcast %cst_57 : f32 to vector<8x128xf32>
    %87 = arith.mulf %86, %85 : vector<8x128xf32>
    %88 = arith.index_cast %c1_i32 : i32 to index
    %c2_58 = arith.constant 2 : index
    %c0_59 = arith.constant 0 : index
    %c0_60 = arith.constant 0 : index
    %89 = vector.load %arg2[%88, %c2_58, %c0_59, %c0_60] : memref<8x4x8x128xf32, #tpu.memory_space<vmem>>, vector<1x1x8x128xf32>
    %90 = vector.shape_cast %89 : vector<1x1x8x128xf32> to vector<8x128xf32>
    %c2_61 = arith.constant 2 : index
    %c0_62 = arith.constant 0 : index
    %c0_63 = arith.constant 0 : index
    %91 = vector.load %arg3[%c2_61, %c0_62, %c0_63] : memref<4x128x128xf32, #tpu.memory_space<vmem>>, vector<1x128x128xf32>
    %92 = vector.shape_cast %91 : vector<1x128x128xf32> to vector<128x128xf32>
    %cst_64 = arith.constant dense<0.000000e+00> : vector<8x128xf32>
    %93 = tpu.matmul %59, %92, %cst_64 {dimension_numbers = #tpu.dot_dimension_numbers<[1], [0], [0], [1], [0, 0, 1, 1], [], []>} : vector<8x128xf32>, vector<128x128xf32>, vector<8x128xf32> -> vector<8x128xf32>
    %94 = arith.addf %90, %93 : vector<8x128xf32>
    %95 = math.tanh %94 : vector<8x128xf32>
    %96 = arith.index_cast %c1_i32 : i32 to index
    %c3_65 = arith.constant 3 : index
    %c0_66 = arith.constant 0 : index
    %c0_67 = arith.constant 0 : index
    %97 = vector.load %arg2[%96, %c3_65, %c0_66, %c0_67] : memref<8x4x8x128xf32, #tpu.memory_space<vmem>>, vector<1x1x8x128xf32>
    %98 = vector.shape_cast %97 : vector<1x1x8x128xf32> to vector<8x128xf32>
    %c3_68 = arith.constant 3 : index
    %c0_69 = arith.constant 0 : index
    %c0_70 = arith.constant 0 : index
    %99 = vector.load %arg3[%c3_68, %c0_69, %c0_70] : memref<4x128x128xf32, #tpu.memory_space<vmem>>, vector<1x128x128xf32>
    %100 = vector.shape_cast %99 : vector<1x128x128xf32> to vector<128x128xf32>
    %cst_71 = arith.constant dense<0.000000e+00> : vector<8x128xf32>
    %101 = tpu.matmul %59, %100, %cst_71 {dimension_numbers = #tpu.dot_dimension_numbers<[1], [0], [0], [1], [0, 0, 1, 1], [], []>} : vector<8x128xf32>, vector<128x128xf32>, vector<8x128xf32> -> vector<8x128xf32>
    %102 = arith.addf %98, %101 : vector<8x128xf32>
    %cst_72 = arith.constant 5.000000e-01 : f32
    %103 = vector.broadcast %cst_72 : f32 to vector<8x128xf32>
    %104 = arith.mulf %103, %102 : vector<8x128xf32>
    %105 = math.tanh %104 : vector<8x128xf32>
    %cst_73 = arith.constant 1.000000e+00 : f32
    %106 = vector.broadcast %cst_73 : f32 to vector<8x128xf32>
    %107 = arith.addf %106, %105 : vector<8x128xf32>
    %cst_74 = arith.constant 5.000000e-01 : f32
    %108 = vector.broadcast %cst_74 : f32 to vector<8x128xf32>
    %109 = arith.mulf %108, %107 : vector<8x128xf32>
    %110 = arith.mulf %87, %57 : vector<8x128xf32>
    %111 = arith.mulf %73, %95 : vector<8x128xf32>
    %112 = arith.addf %110, %111 : vector<8x128xf32>
    %113 = math.tanh %112 : vector<8x128xf32>
    %114 = arith.mulf %109, %113 : vector<8x128xf32>
    %c2_i32 = arith.constant 2 : i32
    %115 = arith.index_cast %c2_i32 : i32 to index
    %c0_75 = arith.constant 0 : index
    %c0_76 = arith.constant 0 : index
    %c0_77 = arith.constant 0 : index
    %116 = vector.load %arg2[%115, %c0_75, %c0_76, %c0_77] : memref<8x4x8x128xf32, #tpu.memory_space<vmem>>, vector<1x1x8x128xf32>
    %117 = vector.shape_cast %116 : vector<1x1x8x128xf32> to vector<8x128xf32>
    %c0_78 = arith.constant 0 : index
    %c0_79 = arith.constant 0 : index
    %c0_80 = arith.constant 0 : index
    %118 = vector.load %arg3[%c0_78, %c0_79, %c0_80] : memref<4x128x128xf32, #tpu.memory_space<vmem>>, vector<1x128x128xf32>
    %119 = vector.shape_cast %118 : vector<1x128x128xf32> to vector<128x128xf32>
    %cst_81 = arith.constant dense<0.000000e+00> : vector<8x128xf32>
    %120 = tpu.matmul %114, %119, %cst_81 {dimension_numbers = #tpu.dot_dimension_numbers<[1], [0], [0], [1], [0, 0, 1, 1], [], []>} : vector<8x128xf32>, vector<128x128xf32>, vector<8x128xf32> -> vector<8x128xf32>
    %121 = arith.addf %117, %120 : vector<8x128xf32>
    %cst_82 = arith.constant 5.000000e-01 : f32
    %122 = vector.broadcast %cst_82 : f32 to vector<8x128xf32>
    %123 = arith.mulf %122, %121 : vector<8x128xf32>
    %124 = math.tanh %123 : vector<8x128xf32>
    %cst_83 = arith.constant 1.000000e+00 : f32
    %125 = vector.broadcast %cst_83 : f32 to vector<8x128xf32>
    %126 = arith.addf %125, %124 : vector<8x128xf32>
    %cst_84 = arith.constant 5.000000e-01 : f32
    %127 = vector.broadcast %cst_84 : f32 to vector<8x128xf32>
    %128 = arith.mulf %127, %126 : vector<8x128xf32>
    %129 = arith.index_cast %c2_i32 : i32 to index
    %c1_85 = arith.constant 1 : index
    %c0_86 = arith.constant 0 : index
    %c0_87 = arith.constant 0 : index
    %130 = vector.load %arg2[%129, %c1_85, %c0_86, %c0_87] : memref<8x4x8x128xf32, #tpu.memory_space<vmem>>, vector<1x1x8x128xf32>
    %131 = vector.shape_cast %130 : vector<1x1x8x128xf32> to vector<8x128xf32>
    %c1_88 = arith.constant 1 : index
    %c0_89 = arith.constant 0 : index
    %c0_90 = arith.constant 0 : index
    %132 = vector.load %arg3[%c1_88, %c0_89, %c0_90] : memref<4x128x128xf32, #tpu.memory_space<vmem>>, vector<1x128x128xf32>
    %133 = vector.shape_cast %132 : vector<1x128x128xf32> to vector<128x128xf32>
    %cst_91 = arith.constant dense<0.000000e+00> : vector<8x128xf32>
    %134 = tpu.matmul %114, %133, %cst_91 {dimension_numbers = #tpu.dot_dimension_numbers<[1], [0], [0], [1], [0, 0, 1, 1], [], []>} : vector<8x128xf32>, vector<128x128xf32>, vector<8x128xf32> -> vector<8x128xf32>
    %135 = arith.addf %131, %134 : vector<8x128xf32>
    %cst_92 = arith.constant 5.000000e-01 : f32
    %136 = vector.broadcast %cst_92 : f32 to vector<8x128xf32>
    %137 = arith.mulf %136, %135 : vector<8x128xf32>
    %138 = math.tanh %137 : vector<8x128xf32>
    %cst_93 = arith.constant 1.000000e+00 : f32
    %139 = vector.broadcast %cst_93 : f32 to vector<8x128xf32>
    %140 = arith.addf %139, %138 : vector<8x128xf32>
    %cst_94 = arith.constant 5.000000e-01 : f32
    %141 = vector.broadcast %cst_94 : f32 to vector<8x128xf32>
    %142 = arith.mulf %141, %140 : vector<8x128xf32>
    %143 = arith.index_cast %c2_i32 : i32 to index
    %c2_95 = arith.constant 2 : index
    %c0_96 = arith.constant 0 : index
    %c0_97 = arith.constant 0 : index
    %144 = vector.load %arg2[%143, %c2_95, %c0_96, %c0_97] : memref<8x4x8x128xf32, #tpu.memory_space<vmem>>, vector<1x1x8x128xf32>
    %145 = vector.shape_cast %144 : vector<1x1x8x128xf32> to vector<8x128xf32>
    %c2_98 = arith.constant 2 : index
    %c0_99 = arith.constant 0 : index
    %c0_100 = arith.constant 0 : index
    %146 = vector.load %arg3[%c2_98, %c0_99, %c0_100] : memref<4x128x128xf32, #tpu.memory_space<vmem>>, vector<1x128x128xf32>
    %147 = vector.shape_cast %146 : vector<1x128x128xf32> to vector<128x128xf32>
    %cst_101 = arith.constant dense<0.000000e+00> : vector<8x128xf32>
    %148 = tpu.matmul %114, %147, %cst_101 {dimension_numbers = #tpu.dot_dimension_numbers<[1], [0], [0], [1], [0, 0, 1, 1], [], []>} : vector<8x128xf32>, vector<128x128xf32>, vector<8x128xf32> -> vector<8x128xf32>
    %149 = arith.addf %145, %148 : vector<8x128xf32>
    %150 = math.tanh %149 : vector<8x128xf32>
    %151 = arith.index_cast %c2_i32 : i32 to index
    %c3_102 = arith.constant 3 : index
    %c0_103 = arith.constant 0 : index
    %c0_104 = arith.constant 0 : index
    %152 = vector.load %arg2[%151, %c3_102, %c0_103, %c0_104] : memref<8x4x8x128xf32, #tpu.memory_space<vmem>>, vector<1x1x8x128xf32>
    %153 = vector.shape_cast %152 : vector<1x1x8x128xf32> to vector<8x128xf32>
    %c3_105 = arith.constant 3 : index
    %c0_106 = arith.constant 0 : index
    %c0_107 = arith.constant 0 : index
    %154 = vector.load %arg3[%c3_105, %c0_106, %c0_107] : memref<4x128x128xf32, #tpu.memory_space<vmem>>, vector<1x128x128xf32>
    %155 = vector.shape_cast %154 : vector<1x128x128xf32> to vector<128x128xf32>
    %cst_108 = arith.constant dense<0.000000e+00> : vector<8x128xf32>
    %156 = tpu.matmul %114, %155, %cst_108 {dimension_numbers = #tpu.dot_dimension_numbers<[1], [0], [0], [1], [0, 0, 1, 1], [], []>} : vector<8x128xf32>, vector<128x128xf32>, vector<8x128xf32> -> vector<8x128xf32>
    %157 = arith.addf %153, %156 : vector<8x128xf32>
    %cst_109 = arith.constant 5.000000e-01 : f32
    %158 = vector.broadcast %cst_109 : f32 to vector<8x128xf32>
    %159 = arith.mulf %158, %157 : vector<8x128xf32>
    %160 = math.tanh %159 : vector<8x128xf32>
    %cst_110 = arith.constant 1.000000e+00 : f32
    %161 = vector.broadcast %cst_110 : f32 to vector<8x128xf32>
    %162 = arith.addf %161, %160 : vector<8x128xf32>
    %cst_111 = arith.constant 5.000000e-01 : f32
    %163 = vector.broadcast %cst_111 : f32 to vector<8x128xf32>
    %164 = arith.mulf %163, %162 : vector<8x128xf32>
    %165 = arith.mulf %142, %112 : vector<8x128xf32>
    %166 = arith.mulf %128, %150 : vector<8x128xf32>
    %167 = arith.addf %165, %166 : vector<8x128xf32>
    %168 = math.tanh %167 : vector<8x128xf32>
    %169 = arith.mulf %164, %168 : vector<8x128xf32>
    %c3_i32 = arith.constant 3 : i32
    %170 = arith.index_cast %c3_i32 : i32 to index
    %c0_112 = arith.constant 0 : index
    %c0_113 = arith.constant 0 : index
    %c0_114 = arith.constant 0 : index
    %171 = vector.load %arg2[%170, %c0_112, %c0_113, %c0_114] : memref<8x4x8x128xf32, #tpu.memory_space<vmem>>, vector<1x1x8x128xf32>
    %172 = vector.shape_cast %171 : vector<1x1x8x128xf32> to vector<8x128xf32>
    %c0_115 = arith.constant 0 : index
    %c0_116 = arith.constant 0 : index
    %c0_117 = arith.constant 0 : index
    %173 = vector.load %arg3[%c0_115, %c0_116, %c0_117] : memref<4x128x128xf32, #tpu.memory_space<vmem>>, vector<1x128x128xf32>
    %174 = vector.shape_cast %173 : vector<1x128x128xf32> to vector<128x128xf32>
    %cst_118 = arith.constant dense<0.000000e+00> : vector<8x128xf32>
    %175 = tpu.matmul %169, %174, %cst_118 {dimension_numbers = #tpu.dot_dimension_numbers<[1], [0], [0], [1], [0, 0, 1, 1], [], []>} : vector<8x128xf32>, vector<128x128xf32>, vector<8x128xf32> -> vector<8x128xf32>
    %176 = arith.addf %172, %175 : vector<8x128xf32>
    %cst_119 = arith.constant 5.000000e-01 : f32
    %177 = vector.broadcast %cst_119 : f32 to vector<8x128xf32>
    %178 = arith.mulf %177, %176 : vector<8x128xf32>
    %179 = math.tanh %178 : vector<8x128xf32>
    %cst_120 = arith.constant 1.000000e+00 : f32
    %180 = vector.broadcast %cst_120 : f32 to vector<8x128xf32>
    %181 = arith.addf %180, %179 : vector<8x128xf32>
    %cst_121 = arith.constant 5.000000e-01 : f32
    %182 = vector.broadcast %cst_121 : f32 to vector<8x128xf32>
    %183 = arith.mulf %182, %181 : vector<8x128xf32>
    %184 = arith.index_cast %c3_i32 : i32 to index
    %c1_122 = arith.constant 1 : index
    %c0_123 = arith.constant 0 : index
    %c0_124 = arith.constant 0 : index
    %185 = vector.load %arg2[%184, %c1_122, %c0_123, %c0_124] : memref<8x4x8x128xf32, #tpu.memory_space<vmem>>, vector<1x1x8x128xf32>
    %186 = vector.shape_cast %185 : vector<1x1x8x128xf32> to vector<8x128xf32>
    %c1_125 = arith.constant 1 : index
    %c0_126 = arith.constant 0 : index
    %c0_127 = arith.constant 0 : index
    %187 = vector.load %arg3[%c1_125, %c0_126, %c0_127] : memref<4x128x128xf32, #tpu.memory_space<vmem>>, vector<1x128x128xf32>
    %188 = vector.shape_cast %187 : vector<1x128x128xf32> to vector<128x128xf32>
    %cst_128 = arith.constant dense<0.000000e+00> : vector<8x128xf32>
    %189 = tpu.matmul %169, %188, %cst_128 {dimension_numbers = #tpu.dot_dimension_numbers<[1], [0], [0], [1], [0, 0, 1, 1], [], []>} : vector<8x128xf32>, vector<128x128xf32>, vector<8x128xf32> -> vector<8x128xf32>
    %190 = arith.addf %186, %189 : vector<8x128xf32>
    %cst_129 = arith.constant 5.000000e-01 : f32
    %191 = vector.broadcast %cst_129 : f32 to vector<8x128xf32>
    %192 = arith.mulf %191, %190 : vector<8x128xf32>
    %193 = math.tanh %192 : vector<8x128xf32>
    %cst_130 = arith.constant 1.000000e+00 : f32
    %194 = vector.broadcast %cst_130 : f32 to vector<8x128xf32>
    %195 = arith.addf %194, %193 : vector<8x128xf32>
    %cst_131 = arith.constant 5.000000e-01 : f32
    %196 = vector.broadcast %cst_131 : f32 to vector<8x128xf32>
    %197 = arith.mulf %196, %195 : vector<8x128xf32>
    %198 = arith.index_cast %c3_i32 : i32 to index
    %c2_132 = arith.constant 2 : index
    %c0_133 = arith.constant 0 : index
    %c0_134 = arith.constant 0 : index
    %199 = vector.load %arg2[%198, %c2_132, %c0_133, %c0_134] : memref<8x4x8x128xf32, #tpu.memory_space<vmem>>, vector<1x1x8x128xf32>
    %200 = vector.shape_cast %199 : vector<1x1x8x128xf32> to vector<8x128xf32>
    %c2_135 = arith.constant 2 : index
    %c0_136 = arith.constant 0 : index
    %c0_137 = arith.constant 0 : index
    %201 = vector.load %arg3[%c2_135, %c0_136, %c0_137] : memref<4x128x128xf32, #tpu.memory_space<vmem>>, vector<1x128x128xf32>
    %202 = vector.shape_cast %201 : vector<1x128x128xf32> to vector<128x128xf32>
    %cst_138 = arith.constant dense<0.000000e+00> : vector<8x128xf32>
    %203 = tpu.matmul %169, %202, %cst_138 {dimension_numbers = #tpu.dot_dimension_numbers<[1], [0], [0], [1], [0, 0, 1, 1], [], []>} : vector<8x128xf32>, vector<128x128xf32>, vector<8x128xf32> -> vector<8x128xf32>
    %204 = arith.addf %200, %203 : vector<8x128xf32>
    %205 = math.tanh %204 : vector<8x128xf32>
    %206 = arith.index_cast %c3_i32 : i32 to index
    %c3_139 = arith.constant 3 : index
    %c0_140 = arith.constant 0 : index
    %c0_141 = arith.constant 0 : index
    %207 = vector.load %arg2[%206, %c3_139, %c0_140, %c0_141] : memref<8x4x8x128xf32, #tpu.memory_space<vmem>>, vector<1x1x8x128xf32>
    %208 = vector.shape_cast %207 : vector<1x1x8x128xf32> to vector<8x128xf32>
    %c3_142 = arith.constant 3 : index
    %c0_143 = arith.constant 0 : index
    %c0_144 = arith.constant 0 : index
    %209 = vector.load %arg3[%c3_142, %c0_143, %c0_144] : memref<4x128x128xf32, #tpu.memory_space<vmem>>, vector<1x128x128xf32>
    %210 = vector.shape_cast %209 : vector<1x128x128xf32> to vector<128x128xf32>
    %cst_145 = arith.constant dense<0.000000e+00> : vector<8x128xf32>
    %211 = tpu.matmul %169, %210, %cst_145 {dimension_numbers = #tpu.dot_dimension_numbers<[1], [0], [0], [1], [0, 0, 1, 1], [], []>} : vector<8x128xf32>, vector<128x128xf32>, vector<8x128xf32> -> vector<8x128xf32>
    %212 = arith.addf %208, %211 : vector<8x128xf32>
    %cst_146 = arith.constant 5.000000e-01 : f32
    %213 = vector.broadcast %cst_146 : f32 to vector<8x128xf32>
    %214 = arith.mulf %213, %212 : vector<8x128xf32>
    %215 = math.tanh %214 : vector<8x128xf32>
    %cst_147 = arith.constant 1.000000e+00 : f32
    %216 = vector.broadcast %cst_147 : f32 to vector<8x128xf32>
    %217 = arith.addf %216, %215 : vector<8x128xf32>
    %cst_148 = arith.constant 5.000000e-01 : f32
    %218 = vector.broadcast %cst_148 : f32 to vector<8x128xf32>
    %219 = arith.mulf %218, %217 : vector<8x128xf32>
    %220 = arith.mulf %197, %167 : vector<8x128xf32>
    %221 = arith.mulf %183, %205 : vector<8x128xf32>
    %222 = arith.addf %220, %221 : vector<8x128xf32>
    %223 = math.tanh %222 : vector<8x128xf32>
    %224 = arith.mulf %219, %223 : vector<8x128xf32>
    %c4_i32 = arith.constant 4 : i32
    %225 = arith.index_cast %c4_i32 : i32 to index
    %c0_149 = arith.constant 0 : index
    %c0_150 = arith.constant 0 : index
    %c0_151 = arith.constant 0 : index
    %226 = vector.load %arg2[%225, %c0_149, %c0_150, %c0_151] : memref<8x4x8x128xf32, #tpu.memory_space<vmem>>, vector<1x1x8x128xf32>
    %227 = vector.shape_cast %226 : vector<1x1x8x128xf32> to vector<8x128xf32>
    %c0_152 = arith.constant 0 : index
    %c0_153 = arith.constant 0 : index
    %c0_154 = arith.constant 0 : index
    %228 = vector.load %arg3[%c0_152, %c0_153, %c0_154] : memref<4x128x128xf32, #tpu.memory_space<vmem>>, vector<1x128x128xf32>
    %229 = vector.shape_cast %228 : vector<1x128x128xf32> to vector<128x128xf32>
    %cst_155 = arith.constant dense<0.000000e+00> : vector<8x128xf32>
    %230 = tpu.matmul %224, %229, %cst_155 {dimension_numbers = #tpu.dot_dimension_numbers<[1], [0], [0], [1], [0, 0, 1, 1], [], []>} : vector<8x128xf32>, vector<128x128xf32>, vector<8x128xf32> -> vector<8x128xf32>
    %231 = arith.addf %227, %230 : vector<8x128xf32>
    %cst_156 = arith.constant 5.000000e-01 : f32
    %232 = vector.broadcast %cst_156 : f32 to vector<8x128xf32>
    %233 = arith.mulf %232, %231 : vector<8x128xf32>
    %234 = math.tanh %233 : vector<8x128xf32>
    %cst_157 = arith.constant 1.000000e+00 : f32
    %235 = vector.broadcast %cst_157 : f32 to vector<8x128xf32>
    %236 = arith.addf %235, %234 : vector<8x128xf32>
    %cst_158 = arith.constant 5.000000e-01 : f32
    %237 = vector.broadcast %cst_158 : f32 to vector<8x128xf32>
    %238 = arith.mulf %237, %236 : vector<8x128xf32>
    %239 = arith.index_cast %c4_i32 : i32 to index
    %c1_159 = arith.constant 1 : index
    %c0_160 = arith.constant 0 : index
    %c0_161 = arith.constant 0 : index
    %240 = vector.load %arg2[%239, %c1_159, %c0_160, %c0_161] : memref<8x4x8x128xf32, #tpu.memory_space<vmem>>, vector<1x1x8x128xf32>
    %241 = vector.shape_cast %240 : vector<1x1x8x128xf32> to vector<8x128xf32>
    %c1_162 = arith.constant 1 : index
    %c0_163 = arith.constant 0 : index
    %c0_164 = arith.constant 0 : index
    %242 = vector.load %arg3[%c1_162, %c0_163, %c0_164] : memref<4x128x128xf32, #tpu.memory_space<vmem>>, vector<1x128x128xf32>
    %243 = vector.shape_cast %242 : vector<1x128x128xf32> to vector<128x128xf32>
    %cst_165 = arith.constant dense<0.000000e+00> : vector<8x128xf32>
    %244 = tpu.matmul %224, %243, %cst_165 {dimension_numbers = #tpu.dot_dimension_numbers<[1], [0], [0], [1], [0, 0, 1, 1], [], []>} : vector<8x128xf32>, vector<128x128xf32>, vector<8x128xf32> -> vector<8x128xf32>
    %245 = arith.addf %241, %244 : vector<8x128xf32>
    %cst_166 = arith.constant 5.000000e-01 : f32
    %246 = vector.broadcast %cst_166 : f32 to vector<8x128xf32>
    %247 = arith.mulf %246, %245 : vector<8x128xf32>
    %248 = math.tanh %247 : vector<8x128xf32>
    %cst_167 = arith.constant 1.000000e+00 : f32
    %249 = vector.broadcast %cst_167 : f32 to vector<8x128xf32>
    %250 = arith.addf %249, %248 : vector<8x128xf32>
    %cst_168 = arith.constant 5.000000e-01 : f32
    %251 = vector.broadcast %cst_168 : f32 to vector<8x128xf32>
    %252 = arith.mulf %251, %250 : vector<8x128xf32>
    %253 = arith.index_cast %c4_i32 : i32 to index
    %c2_169 = arith.constant 2 : index
    %c0_170 = arith.constant 0 : index
    %c0_171 = arith.constant 0 : index
    %254 = vector.load %arg2[%253, %c2_169, %c0_170, %c0_171] : memref<8x4x8x128xf32, #tpu.memory_space<vmem>>, vector<1x1x8x128xf32>
    %255 = vector.shape_cast %254 : vector<1x1x8x128xf32> to vector<8x128xf32>
    %c2_172 = arith.constant 2 : index
    %c0_173 = arith.constant 0 : index
    %c0_174 = arith.constant 0 : index
    %256 = vector.load %arg3[%c2_172, %c0_173, %c0_174] : memref<4x128x128xf32, #tpu.memory_space<vmem>>, vector<1x128x128xf32>
    %257 = vector.shape_cast %256 : vector<1x128x128xf32> to vector<128x128xf32>
    %cst_175 = arith.constant dense<0.000000e+00> : vector<8x128xf32>
    %258 = tpu.matmul %224, %257, %cst_175 {dimension_numbers = #tpu.dot_dimension_numbers<[1], [0], [0], [1], [0, 0, 1, 1], [], []>} : vector<8x128xf32>, vector<128x128xf32>, vector<8x128xf32> -> vector<8x128xf32>
    %259 = arith.addf %255, %258 : vector<8x128xf32>
    %260 = math.tanh %259 : vector<8x128xf32>
    %261 = arith.index_cast %c4_i32 : i32 to index
    %c3_176 = arith.constant 3 : index
    %c0_177 = arith.constant 0 : index
    %c0_178 = arith.constant 0 : index
    %262 = vector.load %arg2[%261, %c3_176, %c0_177, %c0_178] : memref<8x4x8x128xf32, #tpu.memory_space<vmem>>, vector<1x1x8x128xf32>
    %263 = vector.shape_cast %262 : vector<1x1x8x128xf32> to vector<8x128xf32>
    %c3_179 = arith.constant 3 : index
    %c0_180 = arith.constant 0 : index
    %c0_181 = arith.constant 0 : index
    %264 = vector.load %arg3[%c3_179, %c0_180, %c0_181] : memref<4x128x128xf32, #tpu.memory_space<vmem>>, vector<1x128x128xf32>
    %265 = vector.shape_cast %264 : vector<1x128x128xf32> to vector<128x128xf32>
    %cst_182 = arith.constant dense<0.000000e+00> : vector<8x128xf32>
    %266 = tpu.matmul %224, %265, %cst_182 {dimension_numbers = #tpu.dot_dimension_numbers<[1], [0], [0], [1], [0, 0, 1, 1], [], []>} : vector<8x128xf32>, vector<128x128xf32>, vector<8x128xf32> -> vector<8x128xf32>
    %267 = arith.addf %263, %266 : vector<8x128xf32>
    %cst_183 = arith.constant 5.000000e-01 : f32
    %268 = vector.broadcast %cst_183 : f32 to vector<8x128xf32>
    %269 = arith.mulf %268, %267 : vector<8x128xf32>
    %270 = math.tanh %269 : vector<8x128xf32>
    %cst_184 = arith.constant 1.000000e+00 : f32
    %271 = vector.broadcast %cst_184 : f32 to vector<8x128xf32>
    %272 = arith.addf %271, %270 : vector<8x128xf32>
    %cst_185 = arith.constant 5.000000e-01 : f32
    %273 = vector.broadcast %cst_185 : f32 to vector<8x128xf32>
    %274 = arith.mulf %273, %272 : vector<8x128xf32>
    %275 = arith.mulf %252, %222 : vector<8x128xf32>
    %276 = arith.mulf %238, %260 : vector<8x128xf32>
    %277 = arith.addf %275, %276 : vector<8x128xf32>
    %278 = math.tanh %277 : vector<8x128xf32>
    %279 = arith.mulf %274, %278 : vector<8x128xf32>
    %c5_i32 = arith.constant 5 : i32
    %280 = arith.index_cast %c5_i32 : i32 to index
    %c0_186 = arith.constant 0 : index
    %c0_187 = arith.constant 0 : index
    %c0_188 = arith.constant 0 : index
    %281 = vector.load %arg2[%280, %c0_186, %c0_187, %c0_188] : memref<8x4x8x128xf32, #tpu.memory_space<vmem>>, vector<1x1x8x128xf32>
    %282 = vector.shape_cast %281 : vector<1x1x8x128xf32> to vector<8x128xf32>
    %c0_189 = arith.constant 0 : index
    %c0_190 = arith.constant 0 : index
    %c0_191 = arith.constant 0 : index
    %283 = vector.load %arg3[%c0_189, %c0_190, %c0_191] : memref<4x128x128xf32, #tpu.memory_space<vmem>>, vector<1x128x128xf32>
    %284 = vector.shape_cast %283 : vector<1x128x128xf32> to vector<128x128xf32>
    %cst_192 = arith.constant dense<0.000000e+00> : vector<8x128xf32>
    %285 = tpu.matmul %279, %284, %cst_192 {dimension_numbers = #tpu.dot_dimension_numbers<[1], [0], [0], [1], [0, 0, 1, 1], [], []>} : vector<8x128xf32>, vector<128x128xf32>, vector<8x128xf32> -> vector<8x128xf32>
    %286 = arith.addf %282, %285 : vector<8x128xf32>
    %cst_193 = arith.constant 5.000000e-01 : f32
    %287 = vector.broadcast %cst_193 : f32 to vector<8x128xf32>
    %288 = arith.mulf %287, %286 : vector<8x128xf32>
    %289 = math.tanh %288 : vector<8x128xf32>
    %cst_194 = arith.constant 1.000000e+00 : f32
    %290 = vector.broadcast %cst_194 : f32 to vector<8x128xf32>
    %291 = arith.addf %290, %289 : vector<8x128xf32>
    %cst_195 = arith.constant 5.000000e-01 : f32
    %292 = vector.broadcast %cst_195 : f32 to vector<8x128xf32>
    %293 = arith.mulf %292, %291 : vector<8x128xf32>
    %294 = arith.index_cast %c5_i32 : i32 to index
    %c1_196 = arith.constant 1 : index
    %c0_197 = arith.constant 0 : index
    %c0_198 = arith.constant 0 : index
    %295 = vector.load %arg2[%294, %c1_196, %c0_197, %c0_198] : memref<8x4x8x128xf32, #tpu.memory_space<vmem>>, vector<1x1x8x128xf32>
    %296 = vector.shape_cast %295 : vector<1x1x8x128xf32> to vector<8x128xf32>
    %c1_199 = arith.constant 1 : index
    %c0_200 = arith.constant 0 : index
    %c0_201 = arith.constant 0 : index
    %297 = vector.load %arg3[%c1_199, %c0_200, %c0_201] : memref<4x128x128xf32, #tpu.memory_space<vmem>>, vector<1x128x128xf32>
    %298 = vector.shape_cast %297 : vector<1x128x128xf32> to vector<128x128xf32>
    %cst_202 = arith.constant dense<0.000000e+00> : vector<8x128xf32>
    %299 = tpu.matmul %279, %298, %cst_202 {dimension_numbers = #tpu.dot_dimension_numbers<[1], [0], [0], [1], [0, 0, 1, 1], [], []>} : vector<8x128xf32>, vector<128x128xf32>, vector<8x128xf32> -> vector<8x128xf32>
    %300 = arith.addf %296, %299 : vector<8x128xf32>
    %cst_203 = arith.constant 5.000000e-01 : f32
    %301 = vector.broadcast %cst_203 : f32 to vector<8x128xf32>
    %302 = arith.mulf %301, %300 : vector<8x128xf32>
    %303 = math.tanh %302 : vector<8x128xf32>
    %cst_204 = arith.constant 1.000000e+00 : f32
    %304 = vector.broadcast %cst_204 : f32 to vector<8x128xf32>
    %305 = arith.addf %304, %303 : vector<8x128xf32>
    %cst_205 = arith.constant 5.000000e-01 : f32
    %306 = vector.broadcast %cst_205 : f32 to vector<8x128xf32>
    %307 = arith.mulf %306, %305 : vector<8x128xf32>
    %308 = arith.index_cast %c5_i32 : i32 to index
    %c2_206 = arith.constant 2 : index
    %c0_207 = arith.constant 0 : index
    %c0_208 = arith.constant 0 : index
    %309 = vector.load %arg2[%308, %c2_206, %c0_207, %c0_208] : memref<8x4x8x128xf32, #tpu.memory_space<vmem>>, vector<1x1x8x128xf32>
    %310 = vector.shape_cast %309 : vector<1x1x8x128xf32> to vector<8x128xf32>
    %c2_209 = arith.constant 2 : index
    %c0_210 = arith.constant 0 : index
    %c0_211 = arith.constant 0 : index
    %311 = vector.load %arg3[%c2_209, %c0_210, %c0_211] : memref<4x128x128xf32, #tpu.memory_space<vmem>>, vector<1x128x128xf32>
    %312 = vector.shape_cast %311 : vector<1x128x128xf32> to vector<128x128xf32>
    %cst_212 = arith.constant dense<0.000000e+00> : vector<8x128xf32>
    %313 = tpu.matmul %279, %312, %cst_212 {dimension_numbers = #tpu.dot_dimension_numbers<[1], [0], [0], [1], [0, 0, 1, 1], [], []>} : vector<8x128xf32>, vector<128x128xf32>, vector<8x128xf32> -> vector<8x128xf32>
    %314 = arith.addf %310, %313 : vector<8x128xf32>
    %315 = math.tanh %314 : vector<8x128xf32>
    %316 = arith.index_cast %c5_i32 : i32 to index
    %c3_213 = arith.constant 3 : index
    %c0_214 = arith.constant 0 : index
    %c0_215 = arith.constant 0 : index
    %317 = vector.load %arg2[%316, %c3_213, %c0_214, %c0_215] : memref<8x4x8x128xf32, #tpu.memory_space<vmem>>, vector<1x1x8x128xf32>
    %318 = vector.shape_cast %317 : vector<1x1x8x128xf32> to vector<8x128xf32>
    %c3_216 = arith.constant 3 : index
    %c0_217 = arith.constant 0 : index
    %c0_218 = arith.constant 0 : index
    %319 = vector.load %arg3[%c3_216, %c0_217, %c0_218] : memref<4x128x128xf32, #tpu.memory_space<vmem>>, vector<1x128x128xf32>
    %320 = vector.shape_cast %319 : vector<1x128x128xf32> to vector<128x128xf32>
    %cst_219 = arith.constant dense<0.000000e+00> : vector<8x128xf32>
    %321 = tpu.matmul %279, %320, %cst_219 {dimension_numbers = #tpu.dot_dimension_numbers<[1], [0], [0], [1], [0, 0, 1, 1], [], []>} : vector<8x128xf32>, vector<128x128xf32>, vector<8x128xf32> -> vector<8x128xf32>
    %322 = arith.addf %318, %321 : vector<8x128xf32>
    %cst_220 = arith.constant 5.000000e-01 : f32
    %323 = vector.broadcast %cst_220 : f32 to vector<8x128xf32>
    %324 = arith.mulf %323, %322 : vector<8x128xf32>
    %325 = math.tanh %324 : vector<8x128xf32>
    %cst_221 = arith.constant 1.000000e+00 : f32
    %326 = vector.broadcast %cst_221 : f32 to vector<8x128xf32>
    %327 = arith.addf %326, %325 : vector<8x128xf32>
    %cst_222 = arith.constant 5.000000e-01 : f32
    %328 = vector.broadcast %cst_222 : f32 to vector<8x128xf32>
    %329 = arith.mulf %328, %327 : vector<8x128xf32>
    %330 = arith.mulf %307, %277 : vector<8x128xf32>
    %331 = arith.mulf %293, %315 : vector<8x128xf32>
    %332 = arith.addf %330, %331 : vector<8x128xf32>
    %333 = math.tanh %332 : vector<8x128xf32>
    %334 = arith.mulf %329, %333 : vector<8x128xf32>
    %c6_i32 = arith.constant 6 : i32
    %335 = arith.index_cast %c6_i32 : i32 to index
    %c0_223 = arith.constant 0 : index
    %c0_224 = arith.constant 0 : index
    %c0_225 = arith.constant 0 : index
    %336 = vector.load %arg2[%335, %c0_223, %c0_224, %c0_225] : memref<8x4x8x128xf32, #tpu.memory_space<vmem>>, vector<1x1x8x128xf32>
    %337 = vector.shape_cast %336 : vector<1x1x8x128xf32> to vector<8x128xf32>
    %c0_226 = arith.constant 0 : index
    %c0_227 = arith.constant 0 : index
    %c0_228 = arith.constant 0 : index
    %338 = vector.load %arg3[%c0_226, %c0_227, %c0_228] : memref<4x128x128xf32, #tpu.memory_space<vmem>>, vector<1x128x128xf32>
    %339 = vector.shape_cast %338 : vector<1x128x128xf32> to vector<128x128xf32>
    %cst_229 = arith.constant dense<0.000000e+00> : vector<8x128xf32>
    %340 = tpu.matmul %334, %339, %cst_229 {dimension_numbers = #tpu.dot_dimension_numbers<[1], [0], [0], [1], [0, 0, 1, 1], [], []>} : vector<8x128xf32>, vector<128x128xf32>, vector<8x128xf32> -> vector<8x128xf32>
    %341 = arith.addf %337, %340 : vector<8x128xf32>
    %cst_230 = arith.constant 5.000000e-01 : f32
    %342 = vector.broadcast %cst_230 : f32 to vector<8x128xf32>
    %343 = arith.mulf %342, %341 : vector<8x128xf32>
    %344 = math.tanh %343 : vector<8x128xf32>
    %cst_231 = arith.constant 1.000000e+00 : f32
    %345 = vector.broadcast %cst_231 : f32 to vector<8x128xf32>
    %346 = arith.addf %345, %344 : vector<8x128xf32>
    %cst_232 = arith.constant 5.000000e-01 : f32
    %347 = vector.broadcast %cst_232 : f32 to vector<8x128xf32>
    %348 = arith.mulf %347, %346 : vector<8x128xf32>
    %349 = arith.index_cast %c6_i32 : i32 to index
    %c1_233 = arith.constant 1 : index
    %c0_234 = arith.constant 0 : index
    %c0_235 = arith.constant 0 : index
    %350 = vector.load %arg2[%349, %c1_233, %c0_234, %c0_235] : memref<8x4x8x128xf32, #tpu.memory_space<vmem>>, vector<1x1x8x128xf32>
    %351 = vector.shape_cast %350 : vector<1x1x8x128xf32> to vector<8x128xf32>
    %c1_236 = arith.constant 1 : index
    %c0_237 = arith.constant 0 : index
    %c0_238 = arith.constant 0 : index
    %352 = vector.load %arg3[%c1_236, %c0_237, %c0_238] : memref<4x128x128xf32, #tpu.memory_space<vmem>>, vector<1x128x128xf32>
    %353 = vector.shape_cast %352 : vector<1x128x128xf32> to vector<128x128xf32>
    %cst_239 = arith.constant dense<0.000000e+00> : vector<8x128xf32>
    %354 = tpu.matmul %334, %353, %cst_239 {dimension_numbers = #tpu.dot_dimension_numbers<[1], [0], [0], [1], [0, 0, 1, 1], [], []>} : vector<8x128xf32>, vector<128x128xf32>, vector<8x128xf32> -> vector<8x128xf32>
    %355 = arith.addf %351, %354 : vector<8x128xf32>
    %cst_240 = arith.constant 5.000000e-01 : f32
    %356 = vector.broadcast %cst_240 : f32 to vector<8x128xf32>
    %357 = arith.mulf %356, %355 : vector<8x128xf32>
    %358 = math.tanh %357 : vector<8x128xf32>
    %cst_241 = arith.constant 1.000000e+00 : f32
    %359 = vector.broadcast %cst_241 : f32 to vector<8x128xf32>
    %360 = arith.addf %359, %358 : vector<8x128xf32>
    %cst_242 = arith.constant 5.000000e-01 : f32
    %361 = vector.broadcast %cst_242 : f32 to vector<8x128xf32>
    %362 = arith.mulf %361, %360 : vector<8x128xf32>
    %363 = arith.index_cast %c6_i32 : i32 to index
    %c2_243 = arith.constant 2 : index
    %c0_244 = arith.constant 0 : index
    %c0_245 = arith.constant 0 : index
    %364 = vector.load %arg2[%363, %c2_243, %c0_244, %c0_245] : memref<8x4x8x128xf32, #tpu.memory_space<vmem>>, vector<1x1x8x128xf32>
    %365 = vector.shape_cast %364 : vector<1x1x8x128xf32> to vector<8x128xf32>
    %c2_246 = arith.constant 2 : index
    %c0_247 = arith.constant 0 : index
    %c0_248 = arith.constant 0 : index
    %366 = vector.load %arg3[%c2_246, %c0_247, %c0_248] : memref<4x128x128xf32, #tpu.memory_space<vmem>>, vector<1x128x128xf32>
    %367 = vector.shape_cast %366 : vector<1x128x128xf32> to vector<128x128xf32>
    %cst_249 = arith.constant dense<0.000000e+00> : vector<8x128xf32>
    %368 = tpu.matmul %334, %367, %cst_249 {dimension_numbers = #tpu.dot_dimension_numbers<[1], [0], [0], [1], [0, 0, 1, 1], [], []>} : vector<8x128xf32>, vector<128x128xf32>, vector<8x128xf32> -> vector<8x128xf32>
    %369 = arith.addf %365, %368 : vector<8x128xf32>
    %370 = math.tanh %369 : vector<8x128xf32>
    %371 = arith.index_cast %c6_i32 : i32 to index
    %c3_250 = arith.constant 3 : index
    %c0_251 = arith.constant 0 : index
    %c0_252 = arith.constant 0 : index
    %372 = vector.load %arg2[%371, %c3_250, %c0_251, %c0_252] : memref<8x4x8x128xf32, #tpu.memory_space<vmem>>, vector<1x1x8x128xf32>
    %373 = vector.shape_cast %372 : vector<1x1x8x128xf32> to vector<8x128xf32>
    %c3_253 = arith.constant 3 : index
    %c0_254 = arith.constant 0 : index
    %c0_255 = arith.constant 0 : index
    %374 = vector.load %arg3[%c3_253, %c0_254, %c0_255] : memref<4x128x128xf32, #tpu.memory_space<vmem>>, vector<1x128x128xf32>
    %375 = vector.shape_cast %374 : vector<1x128x128xf32> to vector<128x128xf32>
    %cst_256 = arith.constant dense<0.000000e+00> : vector<8x128xf32>
    %376 = tpu.matmul %334, %375, %cst_256 {dimension_numbers = #tpu.dot_dimension_numbers<[1], [0], [0], [1], [0, 0, 1, 1], [], []>} : vector<8x128xf32>, vector<128x128xf32>, vector<8x128xf32> -> vector<8x128xf32>
    %377 = arith.addf %373, %376 : vector<8x128xf32>
    %cst_257 = arith.constant 5.000000e-01 : f32
    %378 = vector.broadcast %cst_257 : f32 to vector<8x128xf32>
    %379 = arith.mulf %378, %377 : vector<8x128xf32>
    %380 = math.tanh %379 : vector<8x128xf32>
    %cst_258 = arith.constant 1.000000e+00 : f32
    %381 = vector.broadcast %cst_258 : f32 to vector<8x128xf32>
    %382 = arith.addf %381, %380 : vector<8x128xf32>
    %cst_259 = arith.constant 5.000000e-01 : f32
    %383 = vector.broadcast %cst_259 : f32 to vector<8x128xf32>
    %384 = arith.mulf %383, %382 : vector<8x128xf32>
    %385 = arith.mulf %362, %332 : vector<8x128xf32>
    %386 = arith.mulf %348, %370 : vector<8x128xf32>
    %387 = arith.addf %385, %386 : vector<8x128xf32>
    %388 = math.tanh %387 : vector<8x128xf32>
    %389 = arith.mulf %384, %388 : vector<8x128xf32>
    %c7_i32 = arith.constant 7 : i32
    %390 = arith.index_cast %c7_i32 : i32 to index
    %c0_260 = arith.constant 0 : index
    %c0_261 = arith.constant 0 : index
    %c0_262 = arith.constant 0 : index
    %391 = vector.load %arg2[%390, %c0_260, %c0_261, %c0_262] : memref<8x4x8x128xf32, #tpu.memory_space<vmem>>, vector<1x1x8x128xf32>
    %392 = vector.shape_cast %391 : vector<1x1x8x128xf32> to vector<8x128xf32>
    %c0_263 = arith.constant 0 : index
    %c0_264 = arith.constant 0 : index
    %c0_265 = arith.constant 0 : index
    %393 = vector.load %arg3[%c0_263, %c0_264, %c0_265] : memref<4x128x128xf32, #tpu.memory_space<vmem>>, vector<1x128x128xf32>
    %394 = vector.shape_cast %393 : vector<1x128x128xf32> to vector<128x128xf32>
    %cst_266 = arith.constant dense<0.000000e+00> : vector<8x128xf32>
    %395 = tpu.matmul %389, %394, %cst_266 {dimension_numbers = #tpu.dot_dimension_numbers<[1], [0], [0], [1], [0, 0, 1, 1], [], []>} : vector<8x128xf32>, vector<128x128xf32>, vector<8x128xf32> -> vector<8x128xf32>
    %396 = arith.addf %392, %395 : vector<8x128xf32>
    %cst_267 = arith.constant 5.000000e-01 : f32
    %397 = vector.broadcast %cst_267 : f32 to vector<8x128xf32>
    %398 = arith.mulf %397, %396 : vector<8x128xf32>
    %399 = math.tanh %398 : vector<8x128xf32>
    %cst_268 = arith.constant 1.000000e+00 : f32
    %400 = vector.broadcast %cst_268 : f32 to vector<8x128xf32>
    %401 = arith.addf %400, %399 : vector<8x128xf32>
    %cst_269 = arith.constant 5.000000e-01 : f32
    %402 = vector.broadcast %cst_269 : f32 to vector<8x128xf32>
    %403 = arith.mulf %402, %401 : vector<8x128xf32>
    %404 = arith.index_cast %c7_i32 : i32 to index
    %c1_270 = arith.constant 1 : index
    %c0_271 = arith.constant 0 : index
    %c0_272 = arith.constant 0 : index
    %405 = vector.load %arg2[%404, %c1_270, %c0_271, %c0_272] : memref<8x4x8x128xf32, #tpu.memory_space<vmem>>, vector<1x1x8x128xf32>
    %406 = vector.shape_cast %405 : vector<1x1x8x128xf32> to vector<8x128xf32>
    %c1_273 = arith.constant 1 : index
    %c0_274 = arith.constant 0 : index
    %c0_275 = arith.constant 0 : index
    %407 = vector.load %arg3[%c1_273, %c0_274, %c0_275] : memref<4x128x128xf32, #tpu.memory_space<vmem>>, vector<1x128x128xf32>
    %408 = vector.shape_cast %407 : vector<1x128x128xf32> to vector<128x128xf32>
    %cst_276 = arith.constant dense<0.000000e+00> : vector<8x128xf32>
    %409 = tpu.matmul %389, %408, %cst_276 {dimension_numbers = #tpu.dot_dimension_numbers<[1], [0], [0], [1], [0, 0, 1, 1], [], []>} : vector<8x128xf32>, vector<128x128xf32>, vector<8x128xf32> -> vector<8x128xf32>
    %410 = arith.addf %406, %409 : vector<8x128xf32>
    %cst_277 = arith.constant 5.000000e-01 : f32
    %411 = vector.broadcast %cst_277 : f32 to vector<8x128xf32>
    %412 = arith.mulf %411, %410 : vector<8x128xf32>
    %413 = math.tanh %412 : vector<8x128xf32>
    %cst_278 = arith.constant 1.000000e+00 : f32
    %414 = vector.broadcast %cst_278 : f32 to vector<8x128xf32>
    %415 = arith.addf %414, %413 : vector<8x128xf32>
    %cst_279 = arith.constant 5.000000e-01 : f32
    %416 = vector.broadcast %cst_279 : f32 to vector<8x128xf32>
    %417 = arith.mulf %416, %415 : vector<8x128xf32>
    %418 = arith.index_cast %c7_i32 : i32 to index
    %c2_280 = arith.constant 2 : index
    %c0_281 = arith.constant 0 : index
    %c0_282 = arith.constant 0 : index
    %419 = vector.load %arg2[%418, %c2_280, %c0_281, %c0_282] : memref<8x4x8x128xf32, #tpu.memory_space<vmem>>, vector<1x1x8x128xf32>
    %420 = vector.shape_cast %419 : vector<1x1x8x128xf32> to vector<8x128xf32>
    %c2_283 = arith.constant 2 : index
    %c0_284 = arith.constant 0 : index
    %c0_285 = arith.constant 0 : index
    %421 = vector.load %arg3[%c2_283, %c0_284, %c0_285] : memref<4x128x128xf32, #tpu.memory_space<vmem>>, vector<1x128x128xf32>
    %422 = vector.shape_cast %421 : vector<1x128x128xf32> to vector<128x128xf32>
    %cst_286 = arith.constant dense<0.000000e+00> : vector<8x128xf32>
    %423 = tpu.matmul %389, %422, %cst_286 {dimension_numbers = #tpu.dot_dimension_numbers<[1], [0], [0], [1], [0, 0, 1, 1], [], []>} : vector<8x128xf32>, vector<128x128xf32>, vector<8x128xf32> -> vector<8x128xf32>
    %424 = arith.addf %420, %423 : vector<8x128xf32>
    %425 = math.tanh %424 : vector<8x128xf32>
    %426 = arith.index_cast %c7_i32 : i32 to index
    %c3_287 = arith.constant 3 : index
    %c0_288 = arith.constant 0 : index
    %c0_289 = arith.constant 0 : index
    %427 = vector.load %arg2[%426, %c3_287, %c0_288, %c0_289] : memref<8x4x8x128xf32, #tpu.memory_space<vmem>>, vector<1x1x8x128xf32>
    %428 = vector.shape_cast %427 : vector<1x1x8x128xf32> to vector<8x128xf32>
    %c3_290 = arith.constant 3 : index
    %c0_291 = arith.constant 0 : index
    %c0_292 = arith.constant 0 : index
    %429 = vector.load %arg3[%c3_290, %c0_291, %c0_292] : memref<4x128x128xf32, #tpu.memory_space<vmem>>, vector<1x128x128xf32>
    %430 = vector.shape_cast %429 : vector<1x128x128xf32> to vector<128x128xf32>
    %cst_293 = arith.constant dense<0.000000e+00> : vector<8x128xf32>
    %431 = tpu.matmul %389, %430, %cst_293 {dimension_numbers = #tpu.dot_dimension_numbers<[1], [0], [0], [1], [0, 0, 1, 1], [], []>} : vector<8x128xf32>, vector<128x128xf32>, vector<8x128xf32> -> vector<8x128xf32>
    %432 = arith.addf %428, %431 : vector<8x128xf32>
    %cst_294 = arith.constant 5.000000e-01 : f32
    %433 = vector.broadcast %cst_294 : f32 to vector<8x128xf32>
    %434 = arith.mulf %433, %432 : vector<8x128xf32>
    %435 = math.tanh %434 : vector<8x128xf32>
    %cst_295 = arith.constant 1.000000e+00 : f32
    %436 = vector.broadcast %cst_295 : f32 to vector<8x128xf32>
    %437 = arith.addf %436, %435 : vector<8x128xf32>
    %cst_296 = arith.constant 5.000000e-01 : f32
    %438 = vector.broadcast %cst_296 : f32 to vector<8x128xf32>
    %439 = arith.mulf %438, %437 : vector<8x128xf32>
    %440 = arith.mulf %417, %387 : vector<8x128xf32>
    %441 = arith.mulf %403, %425 : vector<8x128xf32>
    %442 = arith.addf %440, %441 : vector<8x128xf32>
    %443 = math.tanh %442 : vector<8x128xf32>
    %444 = arith.mulf %439, %443 : vector<8x128xf32>
    %c8_i32 = arith.constant 8 : i32
    %c0_297 = arith.constant 0 : index
    %c0_298 = arith.constant 0 : index
    %445 = vector.load %arg5[%c0_297, %c0_298] : memref<8x128xf32, #tpu.memory_space<vmem>>, vector<8x128xf32>
    tpu.vector_store %arg5[%c0_297, %c0_298], %444 {strides = array<i32>} : memref<8x128xf32, #tpu.memory_space<vmem>>, vector<8x128xf32>,
    %c0_299 = arith.constant 0 : index
    %c0_300 = arith.constant 0 : index
    %446 = vector.load %arg6[%c0_299, %c0_300] : memref<8x128xf32, #tpu.memory_space<vmem>>, vector<8x128xf32>
    tpu.vector_store %arg6[%c0_299, %c0_300], %442 {strides = array<i32>} : memref<8x128xf32, #tpu.memory_space<vmem>>, vector<8x128xf32>,
    %c0_i32_301 = arith.constant 0 : i32
    %447 = arith.cmpi eq, %arg1, %c0_i32_301 : i32
    %448 = arith.extui %447 : i1 to i32
    %c0_i32_302 = arith.constant 0 : i32
    %449 = arith.cmpi ne, %448, %c0_i32_302 : i32
    scf.if %449 {
      %c0_303 = arith.constant 0 : index
      %c0_304 = arith.constant 0 : index
      %450 = vector.load %arg4[%c0_303, %c0_304] : memref<8x128xf32, #tpu.memory_space<vmem>>, vector<8x128xf32>
      tpu.vector_store %arg4[%c0_303, %c0_304], %444 {strides = array<i32>} : memref<8x128xf32, #tpu.memory_space<vmem>>, vector<8x128xf32>,
    } else {
    }
    return
  }
  func.func @transform_0(%arg0: i32, %arg1: i32) -> (i32, i32, i32, i32) {
    %c0_i32 = arith.constant 0 : i32
    %c0_i32_0 = arith.constant 0 : i32
    %c0_i32_1 = arith.constant 0 : i32
    return %arg1, %c0_i32, %arg0, %c0_i32_0 : i32, i32, i32, i32
  }
  func.func @transform_1(%arg0: i32, %arg1: i32) -> (i32, i32, i32) {
    %c0_i32 = arith.constant 0 : i32
    %c0_i32_0 = arith.constant 0 : i32
    %c0_i32_1 = arith.constant 0 : i32
    %c0_i32_2 = arith.constant 0 : i32
    return %c0_i32, %c0_i32_0, %c0_i32_1 : i32, i32, i32
  }
  func.func @transform_2(%arg0: i32, %arg1: i32) -> (i32, i32) {
    %c0_i32 = arith.constant 0 : i32
    %c0_i32_0 = arith.constant 0 : i32
    return %arg0, %c0_i32 : i32, i32
  }
}

</mosaic_0001>

<llo_original>
// kernel: rnn_forward.1
$region0: #{rnn_forward.1}
  #allocation0 [shape = 'u32[]', space=smem, size = 0x4, offset = 0x4, fixed_abs, tag = 'smem constant byte address 0x4 - core index']
  #allocation1 [shape = 'u32[144,128]{1,0:T(1,128)}', space=vmem, size = 0x12000, scoped, tag = 'internal scratch']
  #allocation2 [shape = 'f32[8,128]{1,0:T(8,128)}', space=vmem, size = 0x1000, scoped, tag = 'scratch operand']
  #allocation3 [shape = 'f32[8,128]{1,0:T(8,128)}', space=vmem, size = 0x1000, scoped, tag = 'scratch operand']
  %s0 = inlined_call_operand.vmem [shape: f32[8,4,8,128], index: 0, kind: input, shape index: {}]
  %s1 = inlined_call_operand.vmem [shape: f32[4,128,128], index: 1, kind: input, shape index: {}]
  %s2 = inlined_call_operand.vmem [shape: f32[8,128], index: 2, kind: output, shape index: {}]
  %s3 = sld [smem:[#allocation0]]
  $region26: #{rnn_forward.1} parent=0
    _
  %s5 = ssub.s32 1, %s3
  %s6 = scalar_select 0, %s5, %s3
  // Predicated region
  $region2: #{rnn_forward.1} parent=0 // pred_check
    _
  $region3: #{rnn_forward.1} parent=0 // pred_check_branch
    %8 = sbr.rel (0) target = $region5
  $region4: #{rnn_forward.1} parent=0 // pred_region
    _
  $region5: #{rnn_forward.1} parent=0 // pred_fallthru
    _
  // Predicated region
  $region6: #{rnn_forward.1} parent=0 // pred_check
    _
  $region7: #{rnn_forward.1} parent=0 // pred_check_branch
    %10 = sbr.rel (0) target = $region9
  $region8: #{rnn_forward.1} parent=0 // pred_region
    _
  $region9: #{rnn_forward.1} parent=0 // pred_fallthru
    _
  %p11 = scmp.eq.s32.totalorder 0, 0
  // Predicated region
  $region10: #{rnn_forward.1} parent=0 // pred_check
    %p12 = pneg %p11
  $region11: #{rnn_forward.1} parent=0 // pred_check_branch
    %14 = sbr.rel (%p12) target = $region13
  $region12: #{rnn_forward.1} parent=0 // pred_region
    %15 = vst [vmem:[#allocation2] sm:$0xff] 0.0
    %16 = vst [vmem:[#allocation3] sm:$0xff] 0.0
  $region13: #{rnn_forward.1} parent=0 // pred_fallthru
    _
  %v17 = vld [vmem:[#allocation2] sm:$0xff]
  %v18 = vld [vmem:[#allocation3] sm:$0xff]
  %v19 = vld [vmem:[%s0] sm:$0xff]
  %v20 = vld [vmem:[%s1] sm:$0xff]
  %v21 = vld [vmem:[%s1 + $0x8] sm:$0xff]
  %v22 = vld [vmem:[%s1 + $0x10] sm:$0xff]
  %v23 = vld [vmem:[%s1 + $0x18] sm:$0xff]
  %v24 = vld [vmem:[%s1 + $0x20] sm:$0xff]
  %v25 = vld [vmem:[%s1 + $0x28] sm:$0xff]
  %v26 = vld [vmem:[%s1 + $0x30] sm:$0xff]
  %v27 = vld [vmem:[%s1 + $0x38] sm:$0xff]
  %v28 = vld [vmem:[%s1 + $0x40] sm:$0xff]
  %v29 = vld [vmem:[%s1 + $0x48] sm:$0xff]
  %v30 = vld [vmem:[%s1 + $0x50] sm:$0xff]
  %v31 = vld [vmem:[%s1 + $0x58] sm:$0xff]
  %v32 = vld [vmem:[%s1 + $0x60] sm:$0xff]
  %v33 = vld [vmem:[%s1 + $0x68] sm:$0xff]
  %v34 = vld [vmem:[%s1 + $0x70] sm:$0xff]
  %v35 = vld [vmem:[%s1 + $0x78] sm:$0xff]
  %36 = vmatprep.subr.mxu0 0.0
  %37 = vmatpush1.msra.mxu0 %v20
  %38 = vmatprep.subr.mxu0 0.0
  %39 = vmatpush1.msra.mxu0 %v21
  %40 = vmatprep.subr.mxu0 0.0
  %41 = vmatpush1.msra.mxu0 %v22
  %42 = vmatprep.subr.mxu0 0.0
  %43 = vmatpush1.msra.mxu0 %v23
  %44 = vmatprep.subr.mxu0 0.0
  %45 = vmatpush1.msra.mxu0 %v24
  %46 = vmatprep.subr.mxu0 0.0
  %47 = vmatpush1.msra.mxu0 %v25
  %48 = vmatprep.subr.mxu0 0.0
  %49 = vmatpush1.msra.mxu0 %v26
  %50 = vmatprep.subr.mxu0 0.0
  %51 = vmatpush1.msra.mxu0 %v27
  %52 = vmatprep.subr.mxu0 0.0
  %53 = vmatpush1.msra.mxu0 %v28
  %54 = vmatprep.subr.mxu0 0.0
  %55 = vmatpush1.msra.mxu0 %v29
  %56 = vmatprep.subr.mxu0 0.0
  %57 = vmatpush1.msra.mxu0 %v30
  %58 = vmatprep.subr.mxu0 0.0
  %59 = vmatpush1.msra.mxu0 %v31
  %60 = vmatprep.subr.mxu0 0.0
  %61 = vmatpush1.msra.mxu0 %v32
  %62 = vmatprep.subr.mxu0 0.0
  %63 = vmatpush1.msra.mxu0 %v33
  %64 = vmatprep.subr.mxu0 0.0
  %65 = vmatpush1.msra.mxu0 %v34
  %66 = vmatprep.subr.mxu0 0.0
  %67 = vmatpush1.msra.mxu0 %v35
  %68 = vmatprep.subr.mxu0 0.0
  %69 = vmatpush1.msra.mxu0 0.0
  %70 = vmatprep.subr.mxu0 0.0
  %71 = vmatpush1.msra.mxu0 0.0
  %72 = vmatprep.subr.mxu0 0.0
  %73 = vmatpush1.msra.mxu0 0.0
  %74 = vmatprep.subr.mxu0 0.0
  %75 = vmatpush1.msra.mxu0 0.0
  %76 = vmatprep.subr.mxu0 0.0
  %77 = vmatpush1.msra.mxu0 0.0
  %78 = vmatprep.subr.mxu0 0.0
  %79 = vmatpush1.msra.mxu0 0.0
  %80 = vmatprep.subr.mxu0 0.0
  %81 = vmatpush1.msra.mxu0 0.0
  %82 = vmatprep.subr.mxu0 0.0
  %83 = vmatpush1.msra.mxu0 0.0
  %84 = vmatprep.subr.mxu0 0.0
  %85 = vmatpush1.msra.mxu0 0.0
  %86 = vmatprep.subr.mxu0 0.0
  %87 = vmatpush1.msra.mxu0 0.0
  %88 = vmatprep.subr.mxu0 0.0
  %89 = vmatpush1.msra.mxu0 0.0
  %90 = vmatprep.subr.mxu0 0.0
  %91 = vmatpush1.msra.mxu0 0.0
  %92 = vmatprep.subr.mxu0 0.0
  %93 = vmatpush1.msra.mxu0 0.0
  %94 = vmatprep.subr.mxu0 0.0
  %95 = vmatpush1.msra.mxu0 0.0
  %96 = vmatprep.subr.mxu0 0.0
  %97 = vmatpush1.msra.mxu0 0.0
  %98 = vmatprep.subr.mxu0 0.0
  %99 = vmatpush1.msra.mxu0 0.0
  %100 = vmatprep.mubr.f32.mxu0 0.0
  %101 = vmatmul.mubr.f32.gmra.mrb[0].mxu0 %v17
  %v102 = vpop.f32.mrb[0].mxu0
  %v103 = vadd.f32 0.0, %v102
  %v104 = vpop.f32.mrb[0].mxu0
  %105 = vdwg.mxu0
  %v106 = vadd.f32 %v19, %v103
  %v107 = vmul.f32 %v106, 0.5
  %v108 = vtanh.pop %v107
  %v109 = vadd.f32 %v108, 1.0
  %v110 = vmul.f32 %v109, 0.5
  %s111 = scalar_lea.vmem %s0, 8
  %v112 = vld [vmem:[%s111] sm:$0xff]
  %s113 = scalar_lea.vmem %s1, 128
  %v114 = vld [vmem:[%s113] sm:$0xff]
  %v115 = vld [vmem:[%s113 + $0x8] sm:$0xff]
  %v116 = vld [vmem:[%s113 + $0x10] sm:$0xff]
  %v117 = vld [vmem:[%s113 + $0x18] sm:$0xff]
  %v118 = vld [vmem:[%s113 + $0x20] sm:$0xff]
  %v119 = vld [vmem:[%s113 + $0x28] sm:$0xff]
  %v120 = vld [vmem:[%s113 + $0x30] sm:$0xff]
  %v121 = vld [vmem:[%s113 + $0x38] sm:$0xff]
  %v122 = vld [vmem:[%s113 + $0x40] sm:$0xff]
  %v123 = vld [vmem:[%s113 + $0x48] sm:$0xff]
  %v124 = vld [vmem:[%s113 + $0x50] sm:$0xff]
  %v125 = vld [vmem:[%s113 + $0x58] sm:$0xff]
  %v126 = vld [vmem:[%s113 + $0x60] sm:$0xff]
  %v127 = vld [vmem:[%s113 + $0x68] sm:$0xff]
  %v128 = vld [vmem:[%s113 + $0x70] sm:$0xff]
  %v129 = vld [vmem:[%s113 + $0x78] sm:$0xff]
  %130 = vmatprep.subr.mxu0 0.0
  %131 = vmatpush1.msra.mxu0 %v114
  %132 = vmatprep.subr.mxu0 0.0
  %133 = vmatpush1.msra.mxu0 %v115
  %134 = vmatprep.subr.mxu0 0.0
  %135 = vmatpush1.msra.mxu0 %v116
  %136 = vmatprep.subr.mxu0 0.0
  %137 = vmatpush1.msra.mxu0 %v117
  %138 = vmatprep.subr.mxu0 0.0
  %139 = vmatpush1.msra.mxu0 %v118
  %140 = vmatprep.subr.mxu0 0.0
  %141 = vmatpush1.msra.mxu0 %v119
  %142 = vmatprep.subr.mxu0 0.0
  %143 = vmatpush1.msra.mxu0 %v120
  %144 = vmatprep.subr.mxu0 0.0
  %145 = vmatpush1.msra.mxu0 %v121
  %146 = vmatprep.subr.mxu0 0.0
  %147 = vmatpush1.msra.mxu0 %v122
  %148 = vmatprep.subr.mxu0 0.0
  %149 = vmatpush1.msra.mxu0 %v123
  %150 = vmatprep.subr.mxu0 0.0
  %151 = vmatpush1.msra.mxu0 %v124
  %152 = vmatprep.subr.mxu0 0.0
  %153 = vmatpush1.msra.mxu0 %v125
  %154 = vmatprep.subr.mxu0 0.0
  %155 = vmatpush1.msra.mxu0 %v126
  %156 = vmatprep.subr.mxu0 0.0
  %157 = vmatpush1.msra.mxu0 %v127
  %158 = vmatprep.subr.mxu0 0.0
  %159 = vmatpush1.msra.mxu0 %v128
  %160 = vmatprep.subr.mxu0 0.0
  %161 = vmatpush1.msra.mxu0 %v129
  %162 = vmatprep.subr.mxu0 0.0
  %163 = vmatpush1.msra.mxu0 0.0
  %164 = vmatprep.subr.mxu0 0.0
  %165 = vmatpush1.msra.mxu0 0.0
  %166 = vmatprep.subr.mxu0 0.0
  %167 = vmatpush1.msra.mxu0 0.0
  %168 = vmatprep.subr.mxu0 0.0
  %169 = vmatpush1.msra.mxu0 0.0
  %170 = vmatprep.subr.mxu0 0.0
  %171 = vmatpush1.msra.mxu0 0.0
  %172 = vmatprep.subr.mxu0 0.0
  %173 = vmatpush1.msra.mxu0 0.0
  %174 = vmatprep.subr.mxu0 0.0
  %175 = vmatpush1.msra.mxu0 0.0
  %176 = vmatprep.subr.mxu0 0.0
  %177 = vmatpush1.msra.mxu0 0.0
  %178 = vmatprep.subr.mxu0 0.0
  %179 = vmatpush1.msra.mxu0 0.0
  %180 = vmatprep.subr.mxu0 0.0
  %181 = vmatpush1.msra.mxu0 0.0
  %182 = vmatprep.subr.mxu0 0.0
  %183 = vmatpush1.msra.mxu0 0.0
  %184 = vmatprep.subr.mxu0 0.0
  %185 = vmatpush1.msra.mxu0 0.0
  %186 = vmatprep.subr.mxu0 0.0
  %187 = vmatpush1.msra.mxu0 0.0
  %188 = vmatprep.subr.mxu0 0.0
  %189 = vmatpush1.msra.mxu0 0.0
  %190 = vmatprep.subr.mxu0 0.0
  %191 = vmatpush1.msra.mxu0 0.0
  %192 = vmatprep.subr.mxu0 0.0
  %193 = vmatpush1.msra.mxu0 0.0
  %194 = vmatprep.mubr.f32.mxu0 0.0
  %195 = vmatmul.mubr.f32.gmra.mrb[0].mxu0 %v17
  %v196 = vpop.f32.mrb[0].mxu0
  %v197 = vadd.f32 0.0, %v196
  %v198 = vpop.f32.mrb[0].mxu0
  %199 = vdwg.mxu0
  %v200 = vadd.f32 %v112, %v197
  %v201 = vmul.f32 %v200, 0.5
  %v202 = vtanh.pop %v201
  %v203 = vadd.f32 %v202, 1.0
  %v204 = vmul.f32 %v203, 0.5
  %s205 = scalar_lea.vmem %s0, 16
  %v206 = vld [vmem:[%s205] sm:$0xff]
  %s207 = scalar_lea.vmem %s1, 256
  %v208 = vld [vmem:[%s207] sm:$0xff]
  %v209 = vld [vmem:[%s207 + $0x8] sm:$0xff]
  %v210 = vld [vmem:[%s207 + $0x10] sm:$0xff]
  %v211 = vld [vmem:[%s207 + $0x18] sm:$0xff]
  %v212 = vld [vmem:[%s207 + $0x20] sm:$0xff]
  %v213 = vld [vmem:[%s207 + $0x28] sm:$0xff]
  %v214 = vld [vmem:[%s207 + $0x30] sm:$0xff]
  %v215 = vld [vmem:[%s207 + $0x38] sm:$0xff]
  %v216 = vld [vmem:[%s207 + $0x40] sm:$0xff]
  %v217 = vld [vmem:[%s207 + $0x48] sm:$0xff]
  %v218 = vld [vmem:[%s207 + $0x50] sm:$0xff]
  %v219 = vld [vmem:[%s207 + $0x58] sm:$0xff]
  %v220 = vld [vmem:[%s207 + $0x60] sm:$0xff]
  %v221 = vld [vmem:[%s207 + $0x68] sm:$0xff]
  %v222 = vld [vmem:[%s207 + $0x70] sm:$0xff]
  %v223 = vld [vmem:[%s207 + $0x78] sm:$0xff]
  %224 = vmatprep.subr.mxu0 0.0
  %225 = vmatpush1.msra.mxu0 %v208
  %226 = vmatprep.subr.mxu0 0.0
  %227 = vmatpush1.msra.mxu0 %v209
  %228 = vmatprep.subr.mxu0 0.0
  %229 = vmatpush1.msra.mxu0 %v210
  %230 = vmatprep.subr.mxu0 0.0
  %231 = vmatpush1.msra.mxu0 %v211
  %232 = vmatprep.subr.mxu0 0.0
  %233 = vmatpush1.msra.mxu0 %v212
  %234 = vmatprep.subr.mxu0 0.0
  %235 = vmatpush1.msra.mxu0 %v213
  %236 = vmatprep.subr.mxu0 0.0
  %237 = vmatpush1.msra.mxu0 %v214
  %238 = vmatprep.subr.mxu0 0.0
  %239 = vmatpush1.msra.mxu0 %v215
  %240 = vmatprep.subr.mxu0 0.0
  %241 = vmatpush1.msra.mxu0 %v216
  %242 = vmatprep.subr.mxu0 0.0
  %243 = vmatpush1.msra.mxu0 %v217
  %244 = vmatprep.subr.mxu0 0.0
  %245 = vmatpush1.msra.mxu0 %v218
  %246 = vmatprep.subr.mxu0 0.0
  %247 = vmatpush1.msra.mxu0 %v219
  %248 = vmatprep.subr.mxu0 0.0
  %249 = vmatpush1.msra.mxu0 %v220
  %250 = vmatprep.subr.mxu0 0.0
  %251 = vmatpush1.msra.mxu0 %v221
  %252 = vmatprep.subr.mxu0 0.0
  %253 = vmatpush1.msra.mxu0 %v222
  %254 = vmatprep.subr.mxu0 0.0
  %255 = vmatpush1.msra.mxu0 %v223
  %256 = vmatprep.subr.mxu0 0.0
  %257 = vmatpush1.msra.mxu0 0.0
  %258 = vmatprep.subr.mxu0 0.0
  %259 = vmatpush1.msra.mxu0 0.0
  %260 = vmatprep.subr.mxu0 0.0
  %261 = vmatpush1.msra.mxu0 0.0
  %262 = vmatprep.subr.mxu0 0.0
  %263 = vmatpush1.msra.mxu0 0.0
  %264 = vmatprep.subr.mxu0 0.0
  %265 = vmatpush1.msra.mxu0 0.0
  %266 = vmatprep.subr.mxu0 0.0
  %267 = vmatpush1.msra.mxu0 0.0
  %268 = vmatprep.subr.mxu0 0.0
  %269 = vmatpush1.msra.mxu0 0.0
  %270 = vmatprep.subr.mxu0 0.0
  %271 = vmatpush1.msra.mxu0 0.0
  %272 = vmatprep.subr.mxu0 0.0
  %273 = vmatpush1.msra.mxu0 0.0
  %274 = vmatprep.subr.mxu0 0.0
  %275 = vmatpush1.msra.mxu0 0.0
  %276 = vmatprep.subr.mxu0 0.0
  %277 = vmatpush1.msra.mxu0 0.0
  %278 = vmatprep.subr.mxu0 0.0
  %279 = vmatpush1.msra.mxu0 0.0
  %280 = vmatprep.subr.mxu0 0.0
  %281 = vmatpush1.msra.mxu0 0.0
  %282 = vmatprep.subr.mxu0 0.0
  %283 = vmatpush1.msra.mxu0 0.0
  %284 = vmatprep.subr.mxu0 0.0
  %285 = vmatpush1.msra.mxu0 0.0
  %286 = vmatprep.subr.mxu0 0.0
  %287 = vmatpush1.msra.mxu0 0.0
  %288 = vmatprep.mubr.f32.mxu0 0.0
  %289 = vmatmul.mubr.f32.gmra.mrb[0].mxu0 %v17
  %v290 = vpop.f32.mrb[0].mxu0
  %v291 = vadd.f32 0.0, %v290
  %v292 = vpop.f32.mrb[0].mxu0
  %293 = vdwg.mxu0
  %v294 = vadd.f32 %v206, %v291
  %v295 = vtanh.pop %v294
  %s296 = scalar_lea.vmem %s0, 24
  %v297 = vld [vmem:[%s296] sm:$0xff]
  %s298 = scalar_lea.vmem %s1, 384
  %v299 = vld [vmem:[%s298] sm:$0xff]
  %v300 = vld [vmem:[%s298 + $0x8] sm:$0xff]
  %v301 = vld [vmem:[%s298 + $0x10] sm:$0xff]
  %v302 = vld [vmem:[%s298 + $0x18] sm:$0xff]
  %v303 = vld [vmem:[%s298 + $0x20] sm:$0xff]
  %v304 = vld [vmem:[%s298 + $0x28] sm:$0xff]
  %v305 = vld [vmem:[%s298 + $0x30] sm:$0xff]
  %v306 = vld [vmem:[%s298 + $0x38] sm:$0xff]
  %v307 = vld [vmem:[%s298 + $0x40] sm:$0xff]
  %v308 = vld [vmem:[%s298 + $0x48] sm:$0xff]
  %v309 = vld [vmem:[%s298 + $0x50] sm:$0xff]
  %v310 = vld [vmem:[%s298 + $0x58] sm:$0xff]
  %v311 = vld [vmem:[%s298 + $0x60] sm:$0xff]
  %v312 = vld [vmem:[%s298 + $0x68] sm:$0xff]
  %v313 = vld [vmem:[%s298 + $0x70] sm:$0xff]
  %v314 = vld [vmem:[%s298 + $0x78] sm:$0xff]
  %315 = vmatprep.subr.mxu0 0.0
  %316 = vmatpush1.msra.mxu0 %v299
  %317 = vmatprep.subr.mxu0 0.0
  %318 = vmatpush1.msra.mxu0 %v300
  %319 = vmatprep.subr.mxu0 0.0
  %320 = vmatpush1.msra.mxu0 %v301
  %321 = vmatprep.subr.mxu0 0.0
  %322 = vmatpush1.msra.mxu0 %v302
  %323 = vmatprep.subr.mxu0 0.0
  %324 = vmatpush1.msra.mxu0 %v303
  %325 = vmatprep.subr.mxu0 0.0
  %326 = vmatpush1.msra.mxu0 %v304
  %327 = vmatprep.subr.mxu0 0.0
  %328 = vmatpush1.msra.mxu0 %v305
  %329 = vmatprep.subr.mxu0 0.0
  %330 = vmatpush1.msra.mxu0 %v306
  %331 = vmatprep.subr.mxu0 0.0
  %332 = vmatpush1.msra.mxu0 %v307
  %333 = vmatprep.subr.mxu0 0.0
  %334 = vmatpush1.msra.mxu0 %v308
  %335 = vmatprep.subr.mxu0 0.0
  %336 = vmatpush1.msra.mxu0 %v309
  %337 = vmatprep.subr.mxu0 0.0
  %338 = vmatpush1.msra.mxu0 %v310
  %339 = vmatprep.subr.mxu0 0.0
  %340 = vmatpush1.msra.mxu0 %v311
  %341 = vmatprep.subr.mxu0 0.0
  %342 = vmatpush1.msra.mxu0 %v312
  %343 = vmatprep.subr.mxu0 0.0
  %344 = vmatpush1.msra.mxu0 %v313
  %345 = vmatprep.subr.mxu0 0.0
  %346 = vmatpush1.msra.mxu0 %v314
  %347 = vmatprep.subr.mxu0 0.0
  %348 = vmatpush1.msra.mxu0 0.0
  %349 = vmatprep.subr.mxu0 0.0
  %350 = vmatpush1.msra.mxu0 0.0
  %351 = vmatprep.subr.mxu0 0.0
  %352 = vmatpush1.msra.mxu0 0.0
  %353 = vmatprep.subr.mxu0 0.0
  %354 = vmatpush1.msra.mxu0 0.0
  %355 = vmatprep.subr.mxu0 0.0
  %356 = vmatpush1.msra.mxu0 0.0
  %357 = vmatprep.subr.mxu0 0.0
  %358 = vmatpush1.msra.mxu0 0.0
  %359 = vmatprep.subr.mxu0 0.0
  %360 = vmatpush1.msra.mxu0 0.0
  %361 = vmatprep.subr.mxu0 0.0
  %362 = vmatpush1.msra.mxu0 0.0
  %363 = vmatprep.subr.mxu0 0.0
  %364 = vmatpush1.msra.mxu0 0.0
  %365 = vmatprep.subr.mxu0 0.0
  %366 = vmatpush1.msra.mxu0 0.0
  %367 = vmatprep.subr.mxu0 0.0
  %368 = vmatpush1.msra.mxu0 0.0
  %369 = vmatprep.subr.mxu0 0.0
  %370 = vmatpush1.msra.mxu0 0.0
  %371 = vmatprep.subr.mxu0 0.0
  %372 = vmatpush1.msra.mxu0 0.0
  %373 = vmatprep.subr.mxu0 0.0
  %374 = vmatpush1.msra.mxu0 0.0
  %375 = vmatprep.subr.mxu0 0.0
  %376 = vmatpush1.msra.mxu0 0.0
  %377 = vmatprep.subr.mxu0 0.0
  %378 = vmatpush1.msra.mxu0 0.0
  %379 = vmatprep.mubr.f32.mxu0 0.0
  %380 = vmatmul.mubr.f32.gmra.mrb[0].mxu0 %v17
  %v381 = vpop.f32.mrb[0].mxu0
  %v382 = vadd.f32 0.0, %v381
  %v383 = vpop.f32.mrb[0].mxu0
  %384 = vdwg.mxu0
  %v385 = vadd.f32 %v297, %v382
  %v386 = vmul.f32 %v385, 0.5
  %v387 = vtanh.pop %v386
  %v388 = vadd.f32 %v387, 1.0
  %v389 = vmul.f32 %v388, 0.5
  %v390 = vmul.f32 %v204, %v18
  %v391 = vmul.f32 %v110, %v295
  %v392 = vadd.f32 %v390, %v391
  %v393 = vtanh.pop %v392
  %v394 = vmul.f32 %v389, %v393
  %s395 = scalar_lea.vmem %s0, 32
  %v396 = vld [vmem:[%s395] sm:$0xff]
  %397 = vmatprep.subr.mxu0 0.0
  %398 = vmatpush1.msra.mxu0 %v20
  %399 = vmatprep.subr.mxu0 0.0
  %400 = vmatpush1.msra.mxu0 %v21
  %401 = vmatprep.subr.mxu0 0.0
  %402 = vmatpush1.msra.mxu0 %v22
  %403 = vmatprep.subr.mxu0 0.0
  %404 = vmatpush1.msra.mxu0 %v23
  %405 = vmatprep.subr.mxu0 0.0
  %406 = vmatpush1.msra.mxu0 %v24
  %407 = vmatprep.subr.mxu0 0.0
  %408 = vmatpush1.msra.mxu0 %v25
  %409 = vmatprep.subr.mxu0 0.0
  %410 = vmatpush1.msra.mxu0 %v26
  %411 = vmatprep.subr.mxu0 0.0
  %412 = vmatpush1.msra.mxu0 %v27
  %413 = vmatprep.subr.mxu0 0.0
  %414 = vmatpush1.msra.mxu0 %v28
  %415 = vmatprep.subr.mxu0 0.0
  %416 = vmatpush1.msra.mxu0 %v29
  %417 = vmatprep.subr.mxu0 0.0
  %418 = vmatpush1.msra.mxu0 %v30
  %419 = vmatprep.subr.mxu0 0.0
  %420 = vmatpush1.msra.mxu0 %v31
  %421 = vmatprep.subr.mxu0 0.0
  %422 = vmatpush1.msra.mxu0 %v32
  %423 = vmatprep.subr.mxu0 0.0
  %424 = vmatpush1.msra.mxu0 %v33
  %425 = vmatprep.subr.mxu0 0.0
  %426 = vmatpush1.msra.mxu0 %v34
  %427 = vmatprep.subr.mxu0 0.0
  %428 = vmatpush1.msra.mxu0 %v35
  %429 = vmatprep.subr.mxu0 0.0
  %430 = vmatpush1.msra.mxu0 0.0
  %431 = vmatprep.subr.mxu0 0.0
  %432 = vmatpush1.msra.mxu0 0.0
  %433 = vmatprep.subr.mxu0 0.0
  %434 = vmatpush1.msra.mxu0 0.0
  %435 = vmatprep.subr.mxu0 0.0
  %436 = vmatpush1.msra.mxu0 0.0
  %437 = vmatprep.subr.mxu0 0.0
  %438 = vmatpush1.msra.mxu0 0.0
  %439 = vmatprep.subr.mxu0 0.0
  %440 = vmatpush1.msra.mxu0 0.0
  %441 = vmatprep.subr.mxu0 0.0
  %442 = vmatpush1.msra.mxu0 0.0
  %443 = vmatprep.subr.mxu0 0.0
  %444 = vmatpush1.msra.mxu0 0.0
  %445 = vmatprep.subr.mxu0 0.0
  %446 = vmatpush1.msra.mxu0 0.0
  %447 = vmatprep.subr.mxu0 0.0
  %448 = vmatpush1.msra.mxu0 0.0
  %449 = vmatprep.subr.mxu0 0.0
  %450 = vmatpush1.msra.mxu0 0.0
  %451 = vmatprep.subr.mxu0 0.0
  %452 = vmatpush1.msra.mxu0 0.0
  %453 = vmatprep.subr.mxu0 0.0
  %454 = vmatpush1.msra.mxu0 0.0
  %455 = vmatprep.subr.mxu0 0.0
  %456 = vmatpush1.msra.mxu0 0.0
  %457 = vmatprep.subr.mxu0 0.0
  %458 = vmatpush1.msra.mxu0 0.0
  %459 = vmatprep.subr.mxu0 0.0
  %460 = vmatpush1.msra.mxu0 0.0
  %461 = vmatprep.mubr.f32.mxu0 0.0
  %462 = vmatmul.mubr.f32.gmra.mrb[0].mxu0 %v394
  %v463 = vpop.f32.mrb[0].mxu0
  %v464 = vadd.f32 0.0, %v463
  %v465 = vpop.f32.mrb[0].mxu0
  %466 = vdwg.mxu0
  %v467 = vadd.f32 %v396, %v464
  %v468 = vmul.f32 %v467, 0.5
  %v469 = vtanh.pop %v468
  %v470 = vadd.f32 %v469, 1.0
  %v471 = vmul.f32 %v470, 0.5
  %s472 = scalar_lea.vmem %s0, 40
  %v473 = vld [vmem:[%s472] sm:$0xff]
  %474 = vmatprep.subr.mxu0 0.0
  %475 = vmatpush1.msra.mxu0 %v114
  %476 = vmatprep.subr.mxu0 0.0
  %477 = vmatpush1.msra.mxu0 %v115
  %478 = vmatprep.subr.mxu0 0.0
  %479 = vmatpush1.msra.mxu0 %v116
  %480 = vmatprep.subr.mxu0 0.0
  %481 = vmatpush1.msra.mxu0 %v117
  %482 = vmatprep.subr.mxu0 0.0
  %483 = vmatpush1.msra.mxu0 %v118
  %484 = vmatprep.subr.mxu0 0.0
  %485 = vmatpush1.msra.mxu0 %v119
  %486 = vmatprep.subr.mxu0 0.0
  %487 = vmatpush1.msra.mxu0 %v120
  %488 = vmatprep.subr.mxu0 0.0
  %489 = vmatpush1.msra.mxu0 %v121
  %490 = vmatprep.subr.mxu0 0.0
  %491 = vmatpush1.msra.mxu0 %v122
  %492 = vmatprep.subr.mxu0 0.0
  %493 = vmatpush1.msra.mxu0 %v123
  %494 = vmatprep.subr.mxu0 0.0
  %495 = vmatpush1.msra.mxu0 %v124
  %496 = vmatprep.subr.mxu0 0.0
  %497 = vmatpush1.msra.mxu0 %v125
  %498 = vmatprep.subr.mxu0 0.0
  %499 = vmatpush1.msra.mxu0 %v126
  %500 = vmatprep.subr.mxu0 0.0
  %501 = vmatpush1.msra.mxu0 %v127
  %502 = vmatprep.subr.mxu0 0.0
  %503 = vmatpush1.msra.mxu0 %v128
  %504 = vmatprep.subr.mxu0 0.0
  %505 = vmatpush1.msra.mxu0 %v129
  %506 = vmatprep.subr.mxu0 0.0
  %507 = vmatpush1.msra.mxu0 0.0
  %508 = vmatprep.subr.mxu0 0.0
  %509 = vmatpush1.msra.mxu0 0.0
  %510 = vmatprep.subr.mxu0 0.0
  %511 = vmatpush1.msra.mxu0 0.0
  %512 = vmatprep.subr.mxu0 0.0
  %513 = vmatpush1.msra.mxu0 0.0
  %514 = vmatprep.subr.mxu0 0.0
  %515 = vmatpush1.msra.mxu0 0.0
  %516 = vmatprep.subr.mxu0 0.0
  %517 = vmatpush1.msra.mxu0 0.0
  %518 = vmatprep.subr.mxu0 0.0
  %519 = vmatpush1.msra.mxu0 0.0
  %520 = vmatprep.subr.mxu0 0.0
  %521 = vmatpush1.msra.mxu0 0.0
  %522 = vmatprep.subr.mxu0 0.0
  %523 = vmatpush1.msra.mxu0 0.0
  %524 = vmatprep.subr.mxu0 0.0
  %525 = vmatpush1.msra.mxu0 0.0
  %526 = vmatprep.subr.mxu0 0.0
  %527 = vmatpush1.msra.mxu0 0.0
  %528 = vmatprep.subr.mxu0 0.0
  %529 = vmatpush1.msra.mxu0 0.0
  %530 = vmatprep.subr.mxu0 0.0
  %531 = vmatpush1.msra.mxu0 0.0
  %532 = vmatprep.subr.mxu0 0.0
  %533 = vmatpush1.msra.mxu0 0.0
  %534 = vmatprep.subr.mxu0 0.0
  %535 = vmatpush1.msra.mxu0 0.0
  %536 = vmatprep.subr.mxu0 0.0
  %537 = vmatpush1.msra.mxu0 0.0
  %538 = vmatprep.mubr.f32.mxu0 0.0
  %539 = vmatmul.mubr.f32.gmra.mrb[0].mxu0 %v394
  %v540 = vpop.f32.mrb[0].mxu0
  %v541 = vadd.f32 0.0, %v540
  %v542 = vpop.f32.mrb[0].mxu0
  %543 = vdwg.mxu0
  %v544 = vadd.f32 %v473, %v541
  %v545 = vmul.f32 %v544, 0.5
  %v546 = vtanh.pop %v545
  %v547 = vadd.f32 %v546, 1.0
  %v548 = vmul.f32 %v547, 0.5
  %s549 = scalar_lea.vmem %s0, 48
  %v550 = vld [vmem:[%s549] sm:$0xff]
  %551 = vmatprep.subr.mxu0 0.0
  %552 = vmatpush1.msra.mxu0 %v208
  %553 = vmatprep.subr.mxu0 0.0
  %554 = vmatpush1.msra.mxu0 %v209
  %555 = vmatprep.subr.mxu0 0.0
  %556 = vmatpush1.msra.mxu0 %v210
  %557 = vmatprep.subr.mxu0 0.0
  %558 = vmatpush1.msra.mxu0 %v211
  %559 = vmatprep.subr.mxu0 0.0
  %560 = vmatpush1.msra.mxu0 %v212
  %561 = vmatprep.subr.mxu0 0.0
  %562 = vmatpush1.msra.mxu0 %v213
  %563 = vmatprep.subr.mxu0 0.0
  %564 = vmatpush1.msra.mxu0 %v214
  %565 = vmatprep.subr.mxu0 0.0
  %566 = vmatpush1.msra.mxu0 %v215
  %567 = vmatprep.subr.mxu0 0.0
  %568 = vmatpush1.msra.mxu0 %v216
  %569 = vmatprep.subr.mxu0 0.0
  %570 = vmatpush1.msra.mxu0 %v217
  %571 = vmatprep.subr.mxu0 0.0
  %572 = vmatpush1.msra.mxu0 %v218
  %573 = vmatprep.subr.mxu0 0.0
  %574 = vmatpush1.msra.mxu0 %v219
  %575 = vmatprep.subr.mxu0 0.0
  %576 = vmatpush1.msra.mxu0 %v220
  %577 = vmatprep.subr.mxu0 0.0
  %578 = vmatpush1.msra.mxu0 %v221
  %579 = vmatprep.subr.mxu0 0.0
  %580 = vmatpush1.msra.mxu0 %v222
  %581 = vmatprep.subr.mxu0 0.0
  %582 = vmatpush1.msra.mxu0 %v223
  %583 = vmatprep.subr.mxu0 0.0
  %584 = vmatpush1.msra.mxu0 0.0
  %585 = vmatprep.subr.mxu0 0.0
  %586 = vmatpush1.msra.mxu0 0.0
  %587 = vmatprep.subr.mxu0 0.0
  %588 = vmatpush1.msra.mxu0 0.0
  %589 = vmatprep.subr.mxu0 0.0
  %590 = vmatpush1.msra.mxu0 0.0
  %591 = vmatprep.subr.mxu0 0.0
  %592 = vmatpush1.msra.mxu0 0.0
  %593 = vmatprep.subr.mxu0 0.0
  %594 = vmatpush1.msra.mxu0 0.0
  %595 = vmatprep.subr.mxu0 0.0
  %596 = vmatpush1.msra.mxu0 0.0
  %597 = vmatprep.subr.mxu0 0.0
  %598 = vmatpush1.msra.mxu0 0.0
  %599 = vmatprep.subr.mxu0 0.0
  %600 = vmatpush1.msra.mxu0 0.0
  %601 = vmatprep.subr.mxu0 0.0
  %602 = vmatpush1.msra.mxu0 0.0
  %603 = vmatprep.subr.mxu0 0.0
  %604 = vmatpush1.msra.mxu0 0.0
  %605 = vmatprep.subr.mxu0 0.0
  %606 = vmatpush1.msra.mxu0 0.0
  %607 = vmatprep.subr.mxu0 0.0
  %608 = vmatpush1.msra.mxu0 0.0
  %609 = vmatprep.subr.mxu0 0.0
  %610 = vmatpush1.msra.mxu0 0.0
  %611 = vmatprep.subr.mxu0 0.0
  %612 = vmatpush1.msra.mxu0 0.0
  %613 = vmatprep.subr.mxu0 0.0
  %614 = vmatpush1.msra.mxu0 0.0
  %615 = vmatprep.mubr.f32.mxu0 0.0
  %616 = vmatmul.mubr.f32.gmra.mrb[0].mxu0 %v394
  %v617 = vpop.f32.mrb[0].mxu0
  %v618 = vadd.f32 0.0, %v617
  %v619 = vpop.f32.mrb[0].mxu0
  %620 = vdwg.mxu0
  %v621 = vadd.f32 %v550, %v618
  %v622 = vtanh.pop %v621
  %s623 = scalar_lea.vmem %s0, 56
  %v624 = vld [vmem:[%s623] sm:$0xff]
  %625 = vmatprep.subr.mxu0 0.0
  %626 = vmatpush1.msra.mxu0 %v299
  %627 = vmatprep.subr.mxu0 0.0
  %628 = vmatpush1.msra.mxu0 %v300
  %629 = vmatprep.subr.mxu0 0.0
  %630 = vmatpush1.msra.mxu0 %v301
  %631 = vmatprep.subr.mxu0 0.0
  %632 = vmatpush1.msra.mxu0 %v302
  %633 = vmatprep.subr.mxu0 0.0
  %634 = vmatpush1.msra.mxu0 %v303
  %635 = vmatprep.subr.mxu0 0.0
  %636 = vmatpush1.msra.mxu0 %v304
  %637 = vmatprep.subr.mxu0 0.0
  %638 = vmatpush1.msra.mxu0 %v305
  %639 = vmatprep.subr.mxu0 0.0
  %640 = vmatpush1.msra.mxu0 %v306
  %641 = vmatprep.subr.mxu0 0.0
  %642 = vmatpush1.msra.mxu0 %v307
  %643 = vmatprep.subr.mxu0 0.0
  %644 = vmatpush1.msra.mxu0 %v308
  %645 = vmatprep.subr.mxu0 0.0
  %646 = vmatpush1.msra.mxu0 %v309
  %647 = vmatprep.subr.mxu0 0.0
  %648 = vmatpush1.msra.mxu0 %v310
  %649 = vmatprep.subr.mxu0 0.0
  %650 = vmatpush1.msra.mxu0 %v311
  %651 = vmatprep.subr.mxu0 0.0
  %652 = vmatpush1.msra.mxu0 %v312
  %653 = vmatprep.subr.mxu0 0.0
  %654 = vmatpush1.msra.mxu0 %v313
  %655 = vmatprep.subr.mxu0 0.0
  %656 = vmatpush1.msra.mxu0 %v314
  %657 = vmatprep.subr.mxu0 0.0
  %658 = vmatpush1.msra.mxu0 0.0
  %659 = vmatprep.subr.mxu0 0.0
  %660 = vmatpush1.msra.mxu0 0.0
  %661 = vmatprep.subr.mxu0 0.0
  %662 = vmatpush1.msra.mxu0 0.0
  %663 = vmatprep.subr.mxu0 0.0
  %664 = vmatpush1.msra.mxu0 0.0
  %665 = vmatprep.subr.mxu0 0.0
  %666 = vmatpush1.msra.mxu0 0.0
  %667 = vmatprep.subr.mxu0 0.0
  %668 = vmatpush1.msra.mxu0 0.0
  %669 = vmatprep.subr.mxu0 0.0
  %670 = vmatpush1.msra.mxu0 0.0
  %671 = vmatprep.subr.mxu0 0.0
  %672 = vmatpush1.msra.mxu0 0.0
  %673 = vmatprep.subr.mxu0 0.0
  %674 = vmatpush1.msra.mxu0 0.0
  %675 = vmatprep.subr.mxu0 0.0
  %676 = vmatpush1.msra.mxu0 0.0
  %677 = vmatprep.subr.mxu0 0.0
  %678 = vmatpush1.msra.mxu0 0.0
  %679 = vmatprep.subr.mxu0 0.0
  %680 = vmatpush1.msra.mxu0 0.0
  %681 = vmatprep.subr.mxu0 0.0
  %682 = vmatpush1.msra.mxu0 0.0
  %683 = vmatprep.subr.mxu0 0.0
  %684 = vmatpush1.msra.mxu0 0.0
  %685 = vmatprep.subr.mxu0 0.0
  %686 = vmatpush1.msra.mxu0 0.0
  %687 = vmatprep.subr.mxu0 0.0
  %688 = vmatpush1.msra.mxu0 0.0
  %689 = vmatprep.mubr.f32.mxu0 0.0
  %690 = vmatmul.mubr.f32.gmra.mrb[0].mxu0 %v394
  %v691 = vpop.f32.mrb[0].mxu0
  %v692 = vadd.f32 0.0, %v691
  %v693 = vpop.f32.mrb[0].mxu0
  %694 = vdwg.mxu0
  %v695 = vadd.f32 %v624, %v692
  %v696 = vmul.f32 %v695, 0.5
  %v697 = vtanh.pop %v696
  %v698 = vadd.f32 %v697, 1.0
  %v699 = vmul.f32 %v698, 0.5
  %v700 = vmul.f32 %v548, %v392
  %v701 = vmul.f32 %v471, %v622
  %v702 = vadd.f32 %v700, %v701
  %v703 = vtanh.pop %v702
  %v704 = vmul.f32 %v699, %v703
  %s705 = scalar_lea.vmem %s0, 64
  %v706 = vld [vmem:[%s705] sm:$0xff]
  %707 = vmatprep.subr.mxu0 0.0
  %708 = vmatpush1.msra.mxu0 %v20
  %709 = vmatprep.subr.mxu0 0.0
  %710 = vmatpush1.msra.mxu0 %v21
  %711 = vmatprep.subr.mxu0 0.0
  %712 = vmatpush1.msra.mxu0 %v22
  %713 = vmatprep.subr.mxu0 0.0
  %714 = vmatpush1.msra.mxu0 %v23
  %715 = vmatprep.subr.mxu0 0.0
  %716 = vmatpush1.msra.mxu0 %v24
  %717 = vmatprep.subr.mxu0 0.0
  %718 = vmatpush1.msra.mxu0 %v25
  %719 = vmatprep.subr.mxu0 0.0
  %720 = vmatpush1.msra.mxu0 %v26
  %721 = vmatprep.subr.mxu0 0.0
  %722 = vmatpush1.msra.mxu0 %v27
  %723 = vmatprep.subr.mxu0 0.0
  %724 = vmatpush1.msra.mxu0 %v28
  %725 = vmatprep.subr.mxu0 0.0
  %726 = vmatpush1.msra.mxu0 %v29
  %727 = vmatprep.subr.mxu0 0.0
  %728 = vmatpush1.msra.mxu0 %v30
  %729 = vmatprep.subr.mxu0 0.0
  %730 = vmatpush1.msra.mxu0 %v31
  %731 = vmatprep.subr.mxu0 0.0
  %732 = vmatpush1.msra.mxu0 %v32
  %733 = vmatprep.subr.mxu0 0.0
  %734 = vmatpush1.msra.mxu0 %v33
  %735 = vmatprep.subr.mxu0 0.0
  %736 = vmatpush1.msra.mxu0 %v34
  %737 = vmatprep.subr.mxu0 0.0
  %738 = vmatpush1.msra.mxu0 %v35
  %739 = vmatprep.subr.mxu0 0.0
  %740 = vmatpush1.msra.mxu0 0.0
  %741 = vmatprep.subr.mxu0 0.0
  %742 = vmatpush1.msra.mxu0 0.0
  %743 = vmatprep.subr.mxu0 0.0
  %744 = vmatpush1.msra.mxu0 0.0
  %745 = vmatprep.subr.mxu0 0.0
  %746 = vmatpush1.msra.mxu0 0.0
  %747 = vmatprep.subr.mxu0 0.0
  %748 = vmatpush1.msra.mxu0 0.0
  %749 = vmatprep.subr.mxu0 0.0
  %750 = vmatpush1.msra.mxu0 0.0
  %751 = vmatprep.subr.mxu0 0.0
  %752 = vmatpush1.msra.mxu0 0.0
  %753 = vmatprep.subr.mxu0 0.0
  %754 = vmatpush1.msra.mxu0 0.0
  %755 = vmatprep.subr.mxu0 0.0
  %756 = vmatpush1.msra.mxu0 0.0
  %757 = vmatprep.subr.mxu0 0.0
  %758 = vmatpush1.msra.mxu0 0.0
  %759 = vmatprep.subr.mxu0 0.0
  %760 = vmatpush1.msra.mxu0 0.0
  %761 = vmatprep.subr.mxu0 0.0
  %762 = vmatpush1.msra.mxu0 0.0
  %763 = vmatprep.subr.mxu0 0.0
  %764 = vmatpush1.msra.mxu0 0.0
  %765 = vmatprep.subr.mxu0 0.0
  %766 = vmatpush1.msra.mxu0 0.0
  %767 = vmatprep.subr.mxu0 0.0
  %768 = vmatpush1.msra.mxu0 0.0
  %769 = vmatprep.subr.mxu0 0.0
  %770 = vmatpush1.msra.mxu0 0.0
  %771 = vmatprep.mubr.f32.mxu0 0.0
  %772 = vmatmul.mubr.f32.gmra.mrb[0].mxu0 %v704
  %v773 = vpop.f32.mrb[0].mxu0
  %v774 = vadd.f32 0.0, %v773
  %v775 = vpop.f32.mrb[0].mxu0
  %776 = vdwg.mxu0
  %v777 = vadd.f32 %v706, %v774
  %v778 = vmul.f32 %v777, 0.5
  %v779 = vtanh.pop %v778
  %v780 = vadd.f32 %v779, 1.0
  %v781 = vmul.f32 %v780, 0.5
  %s782 = scalar_lea.vmem %s0, 72
  %v783 = vld [vmem:[%s782] sm:$0xff]
  %784 = vmatprep.subr.mxu0 0.0
  %785 = vmatpush1.msra.mxu0 %v114
  %786 = vmatprep.subr.mxu0 0.0
  %787 = vmatpush1.msra.mxu0 %v115
  %788 = vmatprep.subr.mxu0 0.0
  %789 = vmatpush1.msra.mxu0 %v116
  %790 = vmatprep.subr.mxu0 0.0
  %791 = vmatpush1.msra.mxu0 %v117
  %792 = vmatprep.subr.mxu0 0.0
  %793 = vmatpush1.msra.mxu0 %v118
  %794 = vmatprep.subr.mxu0 0.0
  %795 = vmatpush1.msra.mxu0 %v119
  %796 = vmatprep.subr.mxu0 0.0
  %797 = vmatpush1.msra.mxu0 %v120
  %798 = vmatprep.subr.mxu0 0.0
  %799 = vmatpush1.msra.mxu0 %v121
  %800 = vmatprep.subr.mxu0 0.0
  %801 = vmatpush1.msra.mxu0 %v122
  %802 = vmatprep.subr.mxu0 0.0
  %803 = vmatpush1.msra.mxu0 %v123
  %804 = vmatprep.subr.mxu0 0.0
  %805 = vmatpush1.msra.mxu0 %v124
  %806 = vmatprep.subr.mxu0 0.0
  %807 = vmatpush1.msra.mxu0 %v125
  %808 = vmatprep.subr.mxu0 0.0
  %809 = vmatpush1.msra.mxu0 %v126
  %810 = vmatprep.subr.mxu0 0.0
  %811 = vmatpush1.msra.mxu0 %v127
  %812 = vmatprep.subr.mxu0 0.0
  %813 = vmatpush1.msra.mxu0 %v128
  %814 = vmatprep.subr.mxu0 0.0
  %815 = vmatpush1.msra.mxu0 %v129
  %816 = vmatprep.subr.mxu0 0.0
  %817 = vmatpush1.msra.mxu0 0.0
  %818 = vmatprep.subr.mxu0 0.0
  %819 = vmatpush1.msra.mxu0 0.0
  %820 = vmatprep.subr.mxu0 0.0
  %821 = vmatpush1.msra.mxu0 0.0
  %822 = vmatprep.subr.mxu0 0.0
  %823 = vmatpush1.msra.mxu0 0.0
  %824 = vmatprep.subr.mxu0 0.0
  %825 = vmatpush1.msra.mxu0 0.0
  %826 = vmatprep.subr.mxu0 0.0
  %827 = vmatpush1.msra.mxu0 0.0
  %828 = vmatprep.subr.mxu0 0.0
  %829 = vmatpush1.msra.mxu0 0.0
  %830 = vmatprep.subr.mxu0 0.0
  %831 = vmatpush1.msra.mxu0 0.0
  %832 = vmatprep.subr.mxu0 0.0
  %833 = vmatpush1.msra.mxu0 0.0
  %834 = vmatprep.subr.mxu0 0.0
  %835 = vmatpush1.msra.mxu0 0.0
  %836 = vmatprep.subr.mxu0 0.0
  %837 = vmatpush1.msra.mxu0 0.0
  %838 = vmatprep.subr.mxu0 0.0
  %839 = vmatpush1.msra.mxu0 0.0
  %840 = vmatprep.subr.mxu0 0.0
  %841 = vmatpush1.msra.mxu0 0.0
  %842 = vmatprep.subr.mxu0 0.0
  %843 = vmatpush1.msra.mxu0 0.0
  %844 = vmatprep.subr.mxu0 0.0
  %845 = vmatpush1.msra.mxu0 0.0
  %846 = vmatprep.subr.mxu0 0.0
  %847 = vmatpush1.msra.mxu0 0.0
  %848 = vmatprep.mubr.f32.mxu0 0.0
  %849 = vmatmul.mubr.f32.gmra.mrb[0].mxu0 %v704
  %v850 = vpop.f32.mrb[0].mxu0
  %v851 = vadd.f32 0.0, %v850
  %v852 = vpop.f32.mrb[0].mxu0
  %853 = vdwg.mxu0
  %v854 = vadd.f32 %v783, %v851
  %v855 = vmul.f32 %v854, 0.5
  %v856 = vtanh.pop %v855
  %v857 = vadd.f32 %v856, 1.0
  %v858 = vmul.f32 %v857, 0.5
  %s859 = scalar_lea.vmem %s0, 80
  %v860 = vld [vmem:[%s859] sm:$0xff]
  %861 = vmatprep.subr.mxu0 0.0
  %862 = vmatpush1.msra.mxu0 %v208
  %863 = vmatprep.subr.mxu0 0.0
  %864 = vmatpush1.msra.mxu0 %v209
  %865 = vmatprep.subr.mxu0 0.0
  %866 = vmatpush1.msra.mxu0 %v210
  %867 = vmatprep.subr.mxu0 0.0
  %868 = vmatpush1.msra.mxu0 %v211
  %869 = vmatprep.subr.mxu0 0.0
  %870 = vmatpush1.msra.mxu0 %v212
  %871 = vmatprep.subr.mxu0 0.0
  %872 = vmatpush1.msra.mxu0 %v213
  %873 = vmatprep.subr.mxu0 0.0
  %874 = vmatpush1.msra.mxu0 %v214
  %875 = vmatprep.subr.mxu0 0.0
  %876 = vmatpush1.msra.mxu0 %v215
  %877 = vmatprep.subr.mxu0 0.0
  %878 = vmatpush1.msra.mxu0 %v216
  %879 = vmatprep.subr.mxu0 0.0
  %880 = vmatpush1.msra.mxu0 %v217
  %881 = vmatprep.subr.mxu0 0.0
  %882 = vmatpush1.msra.mxu0 %v218
  %883 = vmatprep.subr.mxu0 0.0
  %884 = vmatpush1.msra.mxu0 %v219
  %885 = vmatprep.subr.mxu0 0.0
  %886 = vmatpush1.msra.mxu0 %v220
  %887 = vmatprep.subr.mxu0 0.0
  %888 = vmatpush1.msra.mxu0 %v221
  %889 = vmatprep.subr.mxu0 0.0
  %890 = vmatpush1.msra.mxu0 %v222
  %891 = vmatprep.subr.mxu0 0.0
  %892 = vmatpush1.msra.mxu0 %v223
  %893 = vmatprep.subr.mxu0 0.0
  %894 = vmatpush1.msra.mxu0 0.0
  %895 = vmatprep.subr.mxu0 0.0
  %896 = vmatpush1.msra.mxu0 0.0
  %897 = vmatprep.subr.mxu0 0.0
  %898 = vmatpush1.msra.mxu0 0.0
  %899 = vmatprep.subr.mxu0 0.0
  %900 = vmatpush1.msra.mxu0 0.0
  %901 = vmatprep.subr.mxu0 0.0
  %902 = vmatpush1.msra.mxu0 0.0
  %903 = vmatprep.subr.mxu0 0.0
  %904 = vmatpush1.msra.mxu0 0.0
  %905 = vmatprep.subr.mxu0 0.0
  %906 = vmatpush1.msra.mxu0 0.0
  %907 = vmatprep.subr.mxu0 0.0
  %908 = vmatpush1.msra.mxu0 0.0
  %909 = vmatprep.subr.mxu0 0.0
  %910 = vmatpush1.msra.mxu0 0.0
  %911 = vmatprep.subr.mxu0 0.0
  %912 = vmatpush1.msra.mxu0 0.0
  %913 = vmatprep.subr.mxu0 0.0
  %914 = vmatpush1.msra.mxu0 0.0
  %915 = vmatprep.subr.mxu0 0.0
  %916 = vmatpush1.msra.mxu0 0.0
  %917 = vmatprep.subr.mxu0 0.0
  %918 = vmatpush1.msra.mxu0 0.0
  %919 = vmatprep.subr.mxu0 0.0
  %920 = vmatpush1.msra.mxu0 0.0
  %921 = vmatprep.subr.mxu0 0.0
  %922 = vmatpush1.msra.mxu0 0.0
  %923 = vmatprep.subr.mxu0 0.0
  %924 = vmatpush1.msra.mxu0 0.0
  %925 = vmatprep.mubr.f32.mxu0 0.0
  %926 = vmatmul.mubr.f32.gmra.mrb[0].mxu0 %v704
  %v927 = vpop.f32.mrb[0].mxu0
  %v928 = vadd.f32 0.0, %v927
  %v929 = vpop.f32.mrb[0].mxu0
  %930 = vdwg.mxu0
  %v931 = vadd.f32 %v860, %v928
  %v932 = vtanh.pop %v931
  %s933 = scalar_lea.vmem %s0, 88
  %v934 = vld [vmem:[%s933] sm:$0xff]
  %935 = vmatprep.subr.mxu0 0.0
  %936 = vmatpush1.msra.mxu0 %v299
  %937 = vmatprep.subr.mxu0 0.0
  %938 = vmatpush1.msra.mxu0 %v300
  %939 = vmatprep.subr.mxu0 0.0
  %940 = vmatpush1.msra.mxu0 %v301
  %941 = vmatprep.subr.mxu0 0.0
  %942 = vmatpush1.msra.mxu0 %v302
  %943 = vmatprep.subr.mxu0 0.0
  %944 = vmatpush1.msra.mxu0 %v303
  %945 = vmatprep.subr.mxu0 0.0
  %946 = vmatpush1.msra.mxu0 %v304
  %947 = vmatprep.subr.mxu0 0.0
  %948 = vmatpush1.msra.mxu0 %v305
  %949 = vmatprep.subr.mxu0 0.0
  %950 = vmatpush1.msra.mxu0 %v306
  %951 = vmatprep.subr.mxu0 0.0
  %952 = vmatpush1.msra.mxu0 %v307
  %953 = vmatprep.subr.mxu0 0.0
  %954 = vmatpush1.msra.mxu0 %v308
  %955 = vmatprep.subr.mxu0 0.0
  %956 = vmatpush1.msra.mxu0 %v309
  %957 = vmatprep.subr.mxu0 0.0
  %958 = vmatpush1.msra.mxu0 %v310
  %959 = vmatprep.subr.mxu0 0.0
  %960 = vmatpush1.msra.mxu0 %v311
  %961 = vmatprep.subr.mxu0 0.0
  %962 = vmatpush1.msra.mxu0 %v312
  %963 = vmatprep.subr.mxu0 0.0
  %964 = vmatpush1.msra.mxu0 %v313
  %965 = vmatprep.subr.mxu0 0.0
  %966 = vmatpush1.msra.mxu0 %v314
  %967 = vmatprep.subr.mxu0 0.0
  %968 = vmatpush1.msra.mxu0 0.0
  %969 = vmatprep.subr.mxu0 0.0
  %970 = vmatpush1.msra.mxu0 0.0
  %971 = vmatprep.subr.mxu0 0.0
  %972 = vmatpush1.msra.mxu0 0.0
  %973 = vmatprep.subr.mxu0 0.0
  %974 = vmatpush1.msra.mxu0 0.0
  %975 = vmatprep.subr.mxu0 0.0
  %976 = vmatpush1.msra.mxu0 0.0
  %977 = vmatprep.subr.mxu0 0.0
  %978 = vmatpush1.msra.mxu0 0.0
  %979 = vmatprep.subr.mxu0 0.0
  %980 = vmatpush1.msra.mxu0 0.0
  %981 = vmatprep.subr.mxu0 0.0
  %982 = vmatpush1.msra.mxu0 0.0
  %983 = vmatprep.subr.mxu0 0.0
  %984 = vmatpush1.msra.mxu0 0.0
  %985 = vmatprep.subr.mxu0 0.0
  %986 = vmatpush1.msra.mxu0 0.0
  %987 = vmatprep.subr.mxu0 0.0
  %988 = vmatpush1.msra.mxu0 0.0
  %989 = vmatprep.subr.mxu0 0.0
  %990 = vmatpush1.msra.mxu0 0.0
  %991 = vmatprep.subr.mxu0 0.0
  %992 = vmatpush1.msra.mxu0 0.0
  %993 = vmatprep.subr.mxu0 0.0
  %994 = vmatpush1.msra.mxu0 0.0
  %995 = vmatprep.subr.mxu0 0.0
  %996 = vmatpush1.msra.mxu0 0.0
  %997 = vmatprep.subr.mxu0 0.0
  %998 = vmatpush1.msra.mxu0 0.0
  %999 = vmatprep.mubr.f32.mxu0 0.0
  %1000 = vmatmul.mubr.f32.gmra.mrb[0].mxu0 %v704
  %v1001 = vpop.f32.mrb[0].mxu0
  %v1002 = vadd.f32 0.0, %v1001
  %v1003 = vpop.f32.mrb[0].mxu0
  %1004 = vdwg.mxu0
  %v1005 = vadd.f32 %v934, %v1002
  %v1006 = vmul.f32 %v1005, 0.5
  %v1007 = vtanh.pop %v1006
  %v1008 = vadd.f32 %v1007, 1.0
  %v1009 = vmul.f32 %v1008, 0.5
  %v1010 = vmul.f32 %v858, %v702
  %v1011 = vmul.f32 %v781, %v932
  %v1012 = vadd.f32 %v1010, %v1011
  %v1013 = vtanh.pop %v1012
  %v1014 = vmul.f32 %v1009, %v1013
  %s1015 = scalar_lea.vmem %s0, 96
  %v1016 = vld [vmem:[%s1015] sm:$0xff]
  %1017 = vmatprep.subr.mxu0 0.0
  %1018 = vmatpush1.msra.mxu0 %v20
  %1019 = vmatprep.subr.mxu0 0.0
  %1020 = vmatpush1.msra.mxu0 %v21
  %1021 = vmatprep.subr.mxu0 0.0
  %1022 = vmatpush1.msra.mxu0 %v22
  %1023 = vmatprep.subr.mxu0 0.0
  %1024 = vmatpush1.msra.mxu0 %v23
  %1025 = vmatprep.subr.mxu0 0.0
  %1026 = vmatpush1.msra.mxu0 %v24
  %1027 = vmatprep.subr.mxu0 0.0
  %1028 = vmatpush1.msra.mxu0 %v25
  %1029 = vmatprep.subr.mxu0 0.0
  %1030 = vmatpush1.msra.mxu0 %v26
  %1031 = vmatprep.subr.mxu0 0.0
  %1032 = vmatpush1.msra.mxu0 %v27
  %1033 = vmatprep.subr.mxu0 0.0
  %1034 = vmatpush1.msra.mxu0 %v28
  %1035 = vmatprep.subr.mxu0 0.0
  %1036 = vmatpush1.msra.mxu0 %v29
  %1037 = vmatprep.subr.mxu0 0.0
  %1038 = vmatpush1.msra.mxu0 %v30
  %1039 = vmatprep.subr.mxu0 0.0
  %1040 = vmatpush1.msra.mxu0 %v31
  %1041 = vmatprep.subr.mxu0 0.0
  %1042 = vmatpush1.msra.mxu0 %v32
  %1043 = vmatprep.subr.mxu0 0.0
  %1044 = vmatpush1.msra.mxu0 %v33
  %1045 = vmatprep.subr.mxu0 0.0
  %1046 = vmatpush1.msra.mxu0 %v34
  %1047 = vmatprep.subr.mxu0 0.0
  %1048 = vmatpush1.msra.mxu0 %v35
  %1049 = vmatprep.subr.mxu0 0.0
  %1050 = vmatpush1.msra.mxu0 0.0
  %1051 = vmatprep.subr.mxu0 0.0
  %1052 = vmatpush1.msra.mxu0 0.0
  %1053 = vmatprep.subr.mxu0 0.0
  %1054 = vmatpush1.msra.mxu0 0.0
  %1055 = vmatprep.subr.mxu0 0.0
  %1056 = vmatpush1.msra.mxu0 0.0
  %1057 = vmatprep.subr.mxu0 0.0
  %1058 = vmatpush1.msra.mxu0 0.0
  %1059 = vmatprep.subr.mxu0 0.0
  %1060 = vmatpush1.msra.mxu0 0.0
  %1061 = vmatprep.subr.mxu0 0.0
  %1062 = vmatpush1.msra.mxu0 0.0
  %1063 = vmatprep.subr.mxu0 0.0
  %1064 = vmatpush1.msra.mxu0 0.0
  %1065 = vmatprep.subr.mxu0 0.0
  %1066 = vmatpush1.msra.mxu0 0.0
  %1067 = vmatprep.subr.mxu0 0.0
  %1068 = vmatpush1.msra.mxu0 0.0
  %1069 = vmatprep.subr.mxu0 0.0
  %1070 = vmatpush1.msra.mxu0 0.0
  %1071 = vmatprep.subr.mxu0 0.0
  %1072 = vmatpush1.msra.mxu0 0.0
  %1073 = vmatprep.subr.mxu0 0.0
  %1074 = vmatpush1.msra.mxu0 0.0
  %1075 = vmatprep.subr.mxu0 0.0
  %1076 = vmatpush1.msra.mxu0 0.0
  %1077 = vmatprep.subr.mxu0 0.0
  %1078 = vmatpush1.msra.mxu0 0.0
  %1079 = vmatprep.subr.mxu0 0.0
  %1080 = vmatpush1.msra.mxu0 0.0
  %1081 = vmatprep.mubr.f32.mxu0 0.0
  %1082 = vmatmul.mubr.f32.gmra.mrb[0].mxu0 %v1014
  %v1083 = vpop.f32.mrb[0].mxu0
  %v1084 = vadd.f32 0.0, %v1083
  %v1085 = vpop.f32.mrb[0].mxu0
  %1086 = vdwg.mxu0
  %v1087 = vadd.f32 %v1016, %v1084
  %v1088 = vmul.f32 %v1087, 0.5
  %v1089 = vtanh.pop %v1088
  %v1090 = vadd.f32 %v1089, 1.0
  %v1091 = vmul.f32 %v1090, 0.5
  %s1092 = scalar_lea.vmem %s0, 104
  %v1093 = vld [vmem:[%s1092] sm:$0xff]
  %1094 = vmatprep.subr.mxu0 0.0
  %1095 = vmatpush1.msra.mxu0 %v114
  %1096 = vmatprep.subr.mxu0 0.0
  %1097 = vmatpush1.msra.mxu0 %v115
  %1098 = vmatprep.subr.mxu0 0.0
  %1099 = vmatpush1.msra.mxu0 %v116
  %1100 = vmatprep.subr.mxu0 0.0
  %1101 = vmatpush1.msra.mxu0 %v117
  %1102 = vmatprep.subr.mxu0 0.0
  %1103 = vmatpush1.msra.mxu0 %v118
  %1104 = vmatprep.subr.mxu0 0.0
  %1105 = vmatpush1.msra.mxu0 %v119
  %1106 = vmatprep.subr.mxu0 0.0
  %1107 = vmatpush1.msra.mxu0 %v120
  %1108 = vmatprep.subr.mxu0 0.0
  %1109 = vmatpush1.msra.mxu0 %v121
  %1110 = vmatprep.subr.mxu0 0.0
  %1111 = vmatpush1.msra.mxu0 %v122
  %1112 = vmatprep.subr.mxu0 0.0
  %1113 = vmatpush1.msra.mxu0 %v123
  %1114 = vmatprep.subr.mxu0 0.0
  %1115 = vmatpush1.msra.mxu0 %v124
  %1116 = vmatprep.subr.mxu0 0.0
  %1117 = vmatpush1.msra.mxu0 %v125
  %1118 = vmatprep.subr.mxu0 0.0
  %1119 = vmatpush1.msra.mxu0 %v126
  %1120 = vmatprep.subr.mxu0 0.0
  %1121 = vmatpush1.msra.mxu0 %v127
  %1122 = vmatprep.subr.mxu0 0.0
  %1123 = vmatpush1.msra.mxu0 %v128
  %1124 = vmatprep.subr.mxu0 0.0
  %1125 = vmatpush1.msra.mxu0 %v129
  %1126 = vmatprep.subr.mxu0 0.0
  %1127 = vmatpush1.msra.mxu0 0.0
  %1128 = vmatprep.subr.mxu0 0.0
  %1129 = vmatpush1.msra.mxu0 0.0
  %1130 = vmatprep.subr.mxu0 0.0
  %1131 = vmatpush1.msra.mxu0 0.0
  %1132 = vmatprep.subr.mxu0 0.0
  %1133 = vmatpush1.msra.mxu0 0.0
  %1134 = vmatprep.subr.mxu0 0.0
  %1135 = vmatpush1.msra.mxu0 0.0
  %1136 = vmatprep.subr.mxu0 0.0
  %1137 = vmatpush1.msra.mxu0 0.0
  %1138 = vmatprep.subr.mxu0 0.0
  %1139 = vmatpush1.msra.mxu0 0.0
  %1140 = vmatprep.subr.mxu0 0.0
  %1141 = vmatpush1.msra.mxu0 0.0
  %1142 = vmatprep.subr.mxu0 0.0
  %1143 = vmatpush1.msra.mxu0 0.0
  %1144 = vmatprep.subr.mxu0 0.0
  %1145 = vmatpush1.msra.mxu0 0.0
  %1146 = vmatprep.subr.mxu0 0.0
  %1147 = vmatpush1.msra.mxu0 0.0
  %1148 = vmatprep.subr.mxu0 0.0
  %1149 = vmatpush1.msra.mxu0 0.0
  %1150 = vmatprep.subr.mxu0 0.0
  %1151 = vmatpush1.msra.mxu0 0.0
  %1152 = vmatprep.subr.mxu0 0.0
  %1153 = vmatpush1.msra.mxu0 0.0
  %1154 = vmatprep.subr.mxu0 0.0
  %1155 = vmatpush1.msra.mxu0 0.0
  %1156 = vmatprep.subr.mxu0 0.0
  %1157 = vmatpush1.msra.mxu0 0.0
  %1158 = vmatprep.mubr.f32.mxu0 0.0
  %1159 = vmatmul.mubr.f32.gmra.mrb[0].mxu0 %v1014
  %v1160 = vpop.f32.mrb[0].mxu0
  %v1161 = vadd.f32 0.0, %v1160
  %v1162 = vpop.f32.mrb[0].mxu0
  %1163 = vdwg.mxu0
  %v1164 = vadd.f32 %v1093, %v1161
  %v1165 = vmul.f32 %v1164, 0.5
  %v1166 = vtanh.pop %v1165
  %v1167 = vadd.f32 %v1166, 1.0
  %v1168 = vmul.f32 %v1167, 0.5
  %s1169 = scalar_lea.vmem %s0, 112
  %v1170 = vld [vmem:[%s1169] sm:$0xff]
  %1171 = vmatprep.subr.mxu0 0.0
  %1172 = vmatpush1.msra.mxu0 %v208
  %1173 = vmatprep.subr.mxu0 0.0
  %1174 = vmatpush1.msra.mxu0 %v209
  %1175 = vmatprep.subr.mxu0 0.0
  %1176 = vmatpush1.msra.mxu0 %v210
  %1177 = vmatprep.subr.mxu0 0.0
  %1178 = vmatpush1.msra.mxu0 %v211
  %1179 = vmatprep.subr.mxu0 0.0
  %1180 = vmatpush1.msra.mxu0 %v212
  %1181 = vmatprep.subr.mxu0 0.0
  %1182 = vmatpush1.msra.mxu0 %v213
  %1183 = vmatprep.subr.mxu0 0.0
  %1184 = vmatpush1.msra.mxu0 %v214
  %1185 = vmatprep.subr.mxu0 0.0
  %1186 = vmatpush1.msra.mxu0 %v215
  %1187 = vmatprep.subr.mxu0 0.0
  %1188 = vmatpush1.msra.mxu0 %v216
  %1189 = vmatprep.subr.mxu0 0.0
  %1190 = vmatpush1.msra.mxu0 %v217
  %1191 = vmatprep.subr.mxu0 0.0
  %1192 = vmatpush1.msra.mxu0 %v218
  %1193 = vmatprep.subr.mxu0 0.0
  %1194 = vmatpush1.msra.mxu0 %v219
  %1195 = vmatprep.subr.mxu0 0.0
  %1196 = vmatpush1.msra.mxu0 %v220
  %1197 = vmatprep.subr.mxu0 0.0
  %1198 = vmatpush1.msra.mxu0 %v221
  %1199 = vmatprep.subr.mxu0 0.0
  %1200 = vmatpush1.msra.mxu0 %v222
  %1201 = vmatprep.subr.mxu0 0.0
  %1202 = vmatpush1.msra.mxu0 %v223
  %1203 = vmatprep.subr.mxu0 0.0
  %1204 = vmatpush1.msra.mxu0 0.0
  %1205 = vmatprep.subr.mxu0 0.0
  %1206 = vmatpush1.msra.mxu0 0.0
  %1207 = vmatprep.subr.mxu0 0.0
  %1208 = vmatpush1.msra.mxu0 0.0
  %1209 = vmatprep.subr.mxu0 0.0
  %1210 = vmatpush1.msra.mxu0 0.0
  %1211 = vmatprep.subr.mxu0 0.0
  %1212 = vmatpush1.msra.mxu0 0.0
  %1213 = vmatprep.subr.mxu0 0.0
  %1214 = vmatpush1.msra.mxu0 0.0
  %1215 = vmatprep.subr.mxu0 0.0
  %1216 = vmatpush1.msra.mxu0 0.0
  %1217 = vmatprep.subr.mxu0 0.0
  %1218 = vmatpush1.msra.mxu0 0.0
  %1219 = vmatprep.subr.mxu0 0.0
  %1220 = vmatpush1.msra.mxu0 0.0
  %1221 = vmatprep.subr.mxu0 0.0
  %1222 = vmatpush1.msra.mxu0 0.0
  %1223 = vmatprep.subr.mxu0 0.0
  %1224 = vmatpush1.msra.mxu0 0.0
  %1225 = vmatprep.subr.mxu0 0.0
  %1226 = vmatpush1.msra.mxu0 0.0
  %1227 = vmatprep.subr.mxu0 0.0
  %1228 = vmatpush1.msra.mxu0 0.0
  %1229 = vmatprep.subr.mxu0 0.0
  %1230 = vmatpush1.msra.mxu0 0.0
  %1231 = vmatprep.subr.mxu0 0.0
  %1232 = vmatpush1.msra.mxu0 0.0
  %1233 = vmatprep.subr.mxu0 0.0
  %1234 = vmatpush1.msra.mxu0 0.0
  %1235 = vmatprep.mubr.f32.mxu0 0.0
  %1236 = vmatmul.mubr.f32.gmra.mrb[0].mxu0 %v1014
  %v1237 = vpop.f32.mrb[0].mxu0
  %v1238 = vadd.f32 0.0, %v1237
  %v1239 = vpop.f32.mrb[0].mxu0
  %1240 = vdwg.mxu0
  %v1241 = vadd.f32 %v1170, %v1238
  %v1242 = vtanh.pop %v1241
  %s1243 = scalar_lea.vmem %s0, 120
  %v1244 = vld [vmem:[%s1243] sm:$0xff]
  %1245 = vmatprep.subr.mxu0 0.0
  %1246 = vmatpush1.msra.mxu0 %v299
  %1247 = vmatprep.subr.mxu0 0.0
  %1248 = vmatpush1.msra.mxu0 %v300
  %1249 = vmatprep.subr.mxu0 0.0
  %1250 = vmatpush1.msra.mxu0 %v301
  %1251 = vmatprep.subr.mxu0 0.0
  %1252 = vmatpush1.msra.mxu0 %v302
  %1253 = vmatprep.subr.mxu0 0.0
  %1254 = vmatpush1.msra.mxu0 %v303
  %1255 = vmatprep.subr.mxu0 0.0
  %1256 = vmatpush1.msra.mxu0 %v304
  %1257 = vmatprep.subr.mxu0 0.0
  %1258 = vmatpush1.msra.mxu0 %v305
  %1259 = vmatprep.subr.mxu0 0.0
  %1260 = vmatpush1.msra.mxu0 %v306
  %1261 = vmatprep.subr.mxu0 0.0
  %1262 = vmatpush1.msra.mxu0 %v307
  %1263 = vmatprep.subr.mxu0 0.0
  %1264 = vmatpush1.msra.mxu0 %v308
  %1265 = vmatprep.subr.mxu0 0.0
  %1266 = vmatpush1.msra.mxu0 %v309
  %1267 = vmatprep.subr.mxu0 0.0
  %1268 = vmatpush1.msra.mxu0 %v310
  %1269 = vmatprep.subr.mxu0 0.0
  %1270 = vmatpush1.msra.mxu0 %v311
  %1271 = vmatprep.subr.mxu0 0.0
  %1272 = vmatpush1.msra.mxu0 %v312
  %1273 = vmatprep.subr.mxu0 0.0
  %1274 = vmatpush1.msra.mxu0 %v313
  %1275 = vmatprep.subr.mxu0 0.0
  %1276 = vmatpush1.msra.mxu0 %v314
  %1277 = vmatprep.subr.mxu0 0.0
  %1278 = vmatpush1.msra.mxu0 0.0
  %1279 = vmatprep.subr.mxu0 0.0
  %1280 = vmatpush1.msra.mxu0 0.0
  %1281 = vmatprep.subr.mxu0 0.0
  %1282 = vmatpush1.msra.mxu0 0.0
  %1283 = vmatprep.subr.mxu0 0.0
  %1284 = vmatpush1.msra.mxu0 0.0
  %1285 = vmatprep.subr.mxu0 0.0
  %1286 = vmatpush1.msra.mxu0 0.0
  %1287 = vmatprep.subr.mxu0 0.0
  %1288 = vmatpush1.msra.mxu0 0.0
  %1289 = vmatprep.subr.mxu0 0.0
  %1290 = vmatpush1.msra.mxu0 0.0
  %1291 = vmatprep.subr.mxu0 0.0
  %1292 = vmatpush1.msra.mxu0 0.0
  %1293 = vmatprep.subr.mxu0 0.0
  %1294 = vmatpush1.msra.mxu0 0.0
  %1295 = vmatprep.subr.mxu0 0.0
  %1296 = vmatpush1.msra.mxu0 0.0
  %1297 = vmatprep.subr.mxu0 0.0
  %1298 = vmatpush1.msra.mxu0 0.0
  %1299 = vmatprep.subr.mxu0 0.0
  %1300 = vmatpush1.msra.mxu0 0.0
  %1301 = vmatprep.subr.mxu0 0.0
  %1302 = vmatpush1.msra.mxu0 0.0
  %1303 = vmatprep.subr.mxu0 0.0
  %1304 = vmatpush1.msra.mxu0 0.0
  %1305 = vmatprep.subr.mxu0 0.0
  %1306 = vmatpush1.msra.mxu0 0.0
  %1307 = vmatprep.subr.mxu0 0.0
  %1308 = vmatpush1.msra.mxu0 0.0
  %1309 = vmatprep.mubr.f32.mxu0 0.0
  %1310 = vmatmul.mubr.f32.gmra.mrb[0].mxu0 %v1014
  %v1311 = vpop.f32.mrb[0].mxu0
  %v1312 = vadd.f32 0.0, %v1311
  %v1313 = vpop.f32.mrb[0].mxu0
  %1314 = vdwg.mxu0
  %v1315 = vadd.f32 %v1244, %v1312
  %v1316 = vmul.f32 %v1315, 0.5
  %v1317 = vtanh.pop %v1316
  %v1318 = vadd.f32 %v1317, 1.0
  %v1319 = vmul.f32 %v1318, 0.5
  %v1320 = vmul.f32 %v1168, %v1012
  %v1321 = vmul.f32 %v1091, %v1242
  %v1322 = vadd.f32 %v1320, %v1321
  %v1323 = vtanh.pop %v1322
  %v1324 = vmul.f32 %v1319, %v1323
  %s1325 = scalar_lea.vmem %s0, 128
  %v1326 = vld [vmem:[%s1325] sm:$0xff]
  %1327 = vmatprep.subr.mxu0 0.0
  %1328 = vmatpush1.msra.mxu0 %v20
  %1329 = vmatprep.subr.mxu0 0.0
  %1330 = vmatpush1.msra.mxu0 %v21
  %1331 = vmatprep.subr.mxu0 0.0
  %1332 = vmatpush1.msra.mxu0 %v22
  %1333 = vmatprep.subr.mxu0 0.0
  %1334 = vmatpush1.msra.mxu0 %v23
  %1335 = vmatprep.subr.mxu0 0.0
  %1336 = vmatpush1.msra.mxu0 %v24
  %1337 = vmatprep.subr.mxu0 0.0
  %1338 = vmatpush1.msra.mxu0 %v25
  %1339 = vmatprep.subr.mxu0 0.0
  %1340 = vmatpush1.msra.mxu0 %v26
  %1341 = vmatprep.subr.mxu0 0.0
  %1342 = vmatpush1.msra.mxu0 %v27
  %1343 = vmatprep.subr.mxu0 0.0
  %1344 = vmatpush1.msra.mxu0 %v28
  %1345 = vmatprep.subr.mxu0 0.0
  %1346 = vmatpush1.msra.mxu0 %v29
  %1347 = vmatprep.subr.mxu0 0.0
  %1348 = vmatpush1.msra.mxu0 %v30
  %1349 = vmatprep.subr.mxu0 0.0
  %1350 = vmatpush1.msra.mxu0 %v31
  %1351 = vmatprep.subr.mxu0 0.0
  %1352 = vmatpush1.msra.mxu0 %v32
  %1353 = vmatprep.subr.mxu0 0.0
  %1354 = vmatpush1.msra.mxu0 %v33
  %1355 = vmatprep.subr.mxu0 0.0
  %1356 = vmatpush1.msra.mxu0 %v34
  %1357 = vmatprep.subr.mxu0 0.0
  %1358 = vmatpush1.msra.mxu0 %v35
  %1359 = vmatprep.subr.mxu0 0.0
  %1360 = vmatpush1.msra.mxu0 0.0
  %1361 = vmatprep.subr.mxu0 0.0
  %1362 = vmatpush1.msra.mxu0 0.0
  %1363 = vmatprep.subr.mxu0 0.0
  %1364 = vmatpush1.msra.mxu0 0.0
  %1365 = vmatprep.subr.mxu0 0.0
  %1366 = vmatpush1.msra.mxu0 0.0
  %1367 = vmatprep.subr.mxu0 0.0
  %1368 = vmatpush1.msra.mxu0 0.0
  %1369 = vmatprep.subr.mxu0 0.0
  %1370 = vmatpush1.msra.mxu0 0.0
  %1371 = vmatprep.subr.mxu0 0.0
  %1372 = vmatpush1.msra.mxu0 0.0
  %1373 = vmatprep.subr.mxu0 0.0
  %1374 = vmatpush1.msra.mxu0 0.0
  %1375 = vmatprep.subr.mxu0 0.0
  %1376 = vmatpush1.msra.mxu0 0.0
  %1377 = vmatprep.subr.mxu0 0.0
  %1378 = vmatpush1.msra.mxu0 0.0
  %1379 = vmatprep.subr.mxu0 0.0
  %1380 = vmatpush1.msra.mxu0 0.0
  %1381 = vmatprep.subr.mxu0 0.0
  %1382 = vmatpush1.msra.mxu0 0.0
  %1383 = vmatprep.subr.mxu0 0.0
  %1384 = vmatpush1.msra.mxu0 0.0
  %1385 = vmatprep.subr.mxu0 0.0
  %1386 = vmatpush1.msra.mxu0 0.0
  %1387 = vmatprep.subr.mxu0 0.0
  %1388 = vmatpush1.msra.mxu0 0.0
  %1389 = vmatprep.subr.mxu0 0.0
  %1390 = vmatpush1.msra.mxu0 0.0
  %1391 = vmatprep.mubr.f32.mxu0 0.0
  %1392 = vmatmul.mubr.f32.gmra.mrb[0].mxu0 %v1324
  %v1393 = vpop.f32.mrb[0].mxu0
  %v1394 = vadd.f32 0.0, %v1393
  %v1395 = vpop.f32.mrb[0].mxu0
  %1396 = vdwg.mxu0
  %v1397 = vadd.f32 %v1326, %v1394
  %v1398 = vmul.f32 %v1397, 0.5
  %v1399 = vtanh.pop %v1398
  %v1400 = vadd.f32 %v1399, 1.0
  %v1401 = vmul.f32 %v1400, 0.5
  %s1402 = scalar_lea.vmem %s0, 136
  %v1403 = vld [vmem:[%s1402] sm:$0xff]
  %1404 = vmatprep.subr.mxu0 0.0
  %1405 = vmatpush1.msra.mxu0 %v114
  %1406 = vmatprep.subr.mxu0 0.0
  %1407 = vmatpush1.msra.mxu0 %v115
  %1408 = vmatprep.subr.mxu0 0.0
  %1409 = vmatpush1.msra.mxu0 %v116
  %1410 = vmatprep.subr.mxu0 0.0
  %1411 = vmatpush1.msra.mxu0 %v117
  %1412 = vmatprep.subr.mxu0 0.0
  %1413 = vmatpush1.msra.mxu0 %v118
  %1414 = vmatprep.subr.mxu0 0.0
  %1415 = vmatpush1.msra.mxu0 %v119
  %1416 = vmatprep.subr.mxu0 0.0
  %1417 = vmatpush1.msra.mxu0 %v120
  %1418 = vmatprep.subr.mxu0 0.0
  %1419 = vmatpush1.msra.mxu0 %v121
  %1420 = vmatprep.subr.mxu0 0.0
  %1421 = vmatpush1.msra.mxu0 %v122
  %1422 = vmatprep.subr.mxu0 0.0
  %1423 = vmatpush1.msra.mxu0 %v123
  %1424 = vmatprep.subr.mxu0 0.0
  %1425 = vmatpush1.msra.mxu0 %v124
  %1426 = vmatprep.subr.mxu0 0.0
  %1427 = vmatpush1.msra.mxu0 %v125
  %1428 = vmatprep.subr.mxu0 0.0
  %1429 = vmatpush1.msra.mxu0 %v126
  %1430 = vmatprep.subr.mxu0 0.0
  %1431 = vmatpush1.msra.mxu0 %v127
  %1432 = vmatprep.subr.mxu0 0.0
  %1433 = vmatpush1.msra.mxu0 %v128
  %1434 = vmatprep.subr.mxu0 0.0
  %1435 = vmatpush1.msra.mxu0 %v129
  %1436 = vmatprep.subr.mxu0 0.0
  %1437 = vmatpush1.msra.mxu0 0.0
  %1438 = vmatprep.subr.mxu0 0.0
  %1439 = vmatpush1.msra.mxu0 0.0
  %1440 = vmatprep.subr.mxu0 0.0
  %1441 = vmatpush1.msra.mxu0 0.0
  %1442 = vmatprep.subr.mxu0 0.0
  %1443 = vmatpush1.msra.mxu0 0.0
  %1444 = vmatprep.subr.mxu0 0.0
  %1445 = vmatpush1.msra.mxu0 0.0
  %1446 = vmatprep.subr.mxu0 0.0
  %1447 = vmatpush1.msra.mxu0 0.0
  %1448 = vmatprep.subr.mxu0 0.0
  %1449 = vmatpush1.msra.mxu0 0.0
  %1450 = vmatprep.subr.mxu0 0.0
  %1451 = vmatpush1.msra.mxu0 0.0
  %1452 = vmatprep.subr.mxu0 0.0
  %1453 = vmatpush1.msra.mxu0 0.0
  %1454 = vmatprep.subr.mxu0 0.0
  %1455 = vmatpush1.msra.mxu0 0.0
  %1456 = vmatprep.subr.mxu0 0.0
  %1457 = vmatpush1.msra.mxu0 0.0
  %1458 = vmatprep.subr.mxu0 0.0
  %1459 = vmatpush1.msra.mxu0 0.0
  %1460 = vmatprep.subr.mxu0 0.0
  %1461 = vmatpush1.msra.mxu0 0.0
  %1462 = vmatprep.subr.mxu0 0.0
  %1463 = vmatpush1.msra.mxu0 0.0
  %1464 = vmatprep.subr.mxu0 0.0
  %1465 = vmatpush1.msra.mxu0 0.0
  %1466 = vmatprep.subr.mxu0 0.0
  %1467 = vmatpush1.msra.mxu0 0.0
  %1468 = vmatprep.mubr.f32.mxu0 0.0
  %1469 = vmatmul.mubr.f32.gmra.mrb[0].mxu0 %v1324
  %v1470 = vpop.f32.mrb[0].mxu0
  %v1471 = vadd.f32 0.0, %v1470
  %v1472 = vpop.f32.mrb[0].mxu0
  %1473 = vdwg.mxu0
  %v1474 = vadd.f32 %v1403, %v1471
  %v1475 = vmul.f32 %v1474, 0.5
  %v1476 = vtanh.pop %v1475
  %v1477 = vadd.f32 %v1476, 1.0
  %v1478 = vmul.f32 %v1477, 0.5
  %s1479 = scalar_lea.vmem %s0, 144
  %v1480 = vld [vmem:[%s1479] sm:$0xff]
  %1481 = vmatprep.subr.mxu0 0.0
  %1482 = vmatpush1.msra.mxu0 %v208
  %1483 = vmatprep.subr.mxu0 0.0
  %1484 = vmatpush1.msra.mxu0 %v209
  %1485 = vmatprep.subr.mxu0 0.0
  %1486 = vmatpush1.msra.mxu0 %v210
  %1487 = vmatprep.subr.mxu0 0.0
  %1488 = vmatpush1.msra.mxu0 %v211
  %1489 = vmatprep.subr.mxu0 0.0
  %1490 = vmatpush1.msra.mxu0 %v212
  %1491 = vmatprep.subr.mxu0 0.0
  %1492 = vmatpush1.msra.mxu0 %v213
  %1493 = vmatprep.subr.mxu0 0.0
  %1494 = vmatpush1.msra.mxu0 %v214
  %1495 = vmatprep.subr.mxu0 0.0
  %1496 = vmatpush1.msra.mxu0 %v215
  %1497 = vmatprep.subr.mxu0 0.0
  %1498 = vmatpush1.msra.mxu0 %v216
  %1499 = vmatprep.subr.mxu0 0.0
  %1500 = vmatpush1.msra.mxu0 %v217
  %1501 = vmatprep.subr.mxu0 0.0
  %1502 = vmatpush1.msra.mxu0 %v218
  %1503 = vmatprep.subr.mxu0 0.0
  %1504 = vmatpush1.msra.mxu0 %v219
  %1505 = vmatprep.subr.mxu0 0.0
  %1506 = vmatpush1.msra.mxu0 %v220
  %1507 = vmatprep.subr.mxu0 0.0
  %1508 = vmatpush1.msra.mxu0 %v221
  %1509 = vmatprep.subr.mxu0 0.0
  %1510 = vmatpush1.msra.mxu0 %v222
  %1511 = vmatprep.subr.mxu0 0.0
  %1512 = vmatpush1.msra.mxu0 %v223
  %1513 = vmatprep.subr.mxu0 0.0
  %1514 = vmatpush1.msra.mxu0 0.0
  %1515 = vmatprep.subr.mxu0 0.0
  %1516 = vmatpush1.msra.mxu0 0.0
  %1517 = vmatprep.subr.mxu0 0.0
  %1518 = vmatpush1.msra.mxu0 0.0
  %1519 = vmatprep.subr.mxu0 0.0
  %1520 = vmatpush1.msra.mxu0 0.0
  %1521 = vmatprep.subr.mxu0 0.0
  %1522 = vmatpush1.msra.mxu0 0.0
  %1523 = vmatprep.subr.mxu0 0.0
  %1524 = vmatpush1.msra.mxu0 0.0
  %1525 = vmatprep.subr.mxu0 0.0
  %1526 = vmatpush1.msra.mxu0 0.0
  %1527 = vmatprep.subr.mxu0 0.0
  %1528 = vmatpush1.msra.mxu0 0.0
  %1529 = vmatprep.subr.mxu0 0.0
  %1530 = vmatpush1.msra.mxu0 0.0
  %1531 = vmatprep.subr.mxu0 0.0
  %1532 = vmatpush1.msra.mxu0 0.0
  %1533 = vmatprep.subr.mxu0 0.0
  %1534 = vmatpush1.msra.mxu0 0.0
  %1535 = vmatprep.subr.mxu0 0.0
  %1536 = vmatpush1.msra.mxu0 0.0
  %1537 = vmatprep.subr.mxu0 0.0
  %1538 = vmatpush1.msra.mxu0 0.0
  %1539 = vmatprep.subr.mxu0 0.0
  %1540 = vmatpush1.msra.mxu0 0.0
  %1541 = vmatprep.subr.mxu0 0.0
  %1542 = vmatpush1.msra.mxu0 0.0
  %1543 = vmatprep.subr.mxu0 0.0
  %1544 = vmatpush1.msra.mxu0 0.0
  %1545 = vmatprep.mubr.f32.mxu0 0.0
  %1546 = vmatmul.mubr.f32.gmra.mrb[0].mxu0 %v1324
  %v1547 = vpop.f32.mrb[0].mxu0
  %v1548 = vadd.f32 0.0, %v1547
  %v1549 = vpop.f32.mrb[0].mxu0
  %1550 = vdwg.mxu0
  %v1551 = vadd.f32 %v1480, %v1548
  %v1552 = vtanh.pop %v1551
  %s1553 = scalar_lea.vmem %s0, 152
  %v1554 = vld [vmem:[%s1553] sm:$0xff]
  %1555 = vmatprep.subr.mxu0 0.0
  %1556 = vmatpush1.msra.mxu0 %v299
  %1557 = vmatprep.subr.mxu0 0.0
  %1558 = vmatpush1.msra.mxu0 %v300
  %1559 = vmatprep.subr.mxu0 0.0
  %1560 = vmatpush1.msra.mxu0 %v301
  %1561 = vmatprep.subr.mxu0 0.0
  %1562 = vmatpush1.msra.mxu0 %v302
  %1563 = vmatprep.subr.mxu0 0.0
  %1564 = vmatpush1.msra.mxu0 %v303
  %1565 = vmatprep.subr.mxu0 0.0
  %1566 = vmatpush1.msra.mxu0 %v304
  %1567 = vmatprep.subr.mxu0 0.0
  %1568 = vmatpush1.msra.mxu0 %v305
  %1569 = vmatprep.subr.mxu0 0.0
  %1570 = vmatpush1.msra.mxu0 %v306
  %1571 = vmatprep.subr.mxu0 0.0
  %1572 = vmatpush1.msra.mxu0 %v307
  %1573 = vmatprep.subr.mxu0 0.0
  %1574 = vmatpush1.msra.mxu0 %v308
  %1575 = vmatprep.subr.mxu0 0.0
  %1576 = vmatpush1.msra.mxu0 %v309
  %1577 = vmatprep.subr.mxu0 0.0
  %1578 = vmatpush1.msra.mxu0 %v310
  %1579 = vmatprep.subr.mxu0 0.0
  %1580 = vmatpush1.msra.mxu0 %v311
  %1581 = vmatprep.subr.mxu0 0.0
  %1582 = vmatpush1.msra.mxu0 %v312
  %1583 = vmatprep.subr.mxu0 0.0
  %1584 = vmatpush1.msra.mxu0 %v313
  %1585 = vmatprep.subr.mxu0 0.0
  %1586 = vmatpush1.msra.mxu0 %v314
  %1587 = vmatprep.subr.mxu0 0.0
  %1588 = vmatpush1.msra.mxu0 0.0
  %1589 = vmatprep.subr.mxu0 0.0
  %1590 = vmatpush1.msra.mxu0 0.0
  %1591 = vmatprep.subr.mxu0 0.0
  %1592 = vmatpush1.msra.mxu0 0.0
  %1593 = vmatprep.subr.mxu0 0.0
  %1594 = vmatpush1.msra.mxu0 0.0
  %1595 = vmatprep.subr.mxu0 0.0
  %1596 = vmatpush1.msra.mxu0 0.0
  %1597 = vmatprep.subr.mxu0 0.0
  %1598 = vmatpush1.msra.mxu0 0.0
  %1599 = vmatprep.subr.mxu0 0.0
  %1600 = vmatpush1.msra.mxu0 0.0
  %1601 = vmatprep.subr.mxu0 0.0
  %1602 = vmatpush1.msra.mxu0 0.0
  %1603 = vmatprep.subr.mxu0 0.0
  %1604 = vmatpush1.msra.mxu0 0.0
  %1605 = vmatprep.subr.mxu0 0.0
  %1606 = vmatpush1.msra.mxu0 0.0
  %1607 = vmatprep.subr.mxu0 0.0
  %1608 = vmatpush1.msra.mxu0 0.0
  %1609 = vmatprep.subr.mxu0 0.0
  %1610 = vmatpush1.msra.mxu0 0.0
  %1611 = vmatprep.subr.mxu0 0.0
  %1612 = vmatpush1.msra.mxu0 0.0
  %1613 = vmatprep.subr.mxu0 0.0
  %1614 = vmatpush1.msra.mxu0 0.0
  %1615 = vmatprep.subr.mxu0 0.0
  %1616 = vmatpush1.msra.mxu0 0.0
  %1617 = vmatprep.subr.mxu0 0.0
  %1618 = vmatpush1.msra.mxu0 0.0
  %1619 = vmatprep.mubr.f32.mxu0 0.0
  %1620 = vmatmul.mubr.f32.gmra.mrb[0].mxu0 %v1324
  %v1621 = vpop.f32.mrb[0].mxu0
  %v1622 = vadd.f32 0.0, %v1621
  %v1623 = vpop.f32.mrb[0].mxu0
  %1624 = vdwg.mxu0
  %v1625 = vadd.f32 %v1554, %v1622
  %v1626 = vmul.f32 %v1625, 0.5
  %v1627 = vtanh.pop %v1626
  %v1628 = vadd.f32 %v1627, 1.0
  %v1629 = vmul.f32 %v1628, 0.5
  %v1630 = vmul.f32 %v1478, %v1322
  %v1631 = vmul.f32 %v1401, %v1552
  %v1632 = vadd.f32 %v1630, %v1631
  %v1633 = vtanh.pop %v1632
  %v1634 = vmul.f32 %v1629, %v1633
  %s1635 = scalar_lea.vmem %s0, 160
  %v1636 = vld [vmem:[%s1635] sm:$0xff]
  %1637 = vmatprep.subr.mxu0 0.0
  %1638 = vmatpush1.msra.mxu0 %v20
  %1639 = vmatprep.subr.mxu0 0.0
  %1640 = vmatpush1.msra.mxu0 %v21
  %1641 = vmatprep.subr.mxu0 0.0
  %1642 = vmatpush1.msra.mxu0 %v22
  %1643 = vmatprep.subr.mxu0 0.0
  %1644 = vmatpush1.msra.mxu0 %v23
  %1645 = vmatprep.subr.mxu0 0.0
  %1646 = vmatpush1.msra.mxu0 %v24
  %1647 = vmatprep.subr.mxu0 0.0
  %1648 = vmatpush1.msra.mxu0 %v25
  %1649 = vmatprep.subr.mxu0 0.0
  %1650 = vmatpush1.msra.mxu0 %v26
  %1651 = vmatprep.subr.mxu0 0.0
  %1652 = vmatpush1.msra.mxu0 %v27
  %1653 = vmatprep.subr.mxu0 0.0
  %1654 = vmatpush1.msra.mxu0 %v28
  %1655 = vmatprep.subr.mxu0 0.0
  %1656 = vmatpush1.msra.mxu0 %v29
  %1657 = vmatprep.subr.mxu0 0.0
  %1658 = vmatpush1.msra.mxu0 %v30
  %1659 = vmatprep.subr.mxu0 0.0
  %1660 = vmatpush1.msra.mxu0 %v31
  %1661 = vmatprep.subr.mxu0 0.0
  %1662 = vmatpush1.msra.mxu0 %v32
  %1663 = vmatprep.subr.mxu0 0.0
  %1664 = vmatpush1.msra.mxu0 %v33
  %1665 = vmatprep.subr.mxu0 0.0
  %1666 = vmatpush1.msra.mxu0 %v34
  %1667 = vmatprep.subr.mxu0 0.0
  %1668 = vmatpush1.msra.mxu0 %v35
  %1669 = vmatprep.subr.mxu0 0.0
  %1670 = vmatpush1.msra.mxu0 0.0
  %1671 = vmatprep.subr.mxu0 0.0
  %1672 = vmatpush1.msra.mxu0 0.0
  %1673 = vmatprep.subr.mxu0 0.0
  %1674 = vmatpush1.msra.mxu0 0.0
  %1675 = vmatprep.subr.mxu0 0.0
  %1676 = vmatpush1.msra.mxu0 0.0
  %1677 = vmatprep.subr.mxu0 0.0
  %1678 = vmatpush1.msra.mxu0 0.0
  %1679 = vmatprep.subr.mxu0 0.0
  %1680 = vmatpush1.msra.mxu0 0.0
  %1681 = vmatprep.subr.mxu0 0.0
  %1682 = vmatpush1.msra.mxu0 0.0
  %1683 = vmatprep.subr.mxu0 0.0
  %1684 = vmatpush1.msra.mxu0 0.0
  %1685 = vmatprep.subr.mxu0 0.0
  %1686 = vmatpush1.msra.mxu0 0.0
  %1687 = vmatprep.subr.mxu0 0.0
  %1688 = vmatpush1.msra.mxu0 0.0
  %1689 = vmatprep.subr.mxu0 0.0
  %1690 = vmatpush1.msra.mxu0 0.0
  %1691 = vmatprep.subr.mxu0 0.0
  %1692 = vmatpush1.msra.mxu0 0.0
  %1693 = vmatprep.subr.mxu0 0.0
  %1694 = vmatpush1.msra.mxu0 0.0
  %1695 = vmatprep.subr.mxu0 0.0
  %1696 = vmatpush1.msra.mxu0 0.0
  %1697 = vmatprep.subr.mxu0 0.0
  %1698 = vmatpush1.msra.mxu0 0.0
  %1699 = vmatprep.subr.mxu0 0.0
  %1700 = vmatpush1.msra.mxu0 0.0
  %1701 = vmatprep.mubr.f32.mxu0 0.0
  %1702 = vmatmul.mubr.f32.gmra.mrb[0].mxu0 %v1634
  %v1703 = vpop.f32.mrb[0].mxu0
  %v1704 = vadd.f32 0.0, %v1703
  %v1705 = vpop.f32.mrb[0].mxu0
  %1706 = vdwg.mxu0
  %v1707 = vadd.f32 %v1636, %v1704
  %v1708 = vmul.f32 %v1707, 0.5
  %v1709 = vtanh.pop %v1708
  %v1710 = vadd.f32 %v1709, 1.0
  %v1711 = vmul.f32 %v1710, 0.5
  %s1712 = scalar_lea.vmem %s0, 168
  %v1713 = vld [vmem:[%s1712] sm:$0xff]
  %1714 = vmatprep.subr.mxu0 0.0
  %1715 = vmatpush1.msra.mxu0 %v114
  %1716 = vmatprep.subr.mxu0 0.0
  %1717 = vmatpush1.msra.mxu0 %v115
  %1718 = vmatprep.subr.mxu0 0.0
  %1719 = vmatpush1.msra.mxu0 %v116
  %1720 = vmatprep.subr.mxu0 0.0
  %1721 = vmatpush1.msra.mxu0 %v117
  %1722 = vmatprep.subr.mxu0 0.0
  %1723 = vmatpush1.msra.mxu0 %v118
  %1724 = vmatprep.subr.mxu0 0.0
  %1725 = vmatpush1.msra.mxu0 %v119
  %1726 = vmatprep.subr.mxu0 0.0
  %1727 = vmatpush1.msra.mxu0 %v120
  %1728 = vmatprep.subr.mxu0 0.0
  %1729 = vmatpush1.msra.mxu0 %v121
  %1730 = vmatprep.subr.mxu0 0.0
  %1731 = vmatpush1.msra.mxu0 %v122
  %1732 = vmatprep.subr.mxu0 0.0
  %1733 = vmatpush1.msra.mxu0 %v123
  %1734 = vmatprep.subr.mxu0 0.0
  %1735 = vmatpush1.msra.mxu0 %v124
  %1736 = vmatprep.subr.mxu0 0.0
  %1737 = vmatpush1.msra.mxu0 %v125
  %1738 = vmatprep.subr.mxu0 0.0
  %1739 = vmatpush1.msra.mxu0 %v126
  %1740 = vmatprep.subr.mxu0 0.0
  %1741 = vmatpush1.msra.mxu0 %v127
  %1742 = vmatprep.subr.mxu0 0.0
  %1743 = vmatpush1.msra.mxu0 %v128
  %1744 = vmatprep.subr.mxu0 0.0
  %1745 = vmatpush1.msra.mxu0 %v129
  %1746 = vmatprep.subr.mxu0 0.0
  %1747 = vmatpush1.msra.mxu0 0.0
  %1748 = vmatprep.subr.mxu0 0.0
  %1749 = vmatpush1.msra.mxu0 0.0
  %1750 = vmatprep.subr.mxu0 0.0
  %1751 = vmatpush1.msra.mxu0 0.0
  %1752 = vmatprep.subr.mxu0 0.0
  %1753 = vmatpush1.msra.mxu0 0.0
  %1754 = vmatprep.subr.mxu0 0.0
  %1755 = vmatpush1.msra.mxu0 0.0
  %1756 = vmatprep.subr.mxu0 0.0
  %1757 = vmatpush1.msra.mxu0 0.0
  %1758 = vmatprep.subr.mxu0 0.0
  %1759 = vmatpush1.msra.mxu0 0.0
  %1760 = vmatprep.subr.mxu0 0.0
  %1761 = vmatpush1.msra.mxu0 0.0
  %1762 = vmatprep.subr.mxu0 0.0
  %1763 = vmatpush1.msra.mxu0 0.0
  %1764 = vmatprep.subr.mxu0 0.0
  %1765 = vmatpush1.msra.mxu0 0.0
  %1766 = vmatprep.subr.mxu0 0.0
  %1767 = vmatpush1.msra.mxu0 0.0
  %1768 = vmatprep.subr.mxu0 0.0
  %1769 = vmatpush1.msra.mxu0 0.0
  %1770 = vmatprep.subr.mxu0 0.0
  %1771 = vmatpush1.msra.mxu0 0.0
  %1772 = vmatprep.subr.mxu0 0.0
  %1773 = vmatpush1.msra.mxu0 0.0
  %1774 = vmatprep.subr.mxu0 0.0
  %1775 = vmatpush1.msra.mxu0 0.0
  %1776 = vmatprep.subr.mxu0 0.0
  %1777 = vmatpush1.msra.mxu0 0.0
  %1778 = vmatprep.mubr.f32.mxu0 0.0
  %1779 = vmatmul.mubr.f32.gmra.mrb[0].mxu0 %v1634
  %v1780 = vpop.f32.mrb[0].mxu0
  %v1781 = vadd.f32 0.0, %v1780
  %v1782 = vpop.f32.mrb[0].mxu0
  %1783 = vdwg.mxu0
  %v1784 = vadd.f32 %v1713, %v1781
  %v1785 = vmul.f32 %v1784, 0.5
  %v1786 = vtanh.pop %v1785
  %v1787 = vadd.f32 %v1786, 1.0
  %v1788 = vmul.f32 %v1787, 0.5
  %s1789 = scalar_lea.vmem %s0, 176
  %v1790 = vld [vmem:[%s1789] sm:$0xff]
  %1791 = vmatprep.subr.mxu0 0.0
  %1792 = vmatpush1.msra.mxu0 %v208
  %1793 = vmatprep.subr.mxu0 0.0
  %1794 = vmatpush1.msra.mxu0 %v209
  %1795 = vmatprep.subr.mxu0 0.0
  %1796 = vmatpush1.msra.mxu0 %v210
  %1797 = vmatprep.subr.mxu0 0.0
  %1798 = vmatpush1.msra.mxu0 %v211
  %1799 = vmatprep.subr.mxu0 0.0
  %1800 = vmatpush1.msra.mxu0 %v212
  %1801 = vmatprep.subr.mxu0 0.0
  %1802 = vmatpush1.msra.mxu0 %v213
  %1803 = vmatprep.subr.mxu0 0.0
  %1804 = vmatpush1.msra.mxu0 %v214
  %1805 = vmatprep.subr.mxu0 0.0
  %1806 = vmatpush1.msra.mxu0 %v215
  %1807 = vmatprep.subr.mxu0 0.0
  %1808 = vmatpush1.msra.mxu0 %v216
  %1809 = vmatprep.subr.mxu0 0.0
  %1810 = vmatpush1.msra.mxu0 %v217
  %1811 = vmatprep.subr.mxu0 0.0
  %1812 = vmatpush1.msra.mxu0 %v218
  %1813 = vmatprep.subr.mxu0 0.0
  %1814 = vmatpush1.msra.mxu0 %v219
  %1815 = vmatprep.subr.mxu0 0.0
  %1816 = vmatpush1.msra.mxu0 %v220
  %1817 = vmatprep.subr.mxu0 0.0
  %1818 = vmatpush1.msra.mxu0 %v221
  %1819 = vmatprep.subr.mxu0 0.0
  %1820 = vmatpush1.msra.mxu0 %v222
  %1821 = vmatprep.subr.mxu0 0.0
  %1822 = vmatpush1.msra.mxu0 %v223
  %1823 = vmatprep.subr.mxu0 0.0
  %1824 = vmatpush1.msra.mxu0 0.0
  %1825 = vmatprep.subr.mxu0 0.0
  %1826 = vmatpush1.msra.mxu0 0.0
  %1827 = vmatprep.subr.mxu0 0.0
  %1828 = vmatpush1.msra.mxu0 0.0
  %1829 = vmatprep.subr.mxu0 0.0
  %1830 = vmatpush1.msra.mxu0 0.0
  %1831 = vmatprep.subr.mxu0 0.0
  %1832 = vmatpush1.msra.mxu0 0.0
  %1833 = vmatprep.subr.mxu0 0.0
  %1834 = vmatpush1.msra.mxu0 0.0
  %1835 = vmatprep.subr.mxu0 0.0
  %1836 = vmatpush1.msra.mxu0 0.0
  %1837 = vmatprep.subr.mxu0 0.0
  %1838 = vmatpush1.msra.mxu0 0.0
  %1839 = vmatprep.subr.mxu0 0.0
  %1840 = vmatpush1.msra.mxu0 0.0
  %1841 = vmatprep.subr.mxu0 0.0
  %1842 = vmatpush1.msra.mxu0 0.0
  %1843 = vmatprep.subr.mxu0 0.0
  %1844 = vmatpush1.msra.mxu0 0.0
  %1845 = vmatprep.subr.mxu0 0.0
  %1846 = vmatpush1.msra.mxu0 0.0
  %1847 = vmatprep.subr.mxu0 0.0
  %1848 = vmatpush1.msra.mxu0 0.0
  %1849 = vmatprep.subr.mxu0 0.0
  %1850 = vmatpush1.msra.mxu0 0.0
  %1851 = vmatprep.subr.mxu0 0.0
  %1852 = vmatpush1.msra.mxu0 0.0
  %1853 = vmatprep.subr.mxu0 0.0
  %1854 = vmatpush1.msra.mxu0 0.0
  %1855 = vmatprep.mubr.f32.mxu0 0.0
  %1856 = vmatmul.mubr.f32.gmra.mrb[0].mxu0 %v1634
  %v1857 = vpop.f32.mrb[0].mxu0
  %v1858 = vadd.f32 0.0, %v1857
  %v1859 = vpop.f32.mrb[0].mxu0
  %1860 = vdwg.mxu0
  %v1861 = vadd.f32 %v1790, %v1858
  %v1862 = vtanh.pop %v1861
  %s1863 = scalar_lea.vmem %s0, 184
  %v1864 = vld [vmem:[%s1863] sm:$0xff]
  %1865 = vmatprep.subr.mxu0 0.0
  %1866 = vmatpush1.msra.mxu0 %v299
  %1867 = vmatprep.subr.mxu0 0.0
  %1868 = vmatpush1.msra.mxu0 %v300
  %1869 = vmatprep.subr.mxu0 0.0
  %1870 = vmatpush1.msra.mxu0 %v301
  %1871 = vmatprep.subr.mxu0 0.0
  %1872 = vmatpush1.msra.mxu0 %v302
  %1873 = vmatprep.subr.mxu0 0.0
  %1874 = vmatpush1.msra.mxu0 %v303
  %1875 = vmatprep.subr.mxu0 0.0
  %1876 = vmatpush1.msra.mxu0 %v304
  %1877 = vmatprep.subr.mxu0 0.0
  %1878 = vmatpush1.msra.mxu0 %v305
  %1879 = vmatprep.subr.mxu0 0.0
  %1880 = vmatpush1.msra.mxu0 %v306
  %1881 = vmatprep.subr.mxu0 0.0
  %1882 = vmatpush1.msra.mxu0 %v307
  %1883 = vmatprep.subr.mxu0 0.0
  %1884 = vmatpush1.msra.mxu0 %v308
  %1885 = vmatprep.subr.mxu0 0.0
  %1886 = vmatpush1.msra.mxu0 %v309
  %1887 = vmatprep.subr.mxu0 0.0
  %1888 = vmatpush1.msra.mxu0 %v310
  %1889 = vmatprep.subr.mxu0 0.0
  %1890 = vmatpush1.msra.mxu0 %v311
  %1891 = vmatprep.subr.mxu0 0.0
  %1892 = vmatpush1.msra.mxu0 %v312
  %1893 = vmatprep.subr.mxu0 0.0
  %1894 = vmatpush1.msra.mxu0 %v313
  %1895 = vmatprep.subr.mxu0 0.0
  %1896 = vmatpush1.msra.mxu0 %v314
  %1897 = vmatprep.subr.mxu0 0.0
  %1898 = vmatpush1.msra.mxu0 0.0
  %1899 = vmatprep.subr.mxu0 0.0
  %1900 = vmatpush1.msra.mxu0 0.0
  %1901 = vmatprep.subr.mxu0 0.0
  %1902 = vmatpush1.msra.mxu0 0.0
  %1903 = vmatprep.subr.mxu0 0.0
  %1904 = vmatpush1.msra.mxu0 0.0
  %1905 = vmatprep.subr.mxu0 0.0
  %1906 = vmatpush1.msra.mxu0 0.0
  %1907 = vmatprep.subr.mxu0 0.0
  %1908 = vmatpush1.msra.mxu0 0.0
  %1909 = vmatprep.subr.mxu0 0.0
  %1910 = vmatpush1.msra.mxu0 0.0
  %1911 = vmatprep.subr.mxu0 0.0
  %1912 = vmatpush1.msra.mxu0 0.0
  %1913 = vmatprep.subr.mxu0 0.0
  %1914 = vmatpush1.msra.mxu0 0.0
  %1915 = vmatprep.subr.mxu0 0.0
  %1916 = vmatpush1.msra.mxu0 0.0
  %1917 = vmatprep.subr.mxu0 0.0
  %1918 = vmatpush1.msra.mxu0 0.0
  %1919 = vmatprep.subr.mxu0 0.0
  %1920 = vmatpush1.msra.mxu0 0.0
  %1921 = vmatprep.subr.mxu0 0.0
  %1922 = vmatpush1.msra.mxu0 0.0
  %1923 = vmatprep.subr.mxu0 0.0
  %1924 = vmatpush1.msra.mxu0 0.0
  %1925 = vmatprep.subr.mxu0 0.0
  %1926 = vmatpush1.msra.mxu0 0.0
  %1927 = vmatprep.subr.mxu0 0.0
  %1928 = vmatpush1.msra.mxu0 0.0
  %1929 = vmatprep.mubr.f32.mxu0 0.0
  %1930 = vmatmul.mubr.f32.gmra.mrb[0].mxu0 %v1634
  %v1931 = vpop.f32.mrb[0].mxu0
  %v1932 = vadd.f32 0.0, %v1931
  %v1933 = vpop.f32.mrb[0].mxu0
  %1934 = vdwg.mxu0
  %v1935 = vadd.f32 %v1864, %v1932
  %v1936 = vmul.f32 %v1935, 0.5
  %v1937 = vtanh.pop %v1936
  %v1938 = vadd.f32 %v1937, 1.0
  %v1939 = vmul.f32 %v1938, 0.5
  %v1940 = vmul.f32 %v1788, %v1632
  %v1941 = vmul.f32 %v1711, %v1862
  %v1942 = vadd.f32 %v1940, %v1941
  %v1943 = vtanh.pop %v1942
  %v1944 = vmul.f32 %v1939, %v1943
  %s1945 = scalar_lea.vmem %s0, 192
  %v1946 = vld [vmem:[%s1945] sm:$0xff]
  %1947 = vmatprep.subr.mxu0 0.0
  %1948 = vmatpush1.msra.mxu0 %v20
  %1949 = vmatprep.subr.mxu0 0.0
  %1950 = vmatpush1.msra.mxu0 %v21
  %1951 = vmatprep.subr.mxu0 0.0
  %1952 = vmatpush1.msra.mxu0 %v22
  %1953 = vmatprep.subr.mxu0 0.0
  %1954 = vmatpush1.msra.mxu0 %v23
  %1955 = vmatprep.subr.mxu0 0.0
  %1956 = vmatpush1.msra.mxu0 %v24
  %1957 = vmatprep.subr.mxu0 0.0
  %1958 = vmatpush1.msra.mxu0 %v25
  %1959 = vmatprep.subr.mxu0 0.0
  %1960 = vmatpush1.msra.mxu0 %v26
  %1961 = vmatprep.subr.mxu0 0.0
  %1962 = vmatpush1.msra.mxu0 %v27
  %1963 = vmatprep.subr.mxu0 0.0
  %1964 = vmatpush1.msra.mxu0 %v28
  %1965 = vmatprep.subr.mxu0 0.0
  %1966 = vmatpush1.msra.mxu0 %v29
  %1967 = vmatprep.subr.mxu0 0.0
  %1968 = vmatpush1.msra.mxu0 %v30
  %1969 = vmatprep.subr.mxu0 0.0
  %1970 = vmatpush1.msra.mxu0 %v31
  %1971 = vmatprep.subr.mxu0 0.0
  %1972 = vmatpush1.msra.mxu0 %v32
  %1973 = vmatprep.subr.mxu0 0.0
  %1974 = vmatpush1.msra.mxu0 %v33
  %1975 = vmatprep.subr.mxu0 0.0
  %1976 = vmatpush1.msra.mxu0 %v34
  %1977 = vmatprep.subr.mxu0 0.0
  %1978 = vmatpush1.msra.mxu0 %v35
  %1979 = vmatprep.subr.mxu0 0.0
  %1980 = vmatpush1.msra.mxu0 0.0
  %1981 = vmatprep.subr.mxu0 0.0
  %1982 = vmatpush1.msra.mxu0 0.0
  %1983 = vmatprep.subr.mxu0 0.0
  %1984 = vmatpush1.msra.mxu0 0.0
  %1985 = vmatprep.subr.mxu0 0.0
  %1986 = vmatpush1.msra.mxu0 0.0
  %1987 = vmatprep.subr.mxu0 0.0
  %1988 = vmatpush1.msra.mxu0 0.0
  %1989 = vmatprep.subr.mxu0 0.0
  %1990 = vmatpush1.msra.mxu0 0.0
  %1991 = vmatprep.subr.mxu0 0.0
  %1992 = vmatpush1.msra.mxu0 0.0
  %1993 = vmatprep.subr.mxu0 0.0
  %1994 = vmatpush1.msra.mxu0 0.0
  %1995 = vmatprep.subr.mxu0 0.0
  %1996 = vmatpush1.msra.mxu0 0.0
  %1997 = vmatprep.subr.mxu0 0.0
  %1998 = vmatpush1.msra.mxu0 0.0
  %1999 = vmatprep.subr.mxu0 0.0
  %2000 = vmatpush1.msra.mxu0 0.0
  %2001 = vmatprep.subr.mxu0 0.0
  %2002 = vmatpush1.msra.mxu0 0.0
  %2003 = vmatprep.subr.mxu0 0.0
  %2004 = vmatpush1.msra.mxu0 0.0
  %2005 = vmatprep.subr.mxu0 0.0
  %2006 = vmatpush1.msra.mxu0 0.0
  %2007 = vmatprep.subr.mxu0 0.0
  %2008 = vmatpush1.msra.mxu0 0.0
  %2009 = vmatprep.subr.mxu0 0.0
  %2010 = vmatpush1.msra.mxu0 0.0
  %2011 = vmatprep.mubr.f32.mxu0 0.0
  %2012 = vmatmul.mubr.f32.gmra.mrb[0].mxu0 %v1944
  %v2013 = vpop.f32.mrb[0].mxu0
  %v2014 = vadd.f32 0.0, %v2013
  %v2015 = vpop.f32.mrb[0].mxu0
  %2016 = vdwg.mxu0
  %v2017 = vadd.f32 %v1946, %v2014
  %v2018 = vmul.f32 %v2017, 0.5
  %v2019 = vtanh.pop %v2018
  %v2020 = vadd.f32 %v2019, 1.0
  %v2021 = vmul.f32 %v2020, 0.5
  %s2022 = scalar_lea.vmem %s0, 200
  %v2023 = vld [vmem:[%s2022] sm:$0xff]
  %2024 = vmatprep.subr.mxu0 0.0
  %2025 = vmatpush1.msra.mxu0 %v114
  %2026 = vmatprep.subr.mxu0 0.0
  %2027 = vmatpush1.msra.mxu0 %v115
  %2028 = vmatprep.subr.mxu0 0.0
  %2029 = vmatpush1.msra.mxu0 %v116
  %2030 = vmatprep.subr.mxu0 0.0
  %2031 = vmatpush1.msra.mxu0 %v117
  %2032 = vmatprep.subr.mxu0 0.0
  %2033 = vmatpush1.msra.mxu0 %v118
  %2034 = vmatprep.subr.mxu0 0.0
  %2035 = vmatpush1.msra.mxu0 %v119
  %2036 = vmatprep.subr.mxu0 0.0
  %2037 = vmatpush1.msra.mxu0 %v120
  %2038 = vmatprep.subr.mxu0 0.0
  %2039 = vmatpush1.msra.mxu0 %v121
  %2040 = vmatprep.subr.mxu0 0.0
  %2041 = vmatpush1.msra.mxu0 %v122
  %2042 = vmatprep.subr.mxu0 0.0
  %2043 = vmatpush1.msra.mxu0 %v123
  %2044 = vmatprep.subr.mxu0 0.0
  %2045 = vmatpush1.msra.mxu0 %v124
  %2046 = vmatprep.subr.mxu0 0.0
  %2047 = vmatpush1.msra.mxu0 %v125
  %2048 = vmatprep.subr.mxu0 0.0
  %2049 = vmatpush1.msra.mxu0 %v126
  %2050 = vmatprep.subr.mxu0 0.0
  %2051 = vmatpush1.msra.mxu0 %v127
  %2052 = vmatprep.subr.mxu0 0.0
  %2053 = vmatpush1.msra.mxu0 %v128
  %2054 = vmatprep.subr.mxu0 0.0
  %2055 = vmatpush1.msra.mxu0 %v129
  %2056 = vmatprep.subr.mxu0 0.0
  %2057 = vmatpush1.msra.mxu0 0.0
  %2058 = vmatprep.subr.mxu0 0.0
  %2059 = vmatpush1.msra.mxu0 0.0
  %2060 = vmatprep.subr.mxu0 0.0
  %2061 = vmatpush1.msra.mxu0 0.0
  %2062 = vmatprep.subr.mxu0 0.0
  %2063 = vmatpush1.msra.mxu0 0.0
  %2064 = vmatprep.subr.mxu0 0.0
  %2065 = vmatpush1.msra.mxu0 0.0
  %2066 = vmatprep.subr.mxu0 0.0
  %2067 = vmatpush1.msra.mxu0 0.0
  %2068 = vmatprep.subr.mxu0 0.0
  %2069 = vmatpush1.msra.mxu0 0.0
  %2070 = vmatprep.subr.mxu0 0.0
  %2071 = vmatpush1.msra.mxu0 0.0
  %2072 = vmatprep.subr.mxu0 0.0
  %2073 = vmatpush1.msra.mxu0 0.0
  %2074 = vmatprep.subr.mxu0 0.0
  %2075 = vmatpush1.msra.mxu0 0.0
  %2076 = vmatprep.subr.mxu0 0.0
  %2077 = vmatpush1.msra.mxu0 0.0
  %2078 = vmatprep.subr.mxu0 0.0
  %2079 = vmatpush1.msra.mxu0 0.0
  %2080 = vmatprep.subr.mxu0 0.0
  %2081 = vmatpush1.msra.mxu0 0.0
  %2082 = vmatprep.subr.mxu0 0.0
  %2083 = vmatpush1.msra.mxu0 0.0
  %2084 = vmatprep.subr.mxu0 0.0
  %2085 = vmatpush1.msra.mxu0 0.0
  %2086 = vmatprep.subr.mxu0 0.0
  %2087 = vmatpush1.msra.mxu0 0.0
  %2088 = vmatprep.mubr.f32.mxu0 0.0
  %2089 = vmatmul.mubr.f32.gmra.mrb[0].mxu0 %v1944
  %v2090 = vpop.f32.mrb[0].mxu0
  %v2091 = vadd.f32 0.0, %v2090
  %v2092 = vpop.f32.mrb[0].mxu0
  %2093 = vdwg.mxu0
  %v2094 = vadd.f32 %v2023, %v2091
  %v2095 = vmul.f32 %v2094, 0.5
  %v2096 = vtanh.pop %v2095
  %v2097 = vadd.f32 %v2096, 1.0
  %v2098 = vmul.f32 %v2097, 0.5
  %s2099 = scalar_lea.vmem %s0, 208
  %v2100 = vld [vmem:[%s2099] sm:$0xff]
  %2101 = vmatprep.subr.mxu0 0.0
  %2102 = vmatpush1.msra.mxu0 %v208
  %2103 = vmatprep.subr.mxu0 0.0
  %2104 = vmatpush1.msra.mxu0 %v209
  %2105 = vmatprep.subr.mxu0 0.0
  %2106 = vmatpush1.msra.mxu0 %v210
  %2107 = vmatprep.subr.mxu0 0.0
  %2108 = vmatpush1.msra.mxu0 %v211
  %2109 = vmatprep.subr.mxu0 0.0
  %2110 = vmatpush1.msra.mxu0 %v212
  %2111 = vmatprep.subr.mxu0 0.0
  %2112 = vmatpush1.msra.mxu0 %v213
  %2113 = vmatprep.subr.mxu0 0.0
  %2114 = vmatpush1.msra.mxu0 %v214
  %2115 = vmatprep.subr.mxu0 0.0
  %2116 = vmatpush1.msra.mxu0 %v215
  %2117 = vmatprep.subr.mxu0 0.0
  %2118 = vmatpush1.msra.mxu0 %v216
  %2119 = vmatprep.subr.mxu0 0.0
  %2120 = vmatpush1.msra.mxu0 %v217
  %2121 = vmatprep.subr.mxu0 0.0
  %2122 = vmatpush1.msra.mxu0 %v218
  %2123 = vmatprep.subr.mxu0 0.0
  %2124 = vmatpush1.msra.mxu0 %v219
  %2125 = vmatprep.subr.mxu0 0.0
  %2126 = vmatpush1.msra.mxu0 %v220
  %2127 = vmatprep.subr.mxu0 0.0
  %2128 = vmatpush1.msra.mxu0 %v221
  %2129 = vmatprep.subr.mxu0 0.0
  %2130 = vmatpush1.msra.mxu0 %v222
  %2131 = vmatprep.subr.mxu0 0.0
  %2132 = vmatpush1.msra.mxu0 %v223
  %2133 = vmatprep.subr.mxu0 0.0
  %2134 = vmatpush1.msra.mxu0 0.0
  %2135 = vmatprep.subr.mxu0 0.0
  %2136 = vmatpush1.msra.mxu0 0.0
  %2137 = vmatprep.subr.mxu0 0.0
  %2138 = vmatpush1.msra.mxu0 0.0
  %2139 = vmatprep.subr.mxu0 0.0
  %2140 = vmatpush1.msra.mxu0 0.0
  %2141 = vmatprep.subr.mxu0 0.0
  %2142 = vmatpush1.msra.mxu0 0.0
  %2143 = vmatprep.subr.mxu0 0.0
  %2144 = vmatpush1.msra.mxu0 0.0
  %2145 = vmatprep.subr.mxu0 0.0
  %2146 = vmatpush1.msra.mxu0 0.0
  %2147 = vmatprep.subr.mxu0 0.0
  %2148 = vmatpush1.msra.mxu0 0.0
  %2149 = vmatprep.subr.mxu0 0.0
  %2150 = vmatpush1.msra.mxu0 0.0
  %2151 = vmatprep.subr.mxu0 0.0
  %2152 = vmatpush1.msra.mxu0 0.0
  %2153 = vmatprep.subr.mxu0 0.0
  %2154 = vmatpush1.msra.mxu0 0.0
  %2155 = vmatprep.subr.mxu0 0.0
  %2156 = vmatpush1.msra.mxu0 0.0
  %2157 = vmatprep.subr.mxu0 0.0
  %2158 = vmatpush1.msra.mxu0 0.0
  %2159 = vmatprep.subr.mxu0 0.0
  %2160 = vmatpush1.msra.mxu0 0.0
  %2161 = vmatprep.subr.mxu0 0.0
  %2162 = vmatpush1.msra.mxu0 0.0
  %2163 = vmatprep.subr.mxu0 0.0
  %2164 = vmatpush1.msra.mxu0 0.0
  %2165 = vmatprep.mubr.f32.mxu0 0.0
  %2166 = vmatmul.mubr.f32.gmra.mrb[0].mxu0 %v1944
  %v2167 = vpop.f32.mrb[0].mxu0
  %v2168 = vadd.f32 0.0, %v2167
  %v2169 = vpop.f32.mrb[0].mxu0
  %2170 = vdwg.mxu0
  %v2171 = vadd.f32 %v2100, %v2168
  %v2172 = vtanh.pop %v2171
  %s2173 = scalar_lea.vmem %s0, 216
  %v2174 = vld [vmem:[%s2173] sm:$0xff]
  %2175 = vmatprep.subr.mxu0 0.0
  %2176 = vmatpush1.msra.mxu0 %v299
  %2177 = vmatprep.subr.mxu0 0.0
  %2178 = vmatpush1.msra.mxu0 %v300
  %2179 = vmatprep.subr.mxu0 0.0
  %2180 = vmatpush1.msra.mxu0 %v301
  %2181 = vmatprep.subr.mxu0 0.0
  %2182 = vmatpush1.msra.mxu0 %v302
  %2183 = vmatprep.subr.mxu0 0.0
  %2184 = vmatpush1.msra.mxu0 %v303
  %2185 = vmatprep.subr.mxu0 0.0
  %2186 = vmatpush1.msra.mxu0 %v304
  %2187 = vmatprep.subr.mxu0 0.0
  %2188 = vmatpush1.msra.mxu0 %v305
  %2189 = vmatprep.subr.mxu0 0.0
  %2190 = vmatpush1.msra.mxu0 %v306
  %2191 = vmatprep.subr.mxu0 0.0
  %2192 = vmatpush1.msra.mxu0 %v307
  %2193 = vmatprep.subr.mxu0 0.0
  %2194 = vmatpush1.msra.mxu0 %v308
  %2195 = vmatprep.subr.mxu0 0.0
  %2196 = vmatpush1.msra.mxu0 %v309
  %2197 = vmatprep.subr.mxu0 0.0
  %2198 = vmatpush1.msra.mxu0 %v310
  %2199 = vmatprep.subr.mxu0 0.0
  %2200 = vmatpush1.msra.mxu0 %v311
  %2201 = vmatprep.subr.mxu0 0.0
  %2202 = vmatpush1.msra.mxu0 %v312
  %2203 = vmatprep.subr.mxu0 0.0
  %2204 = vmatpush1.msra.mxu0 %v313
  %2205 = vmatprep.subr.mxu0 0.0
  %2206 = vmatpush1.msra.mxu0 %v314
  %2207 = vmatprep.subr.mxu0 0.0
  %2208 = vmatpush1.msra.mxu0 0.0
  %2209 = vmatprep.subr.mxu0 0.0
  %2210 = vmatpush1.msra.mxu0 0.0
  %2211 = vmatprep.subr.mxu0 0.0
  %2212 = vmatpush1.msra.mxu0 0.0
  %2213 = vmatprep.subr.mxu0 0.0
  %2214 = vmatpush1.msra.mxu0 0.0
  %2215 = vmatprep.subr.mxu0 0.0
  %2216 = vmatpush1.msra.mxu0 0.0
  %2217 = vmatprep.subr.mxu0 0.0
  %2218 = vmatpush1.msra.mxu0 0.0
  %2219 = vmatprep.subr.mxu0 0.0
  %2220 = vmatpush1.msra.mxu0 0.0
  %2221 = vmatprep.subr.mxu0 0.0
  %2222 = vmatpush1.msra.mxu0 0.0
  %2223 = vmatprep.subr.mxu0 0.0
  %2224 = vmatpush1.msra.mxu0 0.0
  %2225 = vmatprep.subr.mxu0 0.0
  %2226 = vmatpush1.msra.mxu0 0.0
  %2227 = vmatprep.subr.mxu0 0.0
  %2228 = vmatpush1.msra.mxu0 0.0
  %2229 = vmatprep.subr.mxu0 0.0
  %2230 = vmatpush1.msra.mxu0 0.0
  %2231 = vmatprep.subr.mxu0 0.0
  %2232 = vmatpush1.msra.mxu0 0.0
  %2233 = vmatprep.subr.mxu0 0.0
  %2234 = vmatpush1.msra.mxu0 0.0
  %2235 = vmatprep.subr.mxu0 0.0
  %2236 = vmatpush1.msra.mxu0 0.0
  %2237 = vmatprep.subr.mxu0 0.0
  %2238 = vmatpush1.msra.mxu0 0.0
  %2239 = vmatprep.mubr.f32.mxu0 0.0
  %2240 = vmatmul.mubr.f32.gmra.mrb[0].mxu0 %v1944
  %v2241 = vpop.f32.mrb[0].mxu0
  %v2242 = vadd.f32 0.0, %v2241
  %v2243 = vpop.f32.mrb[0].mxu0
  %2244 = vdwg.mxu0
  %v2245 = vadd.f32 %v2174, %v2242
  %v2246 = vmul.f32 %v2245, 0.5
  %v2247 = vtanh.pop %v2246
  %v2248 = vadd.f32 %v2247, 1.0
  %v2249 = vmul.f32 %v2248, 0.5
  %v2250 = vmul.f32 %v2098, %v1942
  %v2251 = vmul.f32 %v2021, %v2172
  %v2252 = vadd.f32 %v2250, %v2251
  %v2253 = vtanh.pop %v2252
  %v2254 = vmul.f32 %v2249, %v2253
  %s2255 = scalar_lea.vmem %s0, 224
  %v2256 = vld [vmem:[%s2255] sm:$0xff]
  %2257 = vmatprep.subr.mxu0 0.0
  %2258 = vmatpush1.msra.mxu0 %v20
  %2259 = vmatprep.subr.mxu0 0.0
  %2260 = vmatpush1.msra.mxu0 %v21
  %2261 = vmatprep.subr.mxu0 0.0
  %2262 = vmatpush1.msra.mxu0 %v22
  %2263 = vmatprep.subr.mxu0 0.0
  %2264 = vmatpush1.msra.mxu0 %v23
  %2265 = vmatprep.subr.mxu0 0.0
  %2266 = vmatpush1.msra.mxu0 %v24
  %2267 = vmatprep.subr.mxu0 0.0
  %2268 = vmatpush1.msra.mxu0 %v25
  %2269 = vmatprep.subr.mxu0 0.0
  %2270 = vmatpush1.msra.mxu0 %v26
  %2271 = vmatprep.subr.mxu0 0.0
  %2272 = vmatpush1.msra.mxu0 %v27
  %2273 = vmatprep.subr.mxu0 0.0
  %2274 = vmatpush1.msra.mxu0 %v28
  %2275 = vmatprep.subr.mxu0 0.0
  %2276 = vmatpush1.msra.mxu0 %v29
  %2277 = vmatprep.subr.mxu0 0.0
  %2278 = vmatpush1.msra.mxu0 %v30
  %2279 = vmatprep.subr.mxu0 0.0
  %2280 = vmatpush1.msra.mxu0 %v31
  %2281 = vmatprep.subr.mxu0 0.0
  %2282 = vmatpush1.msra.mxu0 %v32
  %2283 = vmatprep.subr.mxu0 0.0
  %2284 = vmatpush1.msra.mxu0 %v33
  %2285 = vmatprep.subr.mxu0 0.0
  %2286 = vmatpush1.msra.mxu0 %v34
  %2287 = vmatprep.subr.mxu0 0.0
  %2288 = vmatpush1.msra.mxu0 %v35
  %2289 = vmatprep.subr.mxu0 0.0
  %2290 = vmatpush1.msra.mxu0 0.0
  %2291 = vmatprep.subr.mxu0 0.0
  %2292 = vmatpush1.msra.mxu0 0.0
  %2293 = vmatprep.subr.mxu0 0.0
  %2294 = vmatpush1.msra.mxu0 0.0
  %2295 = vmatprep.subr.mxu0 0.0
  %2296 = vmatpush1.msra.mxu0 0.0
  %2297 = vmatprep.subr.mxu0 0.0
  %2298 = vmatpush1.msra.mxu0 0.0
  %2299 = vmatprep.subr.mxu0 0.0
  %2300 = vmatpush1.msra.mxu0 0.0
  %2301 = vmatprep.subr.mxu0 0.0
  %2302 = vmatpush1.msra.mxu0 0.0
  %2303 = vmatprep.subr.mxu0 0.0
  %2304 = vmatpush1.msra.mxu0 0.0
  %2305 = vmatprep.subr.mxu0 0.0
  %2306 = vmatpush1.msra.mxu0 0.0
  %2307 = vmatprep.subr.mxu0 0.0
  %2308 = vmatpush1.msra.mxu0 0.0
  %2309 = vmatprep.subr.mxu0 0.0
  %2310 = vmatpush1.msra.mxu0 0.0
  %2311 = vmatprep.subr.mxu0 0.0
  %2312 = vmatpush1.msra.mxu0 0.0
  %2313 = vmatprep.subr.mxu0 0.0
  %2314 = vmatpush1.msra.mxu0 0.0
  %2315 = vmatprep.subr.mxu0 0.0
  %2316 = vmatpush1.msra.mxu0 0.0
  %2317 = vmatprep.subr.mxu0 0.0
  %2318 = vmatpush1.msra.mxu0 0.0
  %2319 = vmatprep.subr.mxu0 0.0
  %2320 = vmatpush1.msra.mxu0 0.0
  %2321 = vmatprep.mubr.f32.mxu0 0.0
  %2322 = vmatmul.mubr.f32.gmra.mrb[0].mxu0 %v2254
  %v2323 = vpop.f32.mrb[0].mxu0
  %v2324 = vadd.f32 0.0, %v2323
  %v2325 = vpop.f32.mrb[0].mxu0
  %2326 = vdwg.mxu0
  %v2327 = vadd.f32 %v2256, %v2324
  %v2328 = vmul.f32 %v2327, 0.5
  %v2329 = vtanh.pop %v2328
  %v2330 = vadd.f32 %v2329, 1.0
  %v2331 = vmul.f32 %v2330, 0.5
  %s2332 = scalar_lea.vmem %s0, 232
  %v2333 = vld [vmem:[%s2332] sm:$0xff]
  %2334 = vmatprep.subr.mxu0 0.0
  %2335 = vmatpush1.msra.mxu0 %v114
  %2336 = vmatprep.subr.mxu0 0.0
  %2337 = vmatpush1.msra.mxu0 %v115
  %2338 = vmatprep.subr.mxu0 0.0
  %2339 = vmatpush1.msra.mxu0 %v116
  %2340 = vmatprep.subr.mxu0 0.0
  %2341 = vmatpush1.msra.mxu0 %v117
  %2342 = vmatprep.subr.mxu0 0.0
  %2343 = vmatpush1.msra.mxu0 %v118
  %2344 = vmatprep.subr.mxu0 0.0
  %2345 = vmatpush1.msra.mxu0 %v119
  %2346 = vmatprep.subr.mxu0 0.0
  %2347 = vmatpush1.msra.mxu0 %v120
  %2348 = vmatprep.subr.mxu0 0.0
  %2349 = vmatpush1.msra.mxu0 %v121
  %2350 = vmatprep.subr.mxu0 0.0
  %2351 = vmatpush1.msra.mxu0 %v122
  %2352 = vmatprep.subr.mxu0 0.0
  %2353 = vmatpush1.msra.mxu0 %v123
  %2354 = vmatprep.subr.mxu0 0.0
  %2355 = vmatpush1.msra.mxu0 %v124
  %2356 = vmatprep.subr.mxu0 0.0
  %2357 = vmatpush1.msra.mxu0 %v125
  %2358 = vmatprep.subr.mxu0 0.0
  %2359 = vmatpush1.msra.mxu0 %v126
  %2360 = vmatprep.subr.mxu0 0.0
  %2361 = vmatpush1.msra.mxu0 %v127
  %2362 = vmatprep.subr.mxu0 0.0
  %2363 = vmatpush1.msra.mxu0 %v128
  %2364 = vmatprep.subr.mxu0 0.0
  %2365 = vmatpush1.msra.mxu0 %v129
  %2366 = vmatprep.subr.mxu0 0.0
  %2367 = vmatpush1.msra.mxu0 0.0
  %2368 = vmatprep.subr.mxu0 0.0
  %2369 = vmatpush1.msra.mxu0 0.0
  %2370 = vmatprep.subr.mxu0 0.0
  %2371 = vmatpush1.msra.mxu0 0.0
  %2372 = vmatprep.subr.mxu0 0.0
  %2373 = vmatpush1.msra.mxu0 0.0
  %2374 = vmatprep.subr.mxu0 0.0
  %2375 = vmatpush1.msra.mxu0 0.0
  %2376 = vmatprep.subr.mxu0 0.0
  %2377 = vmatpush1.msra.mxu0 0.0
  %2378 = vmatprep.subr.mxu0 0.0
  %2379 = vmatpush1.msra.mxu0 0.0
  %2380 = vmatprep.subr.mxu0 0.0
  %2381 = vmatpush1.msra.mxu0 0.0
  %2382 = vmatprep.subr.mxu0 0.0
  %2383 = vmatpush1.msra.mxu0 0.0
  %2384 = vmatprep.subr.mxu0 0.0
  %2385 = vmatpush1.msra.mxu0 0.0
  %2386 = vmatprep.subr.mxu0 0.0
  %2387 = vmatpush1.msra.mxu0 0.0
  %2388 = vmatprep.subr.mxu0 0.0
  %2389 = vmatpush1.msra.mxu0 0.0
  %2390 = vmatprep.subr.mxu0 0.0
  %2391 = vmatpush1.msra.mxu0 0.0
  %2392 = vmatprep.subr.mxu0 0.0
  %2393 = vmatpush1.msra.mxu0 0.0
  %2394 = vmatprep.subr.mxu0 0.0
  %2395 = vmatpush1.msra.mxu0 0.0
  %2396 = vmatprep.subr.mxu0 0.0
  %2397 = vmatpush1.msra.mxu0 0.0
  %2398 = vmatprep.mubr.f32.mxu0 0.0
  %2399 = vmatmul.mubr.f32.gmra.mrb[0].mxu0 %v2254
  %v2400 = vpop.f32.mrb[0].mxu0
  %v2401 = vadd.f32 0.0, %v2400
  %v2402 = vpop.f32.mrb[0].mxu0
  %2403 = vdwg.mxu0
  %v2404 = vadd.f32 %v2333, %v2401
  %v2405 = vmul.f32 %v2404, 0.5
  %v2406 = vtanh.pop %v2405
  %v2407 = vadd.f32 %v2406, 1.0
  %v2408 = vmul.f32 %v2407, 0.5
  %s2409 = scalar_lea.vmem %s0, 240
  %v2410 = vld [vmem:[%s2409] sm:$0xff]
  %2411 = vmatprep.subr.mxu0 0.0
  %2412 = vmatpush1.msra.mxu0 %v208
  %2413 = vmatprep.subr.mxu0 0.0
  %2414 = vmatpush1.msra.mxu0 %v209
  %2415 = vmatprep.subr.mxu0 0.0
  %2416 = vmatpush1.msra.mxu0 %v210
  %2417 = vmatprep.subr.mxu0 0.0
  %2418 = vmatpush1.msra.mxu0 %v211
  %2419 = vmatprep.subr.mxu0 0.0
  %2420 = vmatpush1.msra.mxu0 %v212
  %2421 = vmatprep.subr.mxu0 0.0
  %2422 = vmatpush1.msra.mxu0 %v213
  %2423 = vmatprep.subr.mxu0 0.0
  %2424 = vmatpush1.msra.mxu0 %v214
  %2425 = vmatprep.subr.mxu0 0.0
  %2426 = vmatpush1.msra.mxu0 %v215
  %2427 = vmatprep.subr.mxu0 0.0
  %2428 = vmatpush1.msra.mxu0 %v216
  %2429 = vmatprep.subr.mxu0 0.0
  %2430 = vmatpush1.msra.mxu0 %v217
  %2431 = vmatprep.subr.mxu0 0.0
  %2432 = vmatpush1.msra.mxu0 %v218
  %2433 = vmatprep.subr.mxu0 0.0
  %2434 = vmatpush1.msra.mxu0 %v219
  %2435 = vmatprep.subr.mxu0 0.0
  %2436 = vmatpush1.msra.mxu0 %v220
  %2437 = vmatprep.subr.mxu0 0.0
  %2438 = vmatpush1.msra.mxu0 %v221
  %2439 = vmatprep.subr.mxu0 0.0
  %2440 = vmatpush1.msra.mxu0 %v222
  %2441 = vmatprep.subr.mxu0 0.0
  %2442 = vmatpush1.msra.mxu0 %v223
  %2443 = vmatprep.subr.mxu0 0.0
  %2444 = vmatpush1.msra.mxu0 0.0
  %2445 = vmatprep.subr.mxu0 0.0
  %2446 = vmatpush1.msra.mxu0 0.0
  %2447 = vmatprep.subr.mxu0 0.0
  %2448 = vmatpush1.msra.mxu0 0.0
  %2449 = vmatprep.subr.mxu0 0.0
  %2450 = vmatpush1.msra.mxu0 0.0
  %2451 = vmatprep.subr.mxu0 0.0
  %2452 = vmatpush1.msra.mxu0 0.0
  %2453 = vmatprep.subr.mxu0 0.0
  %2454 = vmatpush1.msra.mxu0 0.0
  %2455 = vmatprep.subr.mxu0 0.0
  %2456 = vmatpush1.msra.mxu0 0.0
  %2457 = vmatprep.subr.mxu0 0.0
  %2458 = vmatpush1.msra.mxu0 0.0
  %2459 = vmatprep.subr.mxu0 0.0
  %2460 = vmatpush1.msra.mxu0 0.0
  %2461 = vmatprep.subr.mxu0 0.0
  %2462 = vmatpush1.msra.mxu0 0.0
  %2463 = vmatprep.subr.mxu0 0.0
  %2464 = vmatpush1.msra.mxu0 0.0
  %2465 = vmatprep.subr.mxu0 0.0
  %2466 = vmatpush1.msra.mxu0 0.0
  %2467 = vmatprep.subr.mxu0 0.0
  %2468 = vmatpush1.msra.mxu0 0.0
  %2469 = vmatprep.subr.mxu0 0.0
  %2470 = vmatpush1.msra.mxu0 0.0
  %2471 = vmatprep.subr.mxu0 0.0
  %2472 = vmatpush1.msra.mxu0 0.0
  %2473 = vmatprep.subr.mxu0 0.0
  %2474 = vmatpush1.msra.mxu0 0.0
  %2475 = vmatprep.mubr.f32.mxu0 0.0
  %2476 = vmatmul.mubr.f32.gmra.mrb[0].mxu0 %v2254
  %v2477 = vpop.f32.mrb[0].mxu0
  %v2478 = vadd.f32 0.0, %v2477
  %v2479 = vpop.f32.mrb[0].mxu0
  %2480 = vdwg.mxu0
  %v2481 = vadd.f32 %v2410, %v2478
  %v2482 = vtanh.pop %v2481
  %s2483 = scalar_lea.vmem %s0, 248
  %v2484 = vld [vmem:[%s2483] sm:$0xff]
  %2485 = vmatprep.subr.mxu0 0.0
  %2486 = vmatpush1.msra.mxu0 %v299
  %2487 = vmatprep.subr.mxu0 0.0
  %2488 = vmatpush1.msra.mxu0 %v300
  %2489 = vmatprep.subr.mxu0 0.0
  %2490 = vmatpush1.msra.mxu0 %v301
  %2491 = vmatprep.subr.mxu0 0.0
  %2492 = vmatpush1.msra.mxu0 %v302
  %2493 = vmatprep.subr.mxu0 0.0
  %2494 = vmatpush1.msra.mxu0 %v303
  %2495 = vmatprep.subr.mxu0 0.0
  %2496 = vmatpush1.msra.mxu0 %v304
  %2497 = vmatprep.subr.mxu0 0.0
  %2498 = vmatpush1.msra.mxu0 %v305
  %2499 = vmatprep.subr.mxu0 0.0
  %2500 = vmatpush1.msra.mxu0 %v306
  %2501 = vmatprep.subr.mxu0 0.0
  %2502 = vmatpush1.msra.mxu0 %v307
  %2503 = vmatprep.subr.mxu0 0.0
  %2504 = vmatpush1.msra.mxu0 %v308
  %2505 = vmatprep.subr.mxu0 0.0
  %2506 = vmatpush1.msra.mxu0 %v309
  %2507 = vmatprep.subr.mxu0 0.0
  %2508 = vmatpush1.msra.mxu0 %v310
  %2509 = vmatprep.subr.mxu0 0.0
  %2510 = vmatpush1.msra.mxu0 %v311
  %2511 = vmatprep.subr.mxu0 0.0
  %2512 = vmatpush1.msra.mxu0 %v312
  %2513 = vmatprep.subr.mxu0 0.0
  %2514 = vmatpush1.msra.mxu0 %v313
  %2515 = vmatprep.subr.mxu0 0.0
  %2516 = vmatpush1.msra.mxu0 %v314
  %2517 = vmatprep.subr.mxu0 0.0
  %2518 = vmatpush1.msra.mxu0 0.0
  %2519 = vmatprep.subr.mxu0 0.0
  %2520 = vmatpush1.msra.mxu0 0.0
  %2521 = vmatprep.subr.mxu0 0.0
  %2522 = vmatpush1.msra.mxu0 0.0
  %2523 = vmatprep.subr.mxu0 0.0
  %2524 = vmatpush1.msra.mxu0 0.0
  %2525 = vmatprep.subr.mxu0 0.0
  %2526 = vmatpush1.msra.mxu0 0.0
  %2527 = vmatprep.subr.mxu0 0.0
  %2528 = vmatpush1.msra.mxu0 0.0
  %2529 = vmatprep.subr.mxu0 0.0
  %2530 = vmatpush1.msra.mxu0 0.0
  %2531 = vmatprep.subr.mxu0 0.0
  %2532 = vmatpush1.msra.mxu0 0.0
  %2533 = vmatprep.subr.mxu0 0.0
  %2534 = vmatpush1.msra.mxu0 0.0
  %2535 = vmatprep.subr.mxu0 0.0
  %2536 = vmatpush1.msra.mxu0 0.0
  %2537 = vmatprep.subr.mxu0 0.0
  %2538 = vmatpush1.msra.mxu0 0.0
  %2539 = vmatprep.subr.mxu0 0.0
  %2540 = vmatpush1.msra.mxu0 0.0
  %2541 = vmatprep.subr.mxu0 0.0
  %2542 = vmatpush1.msra.mxu0 0.0
  %2543 = vmatprep.subr.mxu0 0.0
  %2544 = vmatpush1.msra.mxu0 0.0
  %2545 = vmatprep.subr.mxu0 0.0
  %2546 = vmatpush1.msra.mxu0 0.0
  %2547 = vmatprep.subr.mxu0 0.0
  %2548 = vmatpush1.msra.mxu0 0.0
  %2549 = vmatprep.mubr.f32.mxu0 0.0
  %2550 = vmatmul.mubr.f32.gmra.mrb[0].mxu0 %v2254
  %v2551 = vpop.f32.mrb[0].mxu0
  %v2552 = vadd.f32 0.0, %v2551
  %v2553 = vpop.f32.mrb[0].mxu0
  %2554 = vdwg.mxu0
  %v2555 = vadd.f32 %v2484, %v2552
  %v2556 = vmul.f32 %v2555, 0.5
  %v2557 = vtanh.pop %v2556
  %v2558 = vadd.f32 %v2557, 1.0
  %v2559 = vmul.f32 %v2558, 0.5
  %v2560 = vmul.f32 %v2408, %v2252
  %v2561 = vmul.f32 %v2331, %v2482
  %v2562 = vadd.f32 %v2560, %v2561
  %v2563 = vtanh.pop %v2562
  %v2564 = vmul.f32 %v2559, %v2563
  %2565 = vst [vmem:[#allocation2] sm:$0xff] %v2564
  %2566 = vst [vmem:[#allocation3] sm:$0xff] %v2562
  // Predicated region
  $region14: #{rnn_forward.1} parent=0 // pred_check
    %p2567 = pneg %p11
  $region15: #{rnn_forward.1} parent=0 // pred_check_branch
    %2569 = sbr.rel (%p2567) target = $region17
  $region16: #{rnn_forward.1} parent=0 // pred_region
    %2570 = vst [vmem:[%s2] sm:$0xff] %v2564
  $region17: #{rnn_forward.1} parent=0 // pred_fallthru
    _
  // Predicated region
  $region18: #{rnn_forward.1} parent=0 // pred_check
    _
  $region19: #{rnn_forward.1} parent=0 // pred_check_branch
    %2572 = sbr.rel (0) target = $region21
  $region20: #{rnn_forward.1} parent=0 // pred_region
    _
  $region21: #{rnn_forward.1} parent=0 // pred_fallthru
    _
  // Predicated region
  $region22: #{rnn_forward.1} parent=0 // pred_check
    _
  $region23: #{rnn_forward.1} parent=0 // pred_check_branch
    %2574 = sbr.rel (0) target = $region25
  $region24: #{rnn_forward.1} parent=0 // pred_region
    _
  $region25: #{rnn_forward.1} parent=0 // pred_fallthru
    _

</llo_original>
